<compile_context>
chip_gen: v6e
topology: v6e:2x2x1
jax: 0.10.0
libtpu: 0.0.40
codegen_flags: <defaults>
</compile_context>

<pallas_src>
import numpy as np
import jax
import jax.numpy as jnp
from jax import lax
from jax.experimental import pallas as pl
from jax.experimental.pallas import tpu as pltpu

# ---------------- small synthetic GPT-2 config ----------------
B = 2              # batch
PROMPT_LEN = 4     # prompt length
MAX_LEN = 8        # generation max_length (module default is 100; small here)
D = 64             # n_embd
NH = 2             # heads
HD = D // NH       # head dim
L = 2              # layers
V = 128            # vocab = lm_head.out_features (multiple of 128 lanes)
FF = 4 * D         # mlp hidden
EPS = 1e-5
PAD_ID = 0         # Wrapper_GPT2.PAD_ID
NEG_INF = -1e30

NSTEPS = MAX_LEN - PROMPT_LEN   # decode steps (the grid axis)
BT = B * MAX_LEN                # batch folded into the row (sublane) dimension
assert MAX_LEN & (MAX_LEN - 1) == 0, "MAX_LEN must be a power of two (bit tricks)"

# kernel weight-arg order (after mask_add, oh0, wpe_bt)
PARAM_ORDER = ("wte", "ln1g", "ln1b", "wqkv", "bqkv", "wo", "bo",
               "ln2g", "ln2b", "wfc", "bfc", "wpr", "bpr",
               "lnfg", "lnfb", "lmw")


# ---------------- Pallas kernel: fused greedy decode ----------------
def gpt2_decode_kernel(mask_ref, oh0_ref, wpe_ref,
                       wte_ref, ln1g_ref, ln1b_ref,
                       wqkv_ref, bqkv_ref, wo_ref, bo_ref,
                       ln2g_ref, ln2b_ref,
                       wfc_ref, bfc_ref, wpr_ref, bpr_ref,
                       lnfg_ref, lnfb_ref, lmw_ref,
                       out_ref, tok_ref, oh_tok_ref):
    f32, bf16 = jnp.float32, jnp.bfloat16
    s = pl.program_id(0)               # decode step
    step_pos = PROMPT_LEN + s          # sequence position filled by this step

    # Step 0: load the prompt one-hots into the carried VMEM scratch.
    @pl.when(s == 0)
    def _():
        oh_tok_ref[...] = oh0_ref[...]

    def layernorm(x, g, b):
        mu = jnp.mean(x, axis=-1, keepdims=True)
        xc = x - mu
        var = jnp.mean(xc * xc, axis=-1, keepdims=True)
        return xc * lax.rsqrt(var + EPS) * g + b

    mask_add = mask_ref[...]           # step-invariant additive causal mask [BT,BT]

    # token embeddings: one-hot @ wte IS the gather, done on the MXU
    oh_tok = oh_tok_ref[...]                              # [BT, V] f32 (0/1)
    h = jnp.dot(oh_tok.astype(bf16), wte_ref[...],
                preferred_element_type=f32) + wpe_ref[...]            # [BT, D] f32

    scale = 1.0 / float(np.sqrt(HD))
    for l in range(L):
        # --- attention (pre-LN): fused QKV matmul, per-head scores, concat+WO ---
        hn = layernorm(h, ln1g_ref[l], ln1b_ref[l]).astype(bf16)      # [BT, D]
        qkv = (jnp.dot(hn, wqkv_ref[l], preferred_element_type=f32)
               + bqkv_ref[l]).astype(bf16)                            # [BT, 3D]
        o_heads = []
        for hh in range(NH):
            q_h = qkv[:, hh * HD:(hh + 1) * HD]                       # [BT, HD]
            k_h = qkv[:, D + hh * HD:D + (hh + 1) * HD]
            v_h = qkv[:, 2 * D + hh * HD:2 * D + (hh + 1) * HD]
            sc = lax.dot_general(q_h, k_h, (((1,), (1,)), ((), ())),
                                 preferred_element_type=f32) * scale + mask_add
            m = jnp.max(sc, axis=-1, keepdims=True)
            p = jnp.exp(sc - m)
            p = p / jnp.sum(p, axis=-1, keepdims=True)                # exact softmax
            o_heads.append(jnp.dot(p.astype(bf16), v_h,
                                   preferred_element_type=f32))       # [BT, HD]
        o = jnp.concatenate(o_heads, axis=-1).astype(bf16)            # [BT, D]
        h = h + jnp.dot(o, wo_ref[l], preferred_element_type=f32) + bo_ref[l]

        # --- MLP (pre-LN) ---
        hn2 = layernorm(h, ln2g_ref[l], ln2b_ref[l]).astype(bf16)
        ff = jnp.dot(hn2, wfc_ref[l], preferred_element_type=f32) + bfc_ref[l]
        ff = jax.nn.gelu(ff, approximate=True)            # GPT-2 "gelu_new", f32
        h = h + jnp.dot(ff.astype(bf16), wpr_ref[l],
                        preferred_element_type=f32) + bpr_ref[l]

    hf = layernorm(h, lnfg_ref[...], lnfb_ref[...]).astype(bf16)      # [BT, D]

    # lm_head only for the B rows consumed this step (local pos = step_pos - 1):
    # one-hot row select on the MXU -> [B, D], then [B, D] @ [D, V].
    b_iota = lax.broadcasted_iota(jnp.int32, (B, BT), 0)
    r_iota = lax.broadcasted_iota(jnp.int32, (B, BT), 1)
    sel = (r_iota == b_iota * MAX_LEN + (step_pos - 1)).astype(bf16)  # [B, BT]
    hf_sel = jnp.dot(sel, hf, preferred_element_type=f32)             # [B, D]
    logits = jnp.dot(hf_sel.astype(bf16), lmw_ref[...],
                     preferred_element_type=f32)                      # [B, V]

    # greedy argmax (first-max tie-break, matches torch.argmax) -> one-hot rows
    v_iota = lax.broadcasted_iota(jnp.int32, (B, V), 1)
    row_max = jnp.max(logits, axis=-1, keepdims=True)
    first_arg = jnp.min(jnp.where(logits == row_max, v_iota, V),
                        axis=-1, keepdims=True)                       # [B, 1]
    oh_sel = (v_iota == first_arg).astype(bf16)                       # [B, V]

    # scatter the B new one-hot rows into local position step_pos of each batch
    rr = lax.broadcasted_iota(jnp.int32, (BT, B), 0)
    bb = lax.broadcasted_iota(jnp.int32, (BT, B), 1)
    scat = (rr == bb * MAX_LEN + step_pos).astype(bf16)               # [BT, B]
    oh_next = jnp.dot(scat, oh_sel, preferred_element_type=f32)       # [BT, V]
    row_pos = lax.broadcasted_iota(jnp.int32, (BT, 1), 0) & (MAX_LEN - 1)
    new_oh = jnp.where(row_pos == step_pos, oh_next, oh_tok)
    oh_tok_ref[...] = new_oh

    # outputs only materialize on the last step (blocks are resident across steps)
    @pl.when(s == NSTEPS - 1)
    def _():
        out_ref[...] = new_oh.astype(jnp.int32)           # == one_hot(prediction, V)
        vfull = lax.broadcasted_iota(jnp.int32, (BT, V), 1)
        tok_ref[...] = jnp.sum(jnp.where(new_oh > 0.5, vfull, 0),
                               axis=-1, keepdims=True)    # predicted token ids


# ---------------- wrapper (glue in plain JAX) ----------------
def _const_spec(a):
    nd = a.ndim
    # Constant block index -> weight DMA'd once, VMEM-resident across all steps.
    # (At scale, add pipeline_mode=pl.Buffered(1) / stream per layer instead.)
    return pl.BlockSpec(a.shape, lambda s, _nd=nd: (0,) * _nd)


@jax.jit
def wrapper_gpt2_forward(src_seqs, params):
    """src_seqs: [B, PROMPT_LEN] int32 token ids.
    Returns (one_hot [B, MAX_LEN, V] int32, predict_tk [B, MAX_LEN] int32).
    Mirrors: prediction = model.generate(src, max_length); one_hot(prediction, vocab)."""
    tokens0 = jnp.full((B, MAX_LEN), PAD_ID, jnp.int32)
    tokens0 = tokens0.at[:, :PROMPT_LEN].set(src_seqs.astype(jnp.int32))
    oh0 = jax.nn.one_hot(tokens0.reshape(BT), V, dtype=jnp.float32)   # [BT, V]
    wpe_bt = jnp.tile(params["wpe"], (B, 1))                          # [BT, D] f32

    # step-invariant block-diagonal causal mask, built once at trace time (hoisted)
    r = np.arange(BT)
    same_batch = (r[:, None] // MAX_LEN) == (r[None, :] // MAX_LEN)
    causal = (r[:, None] % MAX_LEN) >= (r[None, :] % MAX_LEN)
    mask_add = jnp.asarray(np.where(same_batch & causal, 0.0, NEG_INF),
                           dtype=jnp.float32)                         # [BT, BT]

    weight_args = [params[k] for k in PARAM_ORDER]

    in_specs = ([_const_spec(mask_add), _const_spec(oh0), _const_spec(wpe_bt)]
                + [_const_spec(p) for p in weight_args])
    out_specs = (pl.BlockSpec((BT, V), lambda s: (0, 0)),
                 pl.BlockSpec((BT, 1), lambda s: (0, 0)))
    out_shape = (jax.ShapeDtypeStruct((BT, V), jnp.int32),
                 jax.ShapeDtypeStruct((BT, 1), jnp.int32))

    per_layer_flops = (2 * BT * D * (3 * D)            # fused qkv projection
                       + 2 * 2 * NH * BT * BT * HD     # scores + probs @ v
                       + 2 * BT * D * D                # output projection
                       + 2 * 2 * BT * D * FF)          # MLP
    per_step_flops = (2 * BT * V * D                   # embedding (one-hot @ wte)
                      + L * per_layer_flops
                      + 2 * B * BT * D                 # row select
                      + 2 * B * D * V                  # lm_head (B rows only)
                      + 2 * BT * B * V)                # one-hot scatter
    weight_bytes = sum(int(np.prod(a.shape)) * a.dtype.itemsize
                       for a in [mask_add, oh0, wpe_bt] + weight_args)
    cost = pl.CostEstimate(
        flops=NSTEPS * per_step_flops,
        transcendentals=NSTEPS * L * (NH * BT * BT + BT * FF),
        bytes_accessed=weight_bytes + BT * V * 4 + BT * 4)

    onehot_flat, tok_flat = pl.pallas_call(
        gpt2_decode_kernel,
        out_shape=out_shape,
        grid=(NSTEPS,),                                # sequential decode steps
        in_specs=in_specs,
        out_specs=out_specs,
        scratch_shapes=[pltpu.VMEM((BT, V), jnp.float32)],   # carried token one-hots
        compiler_params=pltpu.CompilerParams(
            dimension_semantics=("arbitrary",),
            vmem_limit_bytes=32 * 1024 * 1024),
        cost_estimate=cost,
    )(mask_add, oh0, wpe_bt, *weight_args)

    predict_likehood = onehot_flat.reshape(B, MAX_LEN, V)
    # TODO(synk): torch one_hot returns int64; JAX default x64 is off, so int32 is used.
    predict_tk = tok_flat.reshape(B, MAX_LEN)
    return predict_likehood, predict_tk


# ---------------- parameter init (deterministic, synthetic) ----------------
def init_params(key):
    ks = jax.random.split(key, 8)

    def nrm(k, shape, scale=0.02):
        return (scale * jax.random.normal(k, shape, jnp.float32)).astype(jnp.bfloat16)

    return dict(
        wte=nrm(ks[0], (V, D)),
        wpe=0.02 * jax.random.normal(ks[1], (MAX_LEN, D), jnp.float32),
        ln1g=jnp.ones((L, 1, D), jnp.float32),
        ln1b=jnp.zeros((L, 1, D), jnp.float32),
        wqkv=nrm(ks[2], (L, D, 3 * D)),                 # [q | k | v] column blocks
        bqkv=jnp.zeros((L, 1, 3 * D), jnp.float32),
        wo=nrm(ks[3], (L, D, D)),                       # rows = concat of heads
        bo=jnp.zeros((L, 1, D), jnp.float32),
        ln2g=jnp.ones((L, 1, D), jnp.float32),
        ln2b=jnp.zeros((L, 1, D), jnp.float32),
        wfc=nrm(ks[4], (L, D, FF)),
        bfc=jnp.zeros((L, 1, FF), jnp.float32),
        wpr=nrm(ks[5], (L, FF, D)),
        bpr=jnp.zeros((L, 1, D), jnp.float32),
        lnfg=jnp.ones((1, D), jnp.float32),
        lnfb=jnp.zeros((1, D), jnp.float32),
        lmw=nrm(ks[6], (D, V)),
    )


if __name__ == "__main__":
    key = jax.random.PRNGKey(0)
    params = init_params(key)
    prompt = jax.random.randint(jax.random.fold_in(key, 999),
                                (B, PROMPT_LEN), 1, V, dtype=jnp.int32)

    one_hot, predict_tk = wrapper_gpt2_forward(prompt, params)
    one_hot = jax.block_until_ready(one_hot)
    predict_tk = jax.block_until_ready(predict_tk)

    # same sanity checks as the PyTorch forward's assert
    oh = np.asarray(one_hot)
    tk = np.asarray(predict_tk)
    assert oh.shape == (B, MAX_LEN, V)
    assert (oh.argmax(-1) == tk).all()
    assert (oh.sum(-1) == 1).all()
    assert (tk[:, :PROMPT_LEN] == np.asarray(prompt)).all()   # prompt preserved

    print("KERNEL_OK")
</pallas_src>

<mosaic_0001>
module attributes {stable_mosaic.version = 11 : i64} {
  func.func @gpt2_decode_kernel(%arg0: i32, %arg1: memref<16x16xf32, #tpu.memory_space<vmem>>, %arg2: memref<16x128xf32, #tpu.memory_space<vmem>>, %arg3: memref<16x64xf32, #tpu.memory_space<vmem>>, %arg4: memref<128x64xbf16, #tpu.memory_space<vmem>>, %arg5: memref<2x1x64xf32, #tpu.memory_space<vmem>>, %arg6: memref<2x1x64xf32, #tpu.memory_space<vmem>>, %arg7: memref<2x64x192xbf16, #tpu.memory_space<vmem>>, %arg8: memref<2x1x192xf32, #tpu.memory_space<vmem>>, %arg9: memref<2x64x64xbf16, #tpu.memory_space<vmem>>, %arg10: memref<2x1x64xf32, #tpu.memory_space<vmem>>, %arg11: memref<2x1x64xf32, #tpu.memory_space<vmem>>, %arg12: memref<2x1x64xf32, #tpu.memory_space<vmem>>, %arg13: memref<2x64x256xbf16, #tpu.memory_space<vmem>>, %arg14: memref<2x1x256xf32, #tpu.memory_space<vmem>>, %arg15: memref<2x256x64xbf16, #tpu.memory_space<vmem>>, %arg16: memref<2x1x64xf32, #tpu.memory_space<vmem>>, %arg17: memref<1x64xf32, #tpu.memory_space<vmem>>, %arg18: memref<1x64xf32, #tpu.memory_space<vmem>>, %arg19: memref<64x128xbf16, #tpu.memory_space<vmem>>, %arg20: memref<16x128xi32, #tpu.memory_space<vmem>>, %arg21: memref<16x1xi32, #tpu.memory_space<vmem>>, %arg22: memref<16x128xf32, #tpu.memory_space<vmem>>) attributes {dimension_semantics = [#tpu.dimension_semantics<arbitrary>], iteration_bounds = array<i64: 4>, scalar_prefetch = 0 : i64, scratch_operands = 1 : i64, tpu.core_type = #tpu.core_type<tc>, window_params = [{pipeline_mode = #tpu.pipeline_mode<synchronous>, transform_indices = @transform_0, window_bounds = array<i64: 16, 16>}, {pipeline_mode = #tpu.pipeline_mode<synchronous>, transform_indices = @transform_1, window_bounds = array<i64: 16, 128>}, {pipeline_mode = #tpu.pipeline_mode<synchronous>, transform_indices = @transform_2, window_bounds = array<i64: 16, 64>}, {pipeline_mode = #tpu.pipeline_mode<synchronous>, transform_indices = @transform_3, window_bounds = array<i64: 128, 64>}, {pipeline_mode = #tpu.pipeline_mode<synchronous>, transform_indices = @transform_4, window_bounds = array<i64: 2, 1, 64>}, {pipeline_mode = #tpu.pipeline_mode<synchronous>, transform_indices = @transform_5, window_bounds = array<i64: 2, 1, 64>}, {pipeline_mode = #tpu.pipeline_mode<synchronous>, transform_indices = @transform_6, window_bounds = array<i64: 2, 64, 192>}, {pipeline_mode = #tpu.pipeline_mode<synchronous>, transform_indices = @transform_7, window_bounds = array<i64: 2, 1, 192>}, {pipeline_mode = #tpu.pipeline_mode<synchronous>, transform_indices = @transform_8, window_bounds = array<i64: 2, 64, 64>}, {pipeline_mode = #tpu.pipeline_mode<synchronous>, transform_indices = @transform_9, window_bounds = array<i64: 2, 1, 64>}, {pipeline_mode = #tpu.pipeline_mode<synchronous>, transform_indices = @transform_10, window_bounds = array<i64: 2, 1, 64>}, {pipeline_mode = #tpu.pipeline_mode<synchronous>, transform_indices = @transform_11, window_bounds = array<i64: 2, 1, 64>}, {pipeline_mode = #tpu.pipeline_mode<synchronous>, transform_indices = @transform_12, window_bounds = array<i64: 2, 64, 256>}, {pipeline_mode = #tpu.pipeline_mode<synchronous>, transform_indices = @transform_13, window_bounds = array<i64: 2, 1, 256>}, {pipeline_mode = #tpu.pipeline_mode<synchronous>, transform_indices = @transform_14, window_bounds = array<i64: 2, 256, 64>}, {pipeline_mode = #tpu.pipeline_mode<synchronous>, transform_indices = @transform_15, window_bounds = array<i64: 2, 1, 64>}, {pipeline_mode = #tpu.pipeline_mode<synchronous>, transform_indices = @transform_16, window_bounds = array<i64: 1, 64>}, {pipeline_mode = #tpu.pipeline_mode<synchronous>, transform_indices = @transform_17, window_bounds = array<i64: 1, 64>}, {pipeline_mode = #tpu.pipeline_mode<synchronous>, transform_indices = @transform_18, window_bounds = array<i64: 64, 128>}, {pipeline_mode = #tpu.pipeline_mode<synchronous>, transform_indices = @transform_19, window_bounds = array<i64: 16, 128>}, {pipeline_mode = #tpu.pipeline_mode<synchronous>, transform_indices = @transform_20, window_bounds = array<i64: 16, 1>}]} {
    %c4_i32 = arith.constant 4 : i32
    %0 = arith.addi %c4_i32, %arg0 : i32
    %c0_i32 = arith.constant 0 : i32
    %1 = arith.cmpi eq, %arg0, %c0_i32 : i32
    %2 = arith.extui %1 : i1 to i32
    %c0_i32_0 = arith.constant 0 : i32
    %3 = arith.cmpi ne, %2, %c0_i32_0 : i32
    scf.if %3 {
      %c0_155 = arith.constant 0 : index
      %c0_156 = arith.constant 0 : index
      %352 = vector.load %arg2[%c0_155, %c0_156] : memref<16x128xf32, #tpu.memory_space<vmem>>, vector<16x128xf32>
      %c0_157 = arith.constant 0 : index
      %c0_158 = arith.constant 0 : index
      %353 = vector.load %arg22[%c0_157, %c0_158] : memref<16x128xf32, #tpu.memory_space<vmem>>, vector<16x128xf32>
      tpu.vector_store %arg22[%c0_157, %c0_158], %352 {strides = array<i32>} : memref<16x128xf32, #tpu.memory_space<vmem>>, vector<16x128xf32>,
    } else {
    }
    %c0 = arith.constant 0 : index
    %c0_1 = arith.constant 0 : index
    %4 = vector.load %arg1[%c0, %c0_1] : memref<16x16xf32, #tpu.memory_space<vmem>>, vector<16x16xf32>
    %c0_2 = arith.constant 0 : index
    %c0_3 = arith.constant 0 : index
    %5 = vector.load %arg22[%c0_2, %c0_3] : memref<16x128xf32, #tpu.memory_space<vmem>>, vector<16x128xf32>
    %6 = arith.truncf %5 : vector<16x128xf32> to vector<16x128xbf16>
    %c0_4 = arith.constant 0 : index
    %c0_5 = arith.constant 0 : index
    %7 = vector.load %arg4[%c0_4, %c0_5] : memref<128x64xbf16, #tpu.memory_space<vmem>>, vector<128x64xbf16>
    %cst = arith.constant dense<0.000000e+00> : vector<16x64xf32>
    %8 = tpu.matmul %6, %7, %cst {dimension_numbers = #tpu.dot_dimension_numbers<[1], [0], [0], [1], [0, 0, 1, 1], [], []>} : vector<16x128xbf16>, vector<128x64xbf16>, vector<16x64xf32> -> vector<16x64xf32>
    %c0_6 = arith.constant 0 : index
    %c0_7 = arith.constant 0 : index
    %9 = vector.load %arg3[%c0_6, %c0_7] : memref<16x64xf32, #tpu.memory_space<vmem>>, vector<16x64xf32>
    %10 = arith.addf %8, %9 : vector<16x64xf32>
    %c0_8 = arith.constant 0 : index
    %c0_9 = arith.constant 0 : index
    %c0_10 = arith.constant 0 : index
    %11 = vector.load %arg5[%c0_8, %c0_9, %c0_10] : memref<2x1x64xf32, #tpu.memory_space<vmem>>, vector<1x1x64xf32>
    %12 = vector.shape_cast %11 : vector<1x1x64xf32> to vector<1x64xf32>
    %c0_11 = arith.constant 0 : index
    %c0_12 = arith.constant 0 : index
    %c0_13 = arith.constant 0 : index
    %13 = vector.load %arg6[%c0_11, %c0_12, %c0_13] : memref<2x1x64xf32, #tpu.memory_space<vmem>>, vector<1x1x64xf32>
    %14 = vector.shape_cast %13 : vector<1x1x64xf32> to vector<1x64xf32>
    %cst_14 = arith.constant dense<0.000000e+00> : vector<16xf32>
    %15 = vector.multi_reduction <add>, %10, %cst_14 [1] : vector<16x64xf32> to vector<16xf32>
    %16 = vector.shape_cast %15 : vector<16xf32> to vector<16x1xf32>
    %cst_15 = arith.constant 6.400000e+01 : f32
    %17 = vector.broadcast %cst_15 : f32 to vector<16x1xf32>
    %18 = arith.divf %16, %17 : vector<16x1xf32>
    %19 = vector.broadcast %18 : vector<16x1xf32> to vector<16x64xf32>
    %20 = arith.subf %10, %19 : vector<16x64xf32>
    %21 = arith.mulf %20, %20 : vector<16x64xf32>
    %cst_16 = arith.constant dense<0.000000e+00> : vector<16xf32>
    %22 = vector.multi_reduction <add>, %21, %cst_16 [1] : vector<16x64xf32> to vector<16xf32>
    %23 = vector.shape_cast %22 : vector<16xf32> to vector<16x1xf32>
    %cst_17 = arith.constant 6.400000e+01 : f32
    %24 = vector.broadcast %cst_17 : f32 to vector<16x1xf32>
    %25 = arith.divf %23, %24 : vector<16x1xf32>
    %cst_18 = arith.constant 9.99999974E-6 : f32
    %26 = vector.broadcast %cst_18 : f32 to vector<16x1xf32>
    %27 = arith.addf %25, %26 : vector<16x1xf32>
    %28 = math.rsqrt %27 : vector<16x1xf32>
    %29 = vector.broadcast %28 : vector<16x1xf32> to vector<16x64xf32>
    %30 = arith.mulf %20, %29 : vector<16x64xf32>
    %31 = vector.broadcast %12 : vector<1x64xf32> to vector<16x64xf32>
    %32 = arith.mulf %30, %31 : vector<16x64xf32>
    %33 = vector.broadcast %14 : vector<1x64xf32> to vector<16x64xf32>
    %34 = arith.addf %32, %33 : vector<16x64xf32>
    %35 = arith.truncf %34 : vector<16x64xf32> to vector<16x64xbf16>
    %c0_19 = arith.constant 0 : index
    %c0_20 = arith.constant 0 : index
    %c0_21 = arith.constant 0 : index
    %36 = vector.load %arg7[%c0_19, %c0_20, %c0_21] : memref<2x64x192xbf16, #tpu.memory_space<vmem>>, vector<1x64x192xbf16>
    %37 = vector.shape_cast %36 : vector<1x64x192xbf16> to vector<64x192xbf16>
    %cst_22 = arith.constant dense<0.000000e+00> : vector<16x192xf32>
    %38 = tpu.matmul %35, %37, %cst_22 {dimension_numbers = #tpu.dot_dimension_numbers<[1], [0], [0], [1], [0, 0, 1, 1], [], []>} : vector<16x64xbf16>, vector<64x192xbf16>, vector<16x192xf32> -> vector<16x192xf32>
    %c0_23 = arith.constant 0 : index
    %c0_24 = arith.constant 0 : index
    %c0_25 = arith.constant 0 : index
    %39 = vector.load %arg8[%c0_23, %c0_24, %c0_25] : memref<2x1x192xf32, #tpu.memory_space<vmem>>, vector<1x1x192xf32>
    %40 = vector.shape_cast %39 : vector<1x1x192xf32> to vector<1x192xf32>
    %41 = vector.broadcast %40 : vector<1x192xf32> to vector<16x192xf32>
    %42 = arith.addf %38, %41 : vector<16x192xf32>
    %43 = arith.truncf %42 : vector<16x192xf32> to vector<16x192xbf16>
    %44 = vector.extract_strided_slice %43 {offsets = [0, 0], sizes = [16, 32], strides = [1, 1]} : vector<16x192xbf16> to vector<16x32xbf16>
    %45 = vector.extract_strided_slice %43 {offsets = [0, 64], sizes = [16, 32], strides = [1, 1]} : vector<16x192xbf16> to vector<16x32xbf16>
    %46 = vector.extract_strided_slice %43 {offsets = [0, 128], sizes = [16, 32], strides = [1, 1]} : vector<16x192xbf16> to vector<16x32xbf16>
    %cst_26 = arith.constant dense<0.000000e+00> : vector<16x16xf32>
    %47 = tpu.matmul %44, %45, %cst_26 {dimension_numbers = #tpu.dot_dimension_numbers<[1], [1], [0], [0], [0, 0, 1, 0], [], []>} : vector<16x32xbf16>, vector<16x32xbf16>, vector<16x16xf32> -> vector<16x16xf32>
    %cst_27 = arith.constant 0.176776692 : f32
    %48 = vector.broadcast %cst_27 : f32 to vector<16x16xf32>
    %49 = arith.mulf %47, %48 : vector<16x16xf32>
    %50 = arith.addf %49, %4 : vector<16x16xf32>
    %cst_28 = arith.constant dense<0xFF800000> : vector<16xf32>
    %51 = vector.multi_reduction <maximumf>, %50, %cst_28 [1] : vector<16x16xf32> to vector<16xf32>
    %52 = vector.shape_cast %51 : vector<16xf32> to vector<16x1xf32>
    %53 = vector.broadcast %52 : vector<16x1xf32> to vector<16x16xf32>
    %54 = arith.subf %50, %53 : vector<16x16xf32>
    %55 = math.exp %54 : vector<16x16xf32>
    %cst_29 = arith.constant dense<0.000000e+00> : vector<16xf32>
    %56 = vector.multi_reduction <add>, %55, %cst_29 [1] : vector<16x16xf32> to vector<16xf32>
    %57 = vector.shape_cast %56 : vector<16xf32> to vector<16x1xf32>
    %58 = vector.broadcast %57 : vector<16x1xf32> to vector<16x16xf32>
    %59 = arith.divf %55, %58 : vector<16x16xf32>
    %60 = arith.truncf %59 : vector<16x16xf32> to vector<16x16xbf16>
    %cst_30 = arith.constant dense<0.000000e+00> : vector<16x32xf32>
    %61 = tpu.matmul %60, %46, %cst_30 {dimension_numbers = #tpu.dot_dimension_numbers<[1], [0], [0], [1], [0, 0, 1, 1], [], []>} : vector<16x16xbf16>, vector<16x32xbf16>, vector<16x32xf32> -> vector<16x32xf32>
    %62 = vector.extract_strided_slice %43 {offsets = [0, 32], sizes = [16, 32], strides = [1, 1]} : vector<16x192xbf16> to vector<16x32xbf16>
    %63 = vector.extract_strided_slice %43 {offsets = [0, 96], sizes = [16, 32], strides = [1, 1]} : vector<16x192xbf16> to vector<16x32xbf16>
    %64 = vector.extract_strided_slice %43 {offsets = [0, 160], sizes = [16, 32], strides = [1, 1]} : vector<16x192xbf16> to vector<16x32xbf16>
    %cst_31 = arith.constant dense<0.000000e+00> : vector<16x16xf32>
    %65 = tpu.matmul %62, %63, %cst_31 {dimension_numbers = #tpu.dot_dimension_numbers<[1], [1], [0], [0], [0, 0, 1, 0], [], []>} : vector<16x32xbf16>, vector<16x32xbf16>, vector<16x16xf32> -> vector<16x16xf32>
    %cst_32 = arith.constant 0.176776692 : f32
    %66 = vector.broadcast %cst_32 : f32 to vector<16x16xf32>
    %67 = arith.mulf %65, %66 : vector<16x16xf32>
    %68 = arith.addf %67, %4 : vector<16x16xf32>
    %cst_33 = arith.constant dense<0xFF800000> : vector<16xf32>
    %69 = vector.multi_reduction <maximumf>, %68, %cst_33 [1] : vector<16x16xf32> to vector<16xf32>
    %70 = vector.shape_cast %69 : vector<16xf32> to vector<16x1xf32>
    %71 = vector.broadcast %70 : vector<16x1xf32> to vector<16x16xf32>
    %72 = arith.subf %68, %71 : vector<16x16xf32>
    %73 = math.exp %72 : vector<16x16xf32>
    %cst_34 = arith.constant dense<0.000000e+00> : vector<16xf32>
    %74 = vector.multi_reduction <add>, %73, %cst_34 [1] : vector<16x16xf32> to vector<16xf32>
    %75 = vector.shape_cast %74 : vector<16xf32> to vector<16x1xf32>
    %76 = vector.broadcast %75 : vector<16x1xf32> to vector<16x16xf32>
    %77 = arith.divf %73, %76 : vector<16x16xf32>
    %78 = arith.truncf %77 : vector<16x16xf32> to vector<16x16xbf16>
    %cst_35 = arith.constant dense<0.000000e+00> : vector<16x32xf32>
    %79 = tpu.matmul %78, %64, %cst_35 {dimension_numbers = #tpu.dot_dimension_numbers<[1], [0], [0], [1], [0, 0, 1, 1], [], []>} : vector<16x16xbf16>, vector<16x32xbf16>, vector<16x32xf32> -> vector<16x32xf32>
    %80 = tpu.concatenate %61, %79 in 1 : vector<16x32xf32>, vector<16x32xf32> -> vector<16x64xf32>
    %81 = arith.truncf %80 : vector<16x64xf32> to vector<16x64xbf16>
    %c0_36 = arith.constant 0 : index
    %c0_37 = arith.constant 0 : index
    %c0_38 = arith.constant 0 : index
    %82 = vector.load %arg9[%c0_36, %c0_37, %c0_38] : memref<2x64x64xbf16, #tpu.memory_space<vmem>>, vector<1x64x64xbf16>
    %83 = vector.shape_cast %82 : vector<1x64x64xbf16> to vector<64x64xbf16>
    %cst_39 = arith.constant dense<0.000000e+00> : vector<16x64xf32>
    %84 = tpu.matmul %81, %83, %cst_39 {dimension_numbers = #tpu.dot_dimension_numbers<[1], [0], [0], [1], [0, 0, 1, 1], [], []>} : vector<16x64xbf16>, vector<64x64xbf16>, vector<16x64xf32> -> vector<16x64xf32>
    %85 = arith.addf %10, %84 : vector<16x64xf32>
    %c0_40 = arith.constant 0 : index
    %c0_41 = arith.constant 0 : index
    %c0_42 = arith.constant 0 : index
    %86 = vector.load %arg10[%c0_40, %c0_41, %c0_42] : memref<2x1x64xf32, #tpu.memory_space<vmem>>, vector<1x1x64xf32>
    %87 = vector.shape_cast %86 : vector<1x1x64xf32> to vector<1x64xf32>
    %88 = vector.broadcast %87 : vector<1x64xf32> to vector<16x64xf32>
    %89 = arith.addf %85, %88 : vector<16x64xf32>
    %c0_43 = arith.constant 0 : index
    %c0_44 = arith.constant 0 : index
    %c0_45 = arith.constant 0 : index
    %90 = vector.load %arg11[%c0_43, %c0_44, %c0_45] : memref<2x1x64xf32, #tpu.memory_space<vmem>>, vector<1x1x64xf32>
    %91 = vector.shape_cast %90 : vector<1x1x64xf32> to vector<1x64xf32>
    %c0_46 = arith.constant 0 : index
    %c0_47 = arith.constant 0 : index
    %c0_48 = arith.constant 0 : index
    %92 = vector.load %arg12[%c0_46, %c0_47, %c0_48] : memref<2x1x64xf32, #tpu.memory_space<vmem>>, vector<1x1x64xf32>
    %93 = vector.shape_cast %92 : vector<1x1x64xf32> to vector<1x64xf32>
    %cst_49 = arith.constant dense<0.000000e+00> : vector<16xf32>
    %94 = vector.multi_reduction <add>, %89, %cst_49 [1] : vector<16x64xf32> to vector<16xf32>
    %95 = vector.shape_cast %94 : vector<16xf32> to vector<16x1xf32>
    %cst_50 = arith.constant 6.400000e+01 : f32
    %96 = vector.broadcast %cst_50 : f32 to vector<16x1xf32>
    %97 = arith.divf %95, %96 : vector<16x1xf32>
    %98 = vector.broadcast %97 : vector<16x1xf32> to vector<16x64xf32>
    %99 = arith.subf %89, %98 : vector<16x64xf32>
    %100 = arith.mulf %99, %99 : vector<16x64xf32>
    %cst_51 = arith.constant dense<0.000000e+00> : vector<16xf32>
    %101 = vector.multi_reduction <add>, %100, %cst_51 [1] : vector<16x64xf32> to vector<16xf32>
    %102 = vector.shape_cast %101 : vector<16xf32> to vector<16x1xf32>
    %cst_52 = arith.constant 6.400000e+01 : f32
    %103 = vector.broadcast %cst_52 : f32 to vector<16x1xf32>
    %104 = arith.divf %102, %103 : vector<16x1xf32>
    %cst_53 = arith.constant 9.99999974E-6 : f32
    %105 = vector.broadcast %cst_53 : f32 to vector<16x1xf32>
    %106 = arith.addf %104, %105 : vector<16x1xf32>
    %107 = math.rsqrt %106 : vector<16x1xf32>
    %108 = vector.broadcast %107 : vector<16x1xf32> to vector<16x64xf32>
    %109 = arith.mulf %99, %108 : vector<16x64xf32>
    %110 = vector.broadcast %91 : vector<1x64xf32> to vector<16x64xf32>
    %111 = arith.mulf %109, %110 : vector<16x64xf32>
    %112 = vector.broadcast %93 : vector<1x64xf32> to vector<16x64xf32>
    %113 = arith.addf %111, %112 : vector<16x64xf32>
    %114 = arith.truncf %113 : vector<16x64xf32> to vector<16x64xbf16>
    %c0_54 = arith.constant 0 : index
    %c0_55 = arith.constant 0 : index
    %c0_56 = arith.constant 0 : index
    %115 = vector.load %arg13[%c0_54, %c0_55, %c0_56] : memref<2x64x256xbf16, #tpu.memory_space<vmem>>, vector<1x64x256xbf16>
    %116 = vector.shape_cast %115 : vector<1x64x256xbf16> to vector<64x256xbf16>
    %cst_57 = arith.constant dense<0.000000e+00> : vector<16x256xf32>
    %117 = tpu.matmul %114, %116, %cst_57 {dimension_numbers = #tpu.dot_dimension_numbers<[1], [0], [0], [1], [0, 0, 1, 1], [], []>} : vector<16x64xbf16>, vector<64x256xbf16>, vector<16x256xf32> -> vector<16x256xf32>
    %c0_58 = arith.constant 0 : index
    %c0_59 = arith.constant 0 : index
    %c0_60 = arith.constant 0 : index
    %118 = vector.load %arg14[%c0_58, %c0_59, %c0_60] : memref<2x1x256xf32, #tpu.memory_space<vmem>>, vector<1x1x256xf32>
    %119 = vector.shape_cast %118 : vector<1x1x256xf32> to vector<1x256xf32>
    %120 = vector.broadcast %119 : vector<1x256xf32> to vector<16x256xf32>
    %121 = arith.addf %117, %120 : vector<16x256xf32>
    %122 = arith.mulf %121, %121 : vector<16x256xf32>
    %123 = arith.mulf %121, %122 : vector<16x256xf32>
    %cst_61 = arith.constant 4.471500e-02 : f32
    %124 = vector.broadcast %cst_61 : f32 to vector<16x256xf32>
    %125 = arith.mulf %124, %123 : vector<16x256xf32>
    %126 = arith.addf %121, %125 : vector<16x256xf32>
    %cst_62 = arith.constant 0.797884583 : f32
    %127 = vector.broadcast %cst_62 : f32 to vector<16x256xf32>
    %128 = arith.mulf %127, %126 : vector<16x256xf32>
    %129 = math.tanh %128 : vector<16x256xf32>
    %cst_63 = arith.constant 1.000000e+00 : f32
    %130 = vector.broadcast %cst_63 : f32 to vector<16x256xf32>
    %131 = arith.addf %130, %129 : vector<16x256xf32>
    %cst_64 = arith.constant 5.000000e-01 : f32
    %132 = vector.broadcast %cst_64 : f32 to vector<16x256xf32>
    %133 = arith.mulf %132, %131 : vector<16x256xf32>
    %134 = arith.mulf %121, %133 : vector<16x256xf32>
    %135 = arith.truncf %134 : vector<16x256xf32> to vector<16x256xbf16>
    %c0_65 = arith.constant 0 : index
    %c0_66 = arith.constant 0 : index
    %c0_67 = arith.constant 0 : index
    %136 = vector.load %arg15[%c0_65, %c0_66, %c0_67] : memref<2x256x64xbf16, #tpu.memory_space<vmem>>, vector<1x256x64xbf16>
    %137 = vector.shape_cast %136 : vector<1x256x64xbf16> to vector<256x64xbf16>
    %cst_68 = arith.constant dense<0.000000e+00> : vector<16x64xf32>
    %138 = tpu.matmul %135, %137, %cst_68 {dimension_numbers = #tpu.dot_dimension_numbers<[1], [0], [0], [1], [0, 0, 1, 1], [], []>} : vector<16x256xbf16>, vector<256x64xbf16>, vector<16x64xf32> -> vector<16x64xf32>
    %139 = arith.addf %89, %138 : vector<16x64xf32>
    %c0_69 = arith.constant 0 : index
    %c0_70 = arith.constant 0 : index
    %c0_71 = arith.constant 0 : index
    %140 = vector.load %arg16[%c0_69, %c0_70, %c0_71] : memref<2x1x64xf32, #tpu.memory_space<vmem>>, vector<1x1x64xf32>
    %141 = vector.shape_cast %140 : vector<1x1x64xf32> to vector<1x64xf32>
    %142 = vector.broadcast %141 : vector<1x64xf32> to vector<16x64xf32>
    %143 = arith.addf %139, %142 : vector<16x64xf32>
    %c1 = arith.constant 1 : index
    %c0_72 = arith.constant 0 : index
    %c0_73 = arith.constant 0 : index
    %144 = vector.load %arg5[%c1, %c0_72, %c0_73] : memref<2x1x64xf32, #tpu.memory_space<vmem>>, vector<1x1x64xf32>
    %145 = vector.shape_cast %144 : vector<1x1x64xf32> to vector<1x64xf32>
    %c1_74 = arith.constant 1 : index
    %c0_75 = arith.constant 0 : index
    %c0_76 = arith.constant 0 : index
    %146 = vector.load %arg6[%c1_74, %c0_75, %c0_76] : memref<2x1x64xf32, #tpu.memory_space<vmem>>, vector<1x1x64xf32>
    %147 = vector.shape_cast %146 : vector<1x1x64xf32> to vector<1x64xf32>
    %cst_77 = arith.constant dense<0.000000e+00> : vector<16xf32>
    %148 = vector.multi_reduction <add>, %143, %cst_77 [1] : vector<16x64xf32> to vector<16xf32>
    %149 = vector.shape_cast %148 : vector<16xf32> to vector<16x1xf32>
    %cst_78 = arith.constant 6.400000e+01 : f32
    %150 = vector.broadcast %cst_78 : f32 to vector<16x1xf32>
    %151 = arith.divf %149, %150 : vector<16x1xf32>
    %152 = vector.broadcast %151 : vector<16x1xf32> to vector<16x64xf32>
    %153 = arith.subf %143, %152 : vector<16x64xf32>
    %154 = arith.mulf %153, %153 : vector<16x64xf32>
    %cst_79 = arith.constant dense<0.000000e+00> : vector<16xf32>
    %155 = vector.multi_reduction <add>, %154, %cst_79 [1] : vector<16x64xf32> to vector<16xf32>
    %156 = vector.shape_cast %155 : vector<16xf32> to vector<16x1xf32>
    %cst_80 = arith.constant 6.400000e+01 : f32
    %157 = vector.broadcast %cst_80 : f32 to vector<16x1xf32>
    %158 = arith.divf %156, %157 : vector<16x1xf32>
    %cst_81 = arith.constant 9.99999974E-6 : f32
    %159 = vector.broadcast %cst_81 : f32 to vector<16x1xf32>
    %160 = arith.addf %158, %159 : vector<16x1xf32>
    %161 = math.rsqrt %160 : vector<16x1xf32>
    %162 = vector.broadcast %161 : vector<16x1xf32> to vector<16x64xf32>
    %163 = arith.mulf %153, %162 : vector<16x64xf32>
    %164 = vector.broadcast %145 : vector<1x64xf32> to vector<16x64xf32>
    %165 = arith.mulf %163, %164 : vector<16x64xf32>
    %166 = vector.broadcast %147 : vector<1x64xf32> to vector<16x64xf32>
    %167 = arith.addf %165, %166 : vector<16x64xf32>
    %168 = arith.truncf %167 : vector<16x64xf32> to vector<16x64xbf16>
    %c1_82 = arith.constant 1 : index
    %c0_83 = arith.constant 0 : index
    %c0_84 = arith.constant 0 : index
    %169 = vector.load %arg7[%c1_82, %c0_83, %c0_84] : memref<2x64x192xbf16, #tpu.memory_space<vmem>>, vector<1x64x192xbf16>
    %170 = vector.shape_cast %169 : vector<1x64x192xbf16> to vector<64x192xbf16>
    %cst_85 = arith.constant dense<0.000000e+00> : vector<16x192xf32>
    %171 = tpu.matmul %168, %170, %cst_85 {dimension_numbers = #tpu.dot_dimension_numbers<[1], [0], [0], [1], [0, 0, 1, 1], [], []>} : vector<16x64xbf16>, vector<64x192xbf16>, vector<16x192xf32> -> vector<16x192xf32>
    %c1_86 = arith.constant 1 : index
    %c0_87 = arith.constant 0 : index
    %c0_88 = arith.constant 0 : index
    %172 = vector.load %arg8[%c1_86, %c0_87, %c0_88] : memref<2x1x192xf32, #tpu.memory_space<vmem>>, vector<1x1x192xf32>
    %173 = vector.shape_cast %172 : vector<1x1x192xf32> to vector<1x192xf32>
    %174 = vector.broadcast %173 : vector<1x192xf32> to vector<16x192xf32>
    %175 = arith.addf %171, %174 : vector<16x192xf32>
    %176 = arith.truncf %175 : vector<16x192xf32> to vector<16x192xbf16>
    %177 = vector.extract_strided_slice %176 {offsets = [0, 0], sizes = [16, 32], strides = [1, 1]} : vector<16x192xbf16> to vector<16x32xbf16>
    %178 = vector.extract_strided_slice %176 {offsets = [0, 64], sizes = [16, 32], strides = [1, 1]} : vector<16x192xbf16> to vector<16x32xbf16>
    %179 = vector.extract_strided_slice %176 {offsets = [0, 128], sizes = [16, 32], strides = [1, 1]} : vector<16x192xbf16> to vector<16x32xbf16>
    %cst_89 = arith.constant dense<0.000000e+00> : vector<16x16xf32>
    %180 = tpu.matmul %177, %178, %cst_89 {dimension_numbers = #tpu.dot_dimension_numbers<[1], [1], [0], [0], [0, 0, 1, 0], [], []>} : vector<16x32xbf16>, vector<16x32xbf16>, vector<16x16xf32> -> vector<16x16xf32>
    %cst_90 = arith.constant 0.176776692 : f32
    %181 = vector.broadcast %cst_90 : f32 to vector<16x16xf32>
    %182 = arith.mulf %180, %181 : vector<16x16xf32>
    %183 = arith.addf %182, %4 : vector<16x16xf32>
    %cst_91 = arith.constant dense<0xFF800000> : vector<16xf32>
    %184 = vector.multi_reduction <maximumf>, %183, %cst_91 [1] : vector<16x16xf32> to vector<16xf32>
    %185 = vector.shape_cast %184 : vector<16xf32> to vector<16x1xf32>
    %186 = vector.broadcast %185 : vector<16x1xf32> to vector<16x16xf32>
    %187 = arith.subf %183, %186 : vector<16x16xf32>
    %188 = math.exp %187 : vector<16x16xf32>
    %cst_92 = arith.constant dense<0.000000e+00> : vector<16xf32>
    %189 = vector.multi_reduction <add>, %188, %cst_92 [1] : vector<16x16xf32> to vector<16xf32>
    %190 = vector.shape_cast %189 : vector<16xf32> to vector<16x1xf32>
    %191 = vector.broadcast %190 : vector<16x1xf32> to vector<16x16xf32>
    %192 = arith.divf %188, %191 : vector<16x16xf32>
    %193 = arith.truncf %192 : vector<16x16xf32> to vector<16x16xbf16>
    %cst_93 = arith.constant dense<0.000000e+00> : vector<16x32xf32>
    %194 = tpu.matmul %193, %179, %cst_93 {dimension_numbers = #tpu.dot_dimension_numbers<[1], [0], [0], [1], [0, 0, 1, 1], [], []>} : vector<16x16xbf16>, vector<16x32xbf16>, vector<16x32xf32> -> vector<16x32xf32>
    %195 = vector.extract_strided_slice %176 {offsets = [0, 32], sizes = [16, 32], strides = [1, 1]} : vector<16x192xbf16> to vector<16x32xbf16>
    %196 = vector.extract_strided_slice %176 {offsets = [0, 96], sizes = [16, 32], strides = [1, 1]} : vector<16x192xbf16> to vector<16x32xbf16>
    %197 = vector.extract_strided_slice %176 {offsets = [0, 160], sizes = [16, 32], strides = [1, 1]} : vector<16x192xbf16> to vector<16x32xbf16>
    %cst_94 = arith.constant dense<0.000000e+00> : vector<16x16xf32>
    %198 = tpu.matmul %195, %196, %cst_94 {dimension_numbers = #tpu.dot_dimension_numbers<[1], [1], [0], [0], [0, 0, 1, 0], [], []>} : vector<16x32xbf16>, vector<16x32xbf16>, vector<16x16xf32> -> vector<16x16xf32>
    %cst_95 = arith.constant 0.176776692 : f32
    %199 = vector.broadcast %cst_95 : f32 to vector<16x16xf32>
    %200 = arith.mulf %198, %199 : vector<16x16xf32>
    %201 = arith.addf %200, %4 : vector<16x16xf32>
    %cst_96 = arith.constant dense<0xFF800000> : vector<16xf32>
    %202 = vector.multi_reduction <maximumf>, %201, %cst_96 [1] : vector<16x16xf32> to vector<16xf32>
    %203 = vector.shape_cast %202 : vector<16xf32> to vector<16x1xf32>
    %204 = vector.broadcast %203 : vector<16x1xf32> to vector<16x16xf32>
    %205 = arith.subf %201, %204 : vector<16x16xf32>
    %206 = math.exp %205 : vector<16x16xf32>
    %cst_97 = arith.constant dense<0.000000e+00> : vector<16xf32>
    %207 = vector.multi_reduction <add>, %206, %cst_97 [1] : vector<16x16xf32> to vector<16xf32>
    %208 = vector.shape_cast %207 : vector<16xf32> to vector<16x1xf32>
    %209 = vector.broadcast %208 : vector<16x1xf32> to vector<16x16xf32>
    %210 = arith.divf %206, %209 : vector<16x16xf32>
    %211 = arith.truncf %210 : vector<16x16xf32> to vector<16x16xbf16>
    %cst_98 = arith.constant dense<0.000000e+00> : vector<16x32xf32>
    %212 = tpu.matmul %211, %197, %cst_98 {dimension_numbers = #tpu.dot_dimension_numbers<[1], [0], [0], [1], [0, 0, 1, 1], [], []>} : vector<16x16xbf16>, vector<16x32xbf16>, vector<16x32xf32> -> vector<16x32xf32>
    %213 = tpu.concatenate %194, %212 in 1 : vector<16x32xf32>, vector<16x32xf32> -> vector<16x64xf32>
    %214 = arith.truncf %213 : vector<16x64xf32> to vector<16x64xbf16>
    %c1_99 = arith.constant 1 : index
    %c0_100 = arith.constant 0 : index
    %c0_101 = arith.constant 0 : index
    %215 = vector.load %arg9[%c1_99, %c0_100, %c0_101] : memref<2x64x64xbf16, #tpu.memory_space<vmem>>, vector<1x64x64xbf16>
    %216 = vector.shape_cast %215 : vector<1x64x64xbf16> to vector<64x64xbf16>
    %cst_102 = arith.constant dense<0.000000e+00> : vector<16x64xf32>
    %217 = tpu.matmul %214, %216, %cst_102 {dimension_numbers = #tpu.dot_dimension_numbers<[1], [0], [0], [1], [0, 0, 1, 1], [], []>} : vector<16x64xbf16>, vector<64x64xbf16>, vector<16x64xf32> -> vector<16x64xf32>
    %218 = arith.addf %143, %217 : vector<16x64xf32>
    %c1_103 = arith.constant 1 : index
    %c0_104 = arith.constant 0 : index
    %c0_105 = arith.constant 0 : index
    %219 = vector.load %arg10[%c1_103, %c0_104, %c0_105] : memref<2x1x64xf32, #tpu.memory_space<vmem>>, vector<1x1x64xf32>
    %220 = vector.shape_cast %219 : vector<1x1x64xf32> to vector<1x64xf32>
    %221 = vector.broadcast %220 : vector<1x64xf32> to vector<16x64xf32>
    %222 = arith.addf %218, %221 : vector<16x64xf32>
    %c1_106 = arith.constant 1 : index
    %c0_107 = arith.constant 0 : index
    %c0_108 = arith.constant 0 : index
    %223 = vector.load %arg11[%c1_106, %c0_107, %c0_108] : memref<2x1x64xf32, #tpu.memory_space<vmem>>, vector<1x1x64xf32>
    %224 = vector.shape_cast %223 : vector<1x1x64xf32> to vector<1x64xf32>
    %c1_109 = arith.constant 1 : index
    %c0_110 = arith.constant 0 : index
    %c0_111 = arith.constant 0 : index
    %225 = vector.load %arg12[%c1_109, %c0_110, %c0_111] : memref<2x1x64xf32, #tpu.memory_space<vmem>>, vector<1x1x64xf32>
    %226 = vector.shape_cast %225 : vector<1x1x64xf32> to vector<1x64xf32>
    %cst_112 = arith.constant dense<0.000000e+00> : vector<16xf32>
    %227 = vector.multi_reduction <add>, %222, %cst_112 [1] : vector<16x64xf32> to vector<16xf32>
    %228 = vector.shape_cast %227 : vector<16xf32> to vector<16x1xf32>
    %cst_113 = arith.constant 6.400000e+01 : f32
    %229 = vector.broadcast %cst_113 : f32 to vector<16x1xf32>
    %230 = arith.divf %228, %229 : vector<16x1xf32>
    %231 = vector.broadcast %230 : vector<16x1xf32> to vector<16x64xf32>
    %232 = arith.subf %222, %231 : vector<16x64xf32>
    %233 = arith.mulf %232, %232 : vector<16x64xf32>
    %cst_114 = arith.constant dense<0.000000e+00> : vector<16xf32>
    %234 = vector.multi_reduction <add>, %233, %cst_114 [1] : vector<16x64xf32> to vector<16xf32>
    %235 = vector.shape_cast %234 : vector<16xf32> to vector<16x1xf32>
    %cst_115 = arith.constant 6.400000e+01 : f32
    %236 = vector.broadcast %cst_115 : f32 to vector<16x1xf32>
    %237 = arith.divf %235, %236 : vector<16x1xf32>
    %cst_116 = arith.constant 9.99999974E-6 : f32
    %238 = vector.broadcast %cst_116 : f32 to vector<16x1xf32>
    %239 = arith.addf %237, %238 : vector<16x1xf32>
    %240 = math.rsqrt %239 : vector<16x1xf32>
    %241 = vector.broadcast %240 : vector<16x1xf32> to vector<16x64xf32>
    %242 = arith.mulf %232, %241 : vector<16x64xf32>
    %243 = vector.broadcast %224 : vector<1x64xf32> to vector<16x64xf32>
    %244 = arith.mulf %242, %243 : vector<16x64xf32>
    %245 = vector.broadcast %226 : vector<1x64xf32> to vector<16x64xf32>
    %246 = arith.addf %244, %245 : vector<16x64xf32>
    %247 = arith.truncf %246 : vector<16x64xf32> to vector<16x64xbf16>
    %c1_117 = arith.constant 1 : index
    %c0_118 = arith.constant 0 : index
    %c0_119 = arith.constant 0 : index
    %248 = vector.load %arg13[%c1_117, %c0_118, %c0_119] : memref<2x64x256xbf16, #tpu.memory_space<vmem>>, vector<1x64x256xbf16>
    %249 = vector.shape_cast %248 : vector<1x64x256xbf16> to vector<64x256xbf16>
    %cst_120 = arith.constant dense<0.000000e+00> : vector<16x256xf32>
    %250 = tpu.matmul %247, %249, %cst_120 {dimension_numbers = #tpu.dot_dimension_numbers<[1], [0], [0], [1], [0, 0, 1, 1], [], []>} : vector<16x64xbf16>, vector<64x256xbf16>, vector<16x256xf32> -> vector<16x256xf32>
    %c1_121 = arith.constant 1 : index
    %c0_122 = arith.constant 0 : index
    %c0_123 = arith.constant 0 : index
    %251 = vector.load %arg14[%c1_121, %c0_122, %c0_123] : memref<2x1x256xf32, #tpu.memory_space<vmem>>, vector<1x1x256xf32>
    %252 = vector.shape_cast %251 : vector<1x1x256xf32> to vector<1x256xf32>
    %253 = vector.broadcast %252 : vector<1x256xf32> to vector<16x256xf32>
    %254 = arith.addf %250, %253 : vector<16x256xf32>
    %255 = arith.mulf %254, %254 : vector<16x256xf32>
    %256 = arith.mulf %254, %255 : vector<16x256xf32>
    %cst_124 = arith.constant 4.471500e-02 : f32
    %257 = vector.broadcast %cst_124 : f32 to vector<16x256xf32>
    %258 = arith.mulf %257, %256 : vector<16x256xf32>
    %259 = arith.addf %254, %258 : vector<16x256xf32>
    %cst_125 = arith.constant 0.797884583 : f32
    %260 = vector.broadcast %cst_125 : f32 to vector<16x256xf32>
    %261 = arith.mulf %260, %259 : vector<16x256xf32>
    %262 = math.tanh %261 : vector<16x256xf32>
    %cst_126 = arith.constant 1.000000e+00 : f32
    %263 = vector.broadcast %cst_126 : f32 to vector<16x256xf32>
    %264 = arith.addf %263, %262 : vector<16x256xf32>
    %cst_127 = arith.constant 5.000000e-01 : f32
    %265 = vector.broadcast %cst_127 : f32 to vector<16x256xf32>
    %266 = arith.mulf %265, %264 : vector<16x256xf32>
    %267 = arith.mulf %254, %266 : vector<16x256xf32>
    %268 = arith.truncf %267 : vector<16x256xf32> to vector<16x256xbf16>
    %c1_128 = arith.constant 1 : index
    %c0_129 = arith.constant 0 : index
    %c0_130 = arith.constant 0 : index
    %269 = vector.load %arg15[%c1_128, %c0_129, %c0_130] : memref<2x256x64xbf16, #tpu.memory_space<vmem>>, vector<1x256x64xbf16>
    %270 = vector.shape_cast %269 : vector<1x256x64xbf16> to vector<256x64xbf16>
    %cst_131 = arith.constant dense<0.000000e+00> : vector<16x64xf32>
    %271 = tpu.matmul %268, %270, %cst_131 {dimension_numbers = #tpu.dot_dimension_numbers<[1], [0], [0], [1], [0, 0, 1, 1], [], []>} : vector<16x256xbf16>, vector<256x64xbf16>, vector<16x64xf32> -> vector<16x64xf32>
    %272 = arith.addf %222, %271 : vector<16x64xf32>
    %c1_132 = arith.constant 1 : index
    %c0_133 = arith.constant 0 : index
    %c0_134 = arith.constant 0 : index
    %273 = vector.load %arg16[%c1_132, %c0_133, %c0_134] : memref<2x1x64xf32, #tpu.memory_space<vmem>>, vector<1x1x64xf32>
    %274 = vector.shape_cast %273 : vector<1x1x64xf32> to vector<1x64xf32>
    %275 = vector.broadcast %274 : vector<1x64xf32> to vector<16x64xf32>
    %276 = arith.addf %272, %275 : vector<16x64xf32>
    %c0_135 = arith.constant 0 : index
    %c0_136 = arith.constant 0 : index
    %277 = vector.load %arg17[%c0_135, %c0_136] : memref<1x64xf32, #tpu.memory_space<vmem>>, vector<1x64xf32>
    %c0_137 = arith.constant 0 : index
    %c0_138 = arith.constant 0 : index
    %278 = vector.load %arg18[%c0_137, %c0_138] : memref<1x64xf32, #tpu.memory_space<vmem>>, vector<1x64xf32>
    %cst_139 = arith.constant dense<0.000000e+00> : vector<16xf32>
    %279 = vector.multi_reduction <add>, %276, %cst_139 [1] : vector<16x64xf32> to vector<16xf32>
    %280 = vector.shape_cast %279 : vector<16xf32> to vector<16x1xf32>
    %cst_140 = arith.constant 6.400000e+01 : f32
    %281 = vector.broadcast %cst_140 : f32 to vector<16x1xf32>
    %282 = arith.divf %280, %281 : vector<16x1xf32>
    %283 = vector.broadcast %282 : vector<16x1xf32> to vector<16x64xf32>
    %284 = arith.subf %276, %283 : vector<16x64xf32>
    %285 = arith.mulf %284, %284 : vector<16x64xf32>
    %cst_141 = arith.constant dense<0.000000e+00> : vector<16xf32>
    %286 = vector.multi_reduction <add>, %285, %cst_141 [1] : vector<16x64xf32> to vector<16xf32>
    %287 = vector.shape_cast %286 : vector<16xf32> to vector<16x1xf32>
    %cst_142 = arith.constant 6.400000e+01 : f32
    %288 = vector.broadcast %cst_142 : f32 to vector<16x1xf32>
    %289 = arith.divf %287, %288 : vector<16x1xf32>
    %cst_143 = arith.constant 9.99999974E-6 : f32
    %290 = vector.broadcast %cst_143 : f32 to vector<16x1xf32>
    %291 = arith.addf %289, %290 : vector<16x1xf32>
    %292 = math.rsqrt %291 : vector<16x1xf32>
    %293 = vector.broadcast %292 : vector<16x1xf32> to vector<16x64xf32>
    %294 = arith.mulf %284, %293 : vector<16x64xf32>
    %295 = vector.broadcast %277 : vector<1x64xf32> to vector<16x64xf32>
    %296 = arith.mulf %294, %295 : vector<16x64xf32>
    %297 = vector.broadcast %278 : vector<1x64xf32> to vector<16x64xf32>
    %298 = arith.addf %296, %297 : vector<16x64xf32>
    %299 = arith.truncf %298 : vector<16x64xf32> to vector<16x64xbf16>
    %300 = tpu.iota {dimensions = array<i32: 0>} : vector<2x16xi32>
    %301 = tpu.iota {dimensions = array<i32: 1>} : vector<2x16xi32>
    %c8_i32 = arith.constant 8 : i32
    %302 = vector.broadcast %c8_i32 : i32 to vector<2x16xi32>
    %303 = arith.muli %300, %302 : vector<2x16xi32>
    %c1_i32 = arith.constant 1 : i32
    %304 = arith.subi %0, %c1_i32 : i32
    %305 = vector.broadcast %304 : i32 to vector<2x16xi32>
    %306 = arith.addi %303, %305 : vector<2x16xi32>
    %307 = arith.cmpi eq, %301, %306 : vector<2x16xi32>
    %308 = arith.extui %307 : vector<2x16xi1> to vector<2x16xi32>
    %309 = arith.sitofp %308 : vector<2x16xi32> to vector<2x16xf32>
    %310 = arith.truncf %309 : vector<2x16xf32> to vector<2x16xbf16>
    %cst_144 = arith.constant dense<0.000000e+00> : vector<2x64xf32>
    %311 = tpu.matmul %310, %299, %cst_144 {dimension_numbers = #tpu.dot_dimension_numbers<[1], [0], [0], [1], [0, 0, 1, 1], [], []>} : vector<2x16xbf16>, vector<16x64xbf16>, vector<2x64xf32> -> vector<2x64xf32>
    %312 = arith.truncf %311 : vector<2x64xf32> to vector<2x64xbf16>
    %c0_145 = arith.constant 0 : index
    %c0_146 = arith.constant 0 : index
    %313 = vector.load %arg19[%c0_145, %c0_146] : memref<64x128xbf16, #tpu.memory_space<vmem>>, vector<64x128xbf16>
    %cst_147 = arith.constant dense<0.000000e+00> : vector<2x128xf32>
    %314 = tpu.matmul %312, %313, %cst_147 {dimension_numbers = #tpu.dot_dimension_numbers<[1], [0], [0], [1], [0, 0, 1, 1], [], []>} : vector<2x64xbf16>, vector<64x128xbf16>, vector<2x128xf32> -> vector<2x128xf32>
    %315 = tpu.iota {dimensions = array<i32: 1>} : vector<2x128xi32>
    %cst_148 = arith.constant dense<0xFF800000> : vector<2xf32>
    %316 = vector.multi_reduction <maximumf>, %314, %cst_148 [1] : vector<2x128xf32> to vector<2xf32>
    %317 = vector.shape_cast %316 : vector<2xf32> to vector<2x1xf32>
    %318 = vector.broadcast %317 : vector<2x1xf32> to vector<2x128xf32>
    %319 = arith.cmpf oeq, %314, %318 : vector<2x128xf32>
    %c128_i32 = arith.constant 128 : i32
    %320 = vector.broadcast %c128_i32 : i32 to vector<2x128xi32>
    %321 = arith.select %319, %315, %320 : vector<2x128xi1>, vector<2x128xi32>
    %cst_149 = arith.constant dense<2147483647> : vector<2xi32>
    %322 = vector.multi_reduction <minsi>, %321, %cst_149 [1] : vector<2x128xi32> to vector<2xi32>
    %323 = vector.shape_cast %322 : vector<2xi32> to vector<2x1xi32>
    %324 = vector.broadcast %323 : vector<2x1xi32> to vector<2x128xi32>
    %325 = arith.cmpi eq, %315, %324 : vector<2x128xi32>
    %326 = arith.extui %325 : vector<2x128xi1> to vector<2x128xi32>
    %327 = arith.sitofp %326 : vector<2x128xi32> to vector<2x128xf32>
    %328 = arith.truncf %327 : vector<2x128xf32> to vector<2x128xbf16>
    %329 = tpu.iota {dimensions = array<i32: 0>} : vector<16x2xi32>
    %330 = tpu.iota {dimensions = array<i32: 1>} : vector<16x2xi32>
    %c8_i32_150 = arith.constant 8 : i32
    %331 = vector.broadcast %c8_i32_150 : i32 to vector<16x2xi32>
    %332 = arith.muli %330, %331 : vector<16x2xi32>
    %333 = vector.broadcast %0 : i32 to vector<16x2xi32>
    %334 = arith.addi %332, %333 : vector<16x2xi32>
    %335 = arith.cmpi eq, %329, %334 : vector<16x2xi32>
    %336 = arith.extui %335 : vector<16x2xi1> to vector<16x2xi32>
    %337 = arith.sitofp %336 : vector<16x2xi32> to vector<16x2xf32>
    %338 = arith.truncf %337 : vector<16x2xf32> to vector<16x2xbf16>
    %cst_151 = arith.constant dense<0.000000e+00> : vector<16x128xf32>
    %339 = tpu.matmul %338, %328, %cst_151 {dimension_numbers = #tpu.dot_dimension_numbers<[1], [0], [0], [1], [0, 0, 1, 1], [], []>} : vector<16x2xbf16>, vector<2x128xbf16>, vector<16x128xf32> -> vector<16x128xf32>
    %340 = tpu.iota {dimensions = array<i32: 0>} : vector<16x1xi32>
    %c7_i32 = arith.constant 7 : i32
    %341 = vector.broadcast %c7_i32 : i32 to vector<16x1xi32>
    %342 = arith.andi %340, %341 : vector<16x1xi32>
    %343 = vector.broadcast %0 : i32 to vector<16x1xi32>
    %344 = arith.cmpi eq, %342, %343 : vector<16x1xi32>
    %345 = vector.shape_cast %344 : vector<16x1xi1> to vector<16x1xi1>
    %346 = vector.broadcast %345 : vector<16x1xi1> to vector<16x128xi1>
    %347 = arith.select %346, %339, %5 : vector<16x128xi1>, vector<16x128xf32>
    %c0_152 = arith.constant 0 : index
    %c0_153 = arith.constant 0 : index
    %348 = vector.load %arg22[%c0_152, %c0_153] : memref<16x128xf32, #tpu.memory_space<vmem>>, vector<16x128xf32>
    tpu.vector_store %arg22[%c0_152, %c0_153], %347 {strides = array<i32>} : memref<16x128xf32, #tpu.memory_space<vmem>>, vector<16x128xf32>,
    %c3_i32 = arith.constant 3 : i32
    %349 = arith.cmpi eq, %arg0, %c3_i32 : i32
    %350 = arith.extui %349 : i1 to i32
    %c0_i32_154 = arith.constant 0 : i32
    %351 = arith.cmpi ne, %350, %c0_i32_154 : i32
    scf.if %351 {
      %352 = arith.fptosi %347 : vector<16x128xf32> to vector<16x128xi32>
      %c0_155 = arith.constant 0 : index
      %c0_156 = arith.constant 0 : index
      %353 = vector.load %arg20[%c0_155, %c0_156] : memref<16x128xi32, #tpu.memory_space<vmem>>, vector<16x128xi32>
      tpu.vector_store %arg20[%c0_155, %c0_156], %352 {strides = array<i32>} : memref<16x128xi32, #tpu.memory_space<vmem>>, vector<16x128xi32>,
      %354 = tpu.iota {dimensions = array<i32: 1>} : vector<16x128xi32>
      %cst_157 = arith.constant 5.000000e-01 : f32
      %355 = vector.broadcast %cst_157 : f32 to vector<16x128xf32>
      %356 = arith.cmpf ogt, %347, %355 : vector<16x128xf32>
      %c0_i32_158 = arith.constant 0 : i32
      %357 = vector.broadcast %c0_i32_158 : i32 to vector<16x128xi32>
      %358 = arith.select %356, %354, %357 : vector<16x128xi1>, vector<16x128xi32>
      %cst_159 = arith.constant dense<0> : vector<16xi32>
      %359 = vector.multi_reduction <add>, %358, %cst_159 [1] : vector<16x128xi32> to vector<16xi32>
      %360 = vector.shape_cast %359 : vector<16xi32> to vector<16x1xi32>
      %c0_160 = arith.constant 0 : index
      %c0_161 = arith.constant 0 : index
      %361 = vector.load %arg21[%c0_160, %c0_161] : memref<16x1xi32, #tpu.memory_space<vmem>>, vector<16x1xi32>
      tpu.vector_store %arg21[%c0_160, %c0_161], %360 {strides = array<i32>} : memref<16x1xi32, #tpu.memory_space<vmem>>, vector<16x1xi32>,
    } else {
    }
    return
  }
  func.func @transform_0(%arg0: i32) -> (i32, i32) {
    %c0_i32 = arith.constant 0 : i32
    %c0_i32_0 = arith.constant 0 : i32
    %c0_i32_1 = arith.constant 0 : i32
    return %c0_i32, %c0_i32_0 : i32, i32
  }
  func.func @transform_1(%arg0: i32) -> (i32, i32) {
    %c0_i32 = arith.constant 0 : i32
    %c0_i32_0 = arith.constant 0 : i32
    %c0_i32_1 = arith.constant 0 : i32
    return %c0_i32, %c0_i32_0 : i32, i32
  }
  func.func @transform_2(%arg0: i32) -> (i32, i32) {
    %c0_i32 = arith.constant 0 : i32
    %c0_i32_0 = arith.constant 0 : i32
    %c0_i32_1 = arith.constant 0 : i32
    return %c0_i32, %c0_i32_0 : i32, i32
  }
  func.func @transform_3(%arg0: i32) -> (i32, i32) {
    %c0_i32 = arith.constant 0 : i32
    %c0_i32_0 = arith.constant 0 : i32
    %c0_i32_1 = arith.constant 0 : i32
    return %c0_i32, %c0_i32_0 : i32, i32
  }
  func.func @transform_4(%arg0: i32) -> (i32, i32, i32) {
    %c0_i32 = arith.constant 0 : i32
    %c0_i32_0 = arith.constant 0 : i32
    %c0_i32_1 = arith.constant 0 : i32
    %c0_i32_2 = arith.constant 0 : i32
    return %c0_i32, %c0_i32_0, %c0_i32_1 : i32, i32, i32
  }
  func.func @transform_5(%arg0: i32) -> (i32, i32, i32) {
    %c0_i32 = arith.constant 0 : i32
    %c0_i32_0 = arith.constant 0 : i32
    %c0_i32_1 = arith.constant 0 : i32
    %c0_i32_2 = arith.constant 0 : i32
    return %c0_i32, %c0_i32_0, %c0_i32_1 : i32, i32, i32
  }
  func.func @transform_6(%arg0: i32) -> (i32, i32, i32) {
    %c0_i32 = arith.constant 0 : i32
    %c0_i32_0 = arith.constant 0 : i32
    %c0_i32_1 = arith.constant 0 : i32
    %c0_i32_2 = arith.constant 0 : i32
    return %c0_i32, %c0_i32_0, %c0_i32_1 : i32, i32, i32
  }
  func.func @transform_7(%arg0: i32) -> (i32, i32, i32) {
    %c0_i32 = arith.constant 0 : i32
    %c0_i32_0 = arith.constant 0 : i32
    %c0_i32_1 = arith.constant 0 : i32
    %c0_i32_2 = arith.constant 0 : i32
    return %c0_i32, %c0_i32_0, %c0_i32_1 : i32, i32, i32
  }
  func.func @transform_8(%arg0: i32) -> (i32, i32, i32) {
    %c0_i32 = arith.constant 0 : i32
    %c0_i32_0 = arith.constant 0 : i32
    %c0_i32_1 = arith.constant 0 : i32
    %c0_i32_2 = arith.constant 0 : i32
    return %c0_i32, %c0_i32_0, %c0_i32_1 : i32, i32, i32
  }
  func.func @transform_9(%arg0: i32) -> (i32, i32, i32) {
    %c0_i32 = arith.constant 0 : i32
    %c0_i32_0 = arith.constant 0 : i32
    %c0_i32_1 = arith.constant 0 : i32
    %c0_i32_2 = arith.constant 0 : i32
    return %c0_i32, %c0_i32_0, %c0_i32_1 : i32, i32, i32
  }
  func.func @transform_10(%arg0: i32) -> (i32, i32, i32) {
    %c0_i32 = arith.constant 0 : i32
    %c0_i32_0 = arith.constant 0 : i32
    %c0_i32_1 = arith.constant 0 : i32
    %c0_i32_2 = arith.constant 0 : i32
    return %c0_i32, %c0_i32_0, %c0_i32_1 : i32, i32, i32
  }
  func.func @transform_11(%arg0: i32) -> (i32, i32, i32) {
    %c0_i32 = arith.constant 0 : i32
    %c0_i32_0 = arith.constant 0 : i32
    %c0_i32_1 = arith.constant 0 : i32
    %c0_i32_2 = arith.constant 0 : i32
    return %c0_i32, %c0_i32_0, %c0_i32_1 : i32, i32, i32
  }
  func.func @transform_12(%arg0: i32) -> (i32, i32, i32) {
    %c0_i32 = arith.constant 0 : i32
    %c0_i32_0 = arith.constant 0 : i32
    %c0_i32_1 = arith.constant 0 : i32
    %c0_i32_2 = arith.constant 0 : i32
    return %c0_i32, %c0_i32_0, %c0_i32_1 : i32, i32, i32
  }
  func.func @transform_13(%arg0: i32) -> (i32, i32, i32) {
    %c0_i32 = arith.constant 0 : i32
    %c0_i32_0 = arith.constant 0 : i32
    %c0_i32_1 = arith.constant 0 : i32
    %c0_i32_2 = arith.constant 0 : i32
    return %c0_i32, %c0_i32_0, %c0_i32_1 : i32, i32, i32
  }
  func.func @transform_14(%arg0: i32) -> (i32, i32, i32) {
    %c0_i32 = arith.constant 0 : i32
    %c0_i32_0 = arith.constant 0 : i32
    %c0_i32_1 = arith.constant 0 : i32
    %c0_i32_2 = arith.constant 0 : i32
    return %c0_i32, %c0_i32_0, %c0_i32_1 : i32, i32, i32
  }
  func.func @transform_15(%arg0: i32) -> (i32, i32, i32) {
    %c0_i32 = arith.constant 0 : i32
    %c0_i32_0 = arith.constant 0 : i32
    %c0_i32_1 = arith.constant 0 : i32
    %c0_i32_2 = arith.constant 0 : i32
    return %c0_i32, %c0_i32_0, %c0_i32_1 : i32, i32, i32
  }
  func.func @transform_16(%arg0: i32) -> (i32, i32) {
    %c0_i32 = arith.constant 0 : i32
    %c0_i32_0 = arith.constant 0 : i32
    %c0_i32_1 = arith.constant 0 : i32
    return %c0_i32, %c0_i32_0 : i32, i32
  }
  func.func @transform_17(%arg0: i32) -> (i32, i32) {
    %c0_i32 = arith.constant 0 : i32
    %c0_i32_0 = arith.constant 0 : i32
    %c0_i32_1 = arith.constant 0 : i32
    return %c0_i32, %c0_i32_0 : i32, i32
  }
  func.func @transform_18(%arg0: i32) -> (i32, i32) {
    %c0_i32 = arith.constant 0 : i32
    %c0_i32_0 = arith.constant 0 : i32
    %c0_i32_1 = arith.constant 0 : i32
    return %c0_i32, %c0_i32_0 : i32, i32
  }
  func.func @transform_19(%arg0: i32) -> (i32, i32) {
    %c0_i32 = arith.constant 0 : i32
    %c0_i32_0 = arith.constant 0 : i32
    %c0_i32_1 = arith.constant 0 : i32
    return %c0_i32, %c0_i32_0 : i32, i32
  }
  func.func @transform_20(%arg0: i32) -> (i32, i32) {
    %c0_i32 = arith.constant 0 : i32
    %c0_i32_0 = arith.constant 0 : i32
    %c0_i32_1 = arith.constant 0 : i32
    return %c0_i32, %c0_i32_0 : i32, i32
  }
}

</mosaic_0001>

<llo_original>
// kernel: eq.1
$region0: #{eq.1}
  %s0 = inlined_call_operand.vmem [shape: s32[2,8], index: 0, kind: input, shape index: {}]
  %s1 = inlined_call_operand.vmem [shape: s32[16], index: 1, kind: output, shape index: {}]
  $region1: #{eq.1} parent=0
    #allocation0 [shape = 'u8[4096]{0}', space=vmem, size = 0x1000, scoped, tag = 'scoped mem for output reshape']
    #allocation1 [shape = 'u8[4096]{0}', space=vmem, size = 0x1000, scoped, tag = 'scoped mem for input reshape']
    %s3 = sshll.u32 1, 2
    %s4 = ssub.s32 %s3, 1
    %v5 = vld [vmem:[%s0] sm:%s4]
    %6 = vst [vmem:[#allocation1] sm:%s4] %v5
    %v7 = vld [vmem:[#allocation1] sm:$0x1]
    %vm8 = vcmask 64512
    %9 = vst.msk [vmem:[#allocation0] sm:$0x1] %vm8, %v7
    %s10 = scalar_lea.vmem [#allocation1], 1
    %v11 = vld [vmem:[%s10] sm:$0x1]
    %12 = vrot.lane.b32.xlu0 %v11, 8
    %v13 = vpop.permute.xlu0 %12
    %vm14 = vcmask 130112
    %15 = vst.msk [vmem:[#allocation0] sm:$0x1] %vm14, %v13
    %s17 = sshll.u32 1, 1
    %s18 = ssub.s32 %s17, 1
    %v20 = vld [vmem:[#allocation0] sm:%s18]
    %s21 = sshll.u32 1, 1
    %s22 = ssub.s32 %s21, 1
    %23 = vst [vmem:[%s1] sm:%s22] %v20

// kernel: wrapper_gpt2_forward.1
$region0: #{wrapper_gpt2_forward.1}
  #allocation0 [shape = 'u32[]', space=smem, size = 0x4, offset = 0x4, fixed_abs, tag = 'smem constant byte address 0x4 - core index']
  #allocation1 [shape = 'u32[144,128]{1,0:T(1,128)}', space=vmem, size = 0x12000, scoped, tag = 'internal scratch']
  #allocation2 [shape = 'f32[16,128]{1,0:T(8,128)}', space=vmem, size = 0x2000, scoped, tag = 'scratch operand']
  %s0 = inlined_call_operand.vmem [shape: f32[16,16], index: 0, kind: input, shape index: {}]
  %s1 = inlined_call_operand.vmem [shape: f32[16,128], index: 1, kind: input, shape index: {}]
  %s2 = inlined_call_operand.vmem [shape: f32[16,64], index: 2, kind: input, shape index: {}]
  %s3 = inlined_call_operand.vmem [shape: bf16[128,64], index: 3, kind: input, shape index: {}]
  %s4 = inlined_call_operand.vmem [shape: f32[2,1,64], index: 4, kind: input, shape index: {}]
  %s5 = inlined_call_operand.vmem [shape: f32[2,1,64], index: 5, kind: input, shape index: {}]
  %s6 = inlined_call_operand.vmem [shape: bf16[2,64,192], index: 6, kind: input, shape index: {}]
  %s7 = inlined_call_operand.vmem [shape: f32[2,1,192], index: 7, kind: input, shape index: {}]
  %s8 = inlined_call_operand.vmem [shape: bf16[2,64,64], index: 8, kind: input, shape index: {}]
  %s9 = inlined_call_operand.vmem [shape: f32[2,1,64], index: 9, kind: input, shape index: {}]
  %s10 = inlined_call_operand.vmem [shape: f32[2,1,64], index: 10, kind: input, shape index: {}]
  %s11 = inlined_call_operand.vmem [shape: f32[2,1,64], index: 11, kind: input, shape index: {}]
  %s12 = inlined_call_operand.vmem [shape: bf16[2,64,256], index: 12, kind: input, shape index: {}]
  %s13 = inlined_call_operand.vmem [shape: f32[2,1,256], index: 13, kind: input, shape index: {}]
  %s14 = inlined_call_operand.vmem [shape: bf16[2,256,64], index: 14, kind: input, shape index: {}]
  %s15 = inlined_call_operand.vmem [shape: f32[2,1,64], index: 15, kind: input, shape index: {}]
  %s16 = inlined_call_operand.vmem [shape: f32[1,64], index: 16, kind: input, shape index: {}]
  %s17 = inlined_call_operand.vmem [shape: f32[1,64], index: 17, kind: input, shape index: {}]
  %s18 = inlined_call_operand.vmem [shape: bf16[64,128], index: 18, kind: input, shape index: {}]
  %s19 = inlined_call_operand.hbm [shape: s32[16,128], index: 19, kind: output, shape index: {0}]
  %s20 = inlined_call_operand.vmem [shape: s32[16,1], index: 20, kind: output, shape index: {1}]
  %21 = xla_tuple %s19, %s20
  %s22 = sld [smem:[#allocation0]]
  $region125: #{wrapper_gpt2_forward.1} parent=0
    _
  %s24 = ssub.s32 1, %s22
  %s25 = scalar_select 0, %s24, %s22
  $region1: #{wrapper_gpt2_forward.1} parent=0
    #allocation3 [shape = 'u8[8192]{0}', space=vmem, size = 0x2000, scoped, tag = 'output window, operand 0, single buffered']
    #allocation4 [shape = 's32[2]{0}', space=sflag, size = 0x8, scoped, tag = 'scoped memory for wrapper_gpt2_forward.1']
    %26 = vsyncpa [#allocation4], 0
    loop: start=0, step=1, limit=6
    $region2: #{wrapper_gpt2_forward.1} parent=1 // loop_pre_header
      _
    $region3: #{wrapper_gpt2_forward.1} parent=1 // loop_header
      %s28 = sphi 0, %s32
      %p29 = scmp.ge.s32.totalorder %s28, 6
      %s36 = sphi 0, %s36
      %s38 = sphi 0, %s36
      %s39 = sphi 0, %s38
      %s53 = sphi 0, %s39
      %s57 = sphi 0, %s57
      %s59 = sphi 0, %s57
      %s60 = sphi 0, %s59
      %s74 = sphi 0, %s60
      %s78 = sphi 0, %s78
      %s80 = sphi 0, %s78
      %s81 = sphi 0, %s80
      %s95 = sphi 0, %s81
      %s99 = sphi 0, %s99
      %s101 = sphi 0, %s99
      %s102 = sphi 0, %s101
      %s116 = sphi 0, %s102
      %s120 = sphi 0, %s120
      %s122 = sphi 0, %s120
      %s123 = sphi 0, %s122
      %s137 = sphi 0, %s123
      %s141 = sphi 0, %s141
      %s143 = sphi 0, %s141
      %s144 = sphi 0, %s143
      %s158 = sphi 0, %s144
      %s162 = sphi 0, %s162
      %s164 = sphi 0, %s162
      %s165 = sphi 0, %s164
      %s179 = sphi 0, %s165
      %s183 = sphi 0, %s183
      %s185 = sphi 0, %s183
      %s186 = sphi 0, %s185
      %s200 = sphi 0, %s186
      %s204 = sphi 0, %s204
      %s206 = sphi 0, %s204
      %s207 = sphi 0, %s206
      %s221 = sphi 0, %s207
      %s225 = sphi 0, %s225
      %s227 = sphi 0, %s225
      %s228 = sphi 0, %s227
      %s242 = sphi 0, %s228
      %s246 = sphi 0, %s246
      %s248 = sphi 0, %s246
      %s249 = sphi 0, %s248
      %s263 = sphi 0, %s249
      %s267 = sphi 0, %s267
      %s269 = sphi 0, %s267
      %s270 = sphi 0, %s269
      %s284 = sphi 0, %s270
      %s288 = sphi 0, %s288
      %s290 = sphi 0, %s288
      %s291 = sphi 0, %s290
      %s305 = sphi 0, %s291
      %s309 = sphi 0, %s309
      %s311 = sphi 0, %s309
      %s312 = sphi 0, %s311
      %s326 = sphi 0, %s312
      %s330 = sphi 0, %s330
      %s332 = sphi 0, %s330
      %s333 = sphi 0, %s332
      %s347 = sphi 0, %s333
      %s351 = sphi 0, %s351
      %s353 = sphi 0, %s351
      %s354 = sphi 0, %s353
      %s368 = sphi 0, %s354
      %s372 = sphi 0, %s372
      %s374 = sphi 0, %s372
      %s375 = sphi 0, %s374
      %s389 = sphi 0, %s375
      %s393 = sphi 0, %s393
      %s395 = sphi 0, %s393
      %s396 = sphi 0, %s395
      %s410 = sphi 0, %s396
      %s414 = sphi 0, %s414
      %s416 = sphi 0, %s414
      %s417 = sphi 0, %s416
      %s431 = sphi 0, %s417
      %s435 = sphi 0, %s435
      %s437 = sphi 0, %s435
      %s438 = sphi 0, %s437
      %s452 = sphi 0, %s438
      %s456 = sphi 0, %s456
      %s458 = sphi 0, %s456
      %s459 = sphi 0, %s458
      %s473 = sphi 0, %s459
    $region4: #{wrapper_gpt2_forward.1} parent=1 // loop_header_branch
      %31 = sbr.rel (%p29) target = $region8
    $region5: #{wrapper_gpt2_forward.1} parent=1 // loop_body
      %s33 = ssub.s32 %s28, 1
      %s34 = ssub.s32 %s28, 2
      %s35 = sadd.s32 %s28, 1
      %s37 = sadd.s32 %s36, 1
      %p40 = scmp.eq.s32.totalorder %s28, 3
      %p41 = scmp.ne.s32.totalorder %s36, %s38
      %p42 = scmp.eq.s32.totalorder %s28, 0
      %p43 = por %p41, %p42
      %p44 = scmp.ne.s32.totalorder %s36, %s38
      %p45 = scmp.eq.s32.totalorder %s33, 3
      %p46 = por %p44, %p45
      %p47 = scmp.ne.s32.totalorder %s38, %s39
      %p48 = scmp.eq.s32.totalorder %s33, 0
      %p49 = por %p47, %p48
      %p50 = scmp.ne.s32.totalorder %s38, %s39
      %p51 = scmp.eq.s32.totalorder %s34, 3
      %p52 = por %p50, %p51
      %p54 = scmp.ne.s32.totalorder %s39, %s53
      %p55 = scmp.eq.s32.totalorder %s34, 0
      %p56 = por %p54, %p55
      %s58 = sadd.s32 %s57, 1
      %p61 = scmp.eq.s32.totalorder %s28, 3
      %p62 = scmp.ne.s32.totalorder %s57, %s59
      %p63 = scmp.eq.s32.totalorder %s28, 0
      %p64 = por %p62, %p63
      %p65 = scmp.ne.s32.totalorder %s57, %s59
      %p66 = scmp.eq.s32.totalorder %s33, 3
      %p67 = por %p65, %p66
      %p68 = scmp.ne.s32.totalorder %s59, %s60
      %p69 = scmp.eq.s32.totalorder %s33, 0
      %p70 = por %p68, %p69
      %p71 = scmp.ne.s32.totalorder %s59, %s60
      %p72 = scmp.eq.s32.totalorder %s34, 3
      %p73 = por %p71, %p72
      %p75 = scmp.ne.s32.totalorder %s60, %s74
      %p76 = scmp.eq.s32.totalorder %s34, 0
      %p77 = por %p75, %p76
      %s79 = sadd.s32 %s78, 1
      %p82 = scmp.eq.s32.totalorder %s28, 3
      %p83 = scmp.ne.s32.totalorder %s78, %s80
      %p84 = scmp.eq.s32.totalorder %s28, 0
      %p85 = por %p83, %p84
      %p86 = scmp.ne.s32.totalorder %s78, %s80
      %p87 = scmp.eq.s32.totalorder %s33, 3
      %p88 = por %p86, %p87
      %p89 = scmp.ne.s32.totalorder %s80, %s81
      %p90 = scmp.eq.s32.totalorder %s33, 0
      %p91 = por %p89, %p90
      %p92 = scmp.ne.s32.totalorder %s80, %s81
      %p93 = scmp.eq.s32.totalorder %s34, 3
      %p94 = por %p92, %p93
      %p96 = scmp.ne.s32.totalorder %s81, %s95
      %p97 = scmp.eq.s32.totalorder %s34, 0
      %p98 = por %p96, %p97
      %s100 = sadd.s32 %s99, 1
      %p103 = scmp.eq.s32.totalorder %s28, 3
      %p104 = scmp.ne.s32.totalorder %s99, %s101
      %p105 = scmp.eq.s32.totalorder %s28, 0
      %p106 = por %p104, %p105
      %p107 = scmp.ne.s32.totalorder %s99, %s101
      %p108 = scmp.eq.s32.totalorder %s33, 3
      %p109 = por %p107, %p108
      %p110 = scmp.ne.s32.totalorder %s101, %s102
      %p111 = scmp.eq.s32.totalorder %s33, 0
      %p112 = por %p110, %p111
      %p113 = scmp.ne.s32.totalorder %s101, %s102
      %p114 = scmp.eq.s32.totalorder %s34, 3
      %p115 = por %p113, %p114
      %p117 = scmp.ne.s32.totalorder %s102, %s116
      %p118 = scmp.eq.s32.totalorder %s34, 0
      %p119 = por %p117, %p118
      %s121 = sadd.s32 %s120, 1
      %p124 = scmp.eq.s32.totalorder %s28, 3
      %p125 = scmp.ne.s32.totalorder %s120, %s122
      %p126 = scmp.eq.s32.totalorder %s28, 0
      %p127 = por %p125, %p126
      %p128 = scmp.ne.s32.totalorder %s120, %s122
      %p129 = scmp.eq.s32.totalorder %s33, 3
      %p130 = por %p128, %p129
      %p131 = scmp.ne.s32.totalorder %s122, %s123
      %p132 = scmp.eq.s32.totalorder %s33, 0
      %p133 = por %p131, %p132
      %p134 = scmp.ne.s32.totalorder %s122, %s123
      %p135 = scmp.eq.s32.totalorder %s34, 3
      %p136 = por %p134, %p135
      %p138 = scmp.ne.s32.totalorder %s123, %s137
      %p139 = scmp.eq.s32.totalorder %s34, 0
      %p140 = por %p138, %p139
      %s142 = sadd.s32 %s141, 1
      %p145 = scmp.eq.s32.totalorder %s28, 3
      %p146 = scmp.ne.s32.totalorder %s141, %s143
      %p147 = scmp.eq.s32.totalorder %s28, 0
      %p148 = por %p146, %p147
      %p149 = scmp.ne.s32.totalorder %s141, %s143
      %p150 = scmp.eq.s32.totalorder %s33, 3
      %p151 = por %p149, %p150
      %p152 = scmp.ne.s32.totalorder %s143, %s144
      %p153 = scmp.eq.s32.totalorder %s33, 0
      %p154 = por %p152, %p153
      %p155 = scmp.ne.s32.totalorder %s143, %s144
      %p156 = scmp.eq.s32.totalorder %s34, 3
      %p157 = por %p155, %p156
      %p159 = scmp.ne.s32.totalorder %s144, %s158
      %p160 = scmp.eq.s32.totalorder %s34, 0
      %p161 = por %p159, %p160
      %s163 = sadd.s32 %s162, 1
      %p166 = scmp.eq.s32.totalorder %s28, 3
      %p167 = scmp.ne.s32.totalorder %s162, %s164
      %p168 = scmp.eq.s32.totalorder %s28, 0
      %p169 = por %p167, %p168
      %p170 = scmp.ne.s32.totalorder %s162, %s164
      %p171 = scmp.eq.s32.totalorder %s33, 3
      %p172 = por %p170, %p171
      %p173 = scmp.ne.s32.totalorder %s164, %s165
      %p174 = scmp.eq.s32.totalorder %s33, 0
      %p175 = por %p173, %p174
      %p176 = scmp.ne.s32.totalorder %s164, %s165
      %p177 = scmp.eq.s32.totalorder %s34, 3
      %p178 = por %p176, %p177
      %p180 = scmp.ne.s32.totalorder %s165, %s179
      %p181 = scmp.eq.s32.totalorder %s34, 0
      %p182 = por %p180, %p181
      %s184 = sadd.s32 %s183, 1
      %p187 = scmp.eq.s32.totalorder %s28, 3
      %p188 = scmp.ne.s32.totalorder %s183, %s185
      %p189 = scmp.eq.s32.totalorder %s28, 0
      %p190 = por %p188, %p189
      %p191 = scmp.ne.s32.totalorder %s183, %s185
      %p192 = scmp.eq.s32.totalorder %s33, 3
      %p193 = por %p191, %p192
      %p194 = scmp.ne.s32.totalorder %s185, %s186
      %p195 = scmp.eq.s32.totalorder %s33, 0
      %p196 = por %p194, %p195
      %p197 = scmp.ne.s32.totalorder %s185, %s186
      %p198 = scmp.eq.s32.totalorder %s34, 3
      %p199 = por %p197, %p198
      %p201 = scmp.ne.s32.totalorder %s186, %s200
      %p202 = scmp.eq.s32.totalorder %s34, 0
      %p203 = por %p201, %p202
      %s205 = sadd.s32 %s204, 1
      %p208 = scmp.eq.s32.totalorder %s28, 3
      %p209 = scmp.ne.s32.totalorder %s204, %s206
      %p210 = scmp.eq.s32.totalorder %s28, 0
      %p211 = por %p209, %p210
      %p212 = scmp.ne.s32.totalorder %s204, %s206
      %p213 = scmp.eq.s32.totalorder %s33, 3
      %p214 = por %p212, %p213
      %p215 = scmp.ne.s32.totalorder %s206, %s207
      %p216 = scmp.eq.s32.totalorder %s33, 0
      %p217 = por %p215, %p216
      %p218 = scmp.ne.s32.totalorder %s206, %s207
      %p219 = scmp.eq.s32.totalorder %s34, 3
      %p220 = por %p218, %p219
      %p222 = scmp.ne.s32.totalorder %s207, %s221
      %p223 = scmp.eq.s32.totalorder %s34, 0
      %p224 = por %p222, %p223
      %s226 = sadd.s32 %s225, 1
      %p229 = scmp.eq.s32.totalorder %s28, 3
      %p230 = scmp.ne.s32.totalorder %s225, %s227
      %p231 = scmp.eq.s32.totalorder %s28, 0
      %p232 = por %p230, %p231
      %p233 = scmp.ne.s32.totalorder %s225, %s227
      %p234 = scmp.eq.s32.totalorder %s33, 3
      %p235 = por %p233, %p234
      %p236 = scmp.ne.s32.totalorder %s227, %s228
      %p237 = scmp.eq.s32.totalorder %s33, 0
      %p238 = por %p236, %p237
      %p239 = scmp.ne.s32.totalorder %s227, %s228
      %p240 = scmp.eq.s32.totalorder %s34, 3
      %p241 = por %p239, %p240
      %p243 = scmp.ne.s32.totalorder %s228, %s242
      %p244 = scmp.eq.s32.totalorder %s34, 0
      %p245 = por %p243, %p244
      %s247 = sadd.s32 %s246, 1
      %p250 = scmp.eq.s32.totalorder %s28, 3
      %p251 = scmp.ne.s32.totalorder %s246, %s248
      %p252 = scmp.eq.s32.totalorder %s28, 0
      %p253 = por %p251, %p252
      %p254 = scmp.ne.s32.totalorder %s246, %s248
      %p255 = scmp.eq.s32.totalorder %s33, 3
      %p256 = por %p254, %p255
      %p257 = scmp.ne.s32.totalorder %s248, %s249
      %p258 = scmp.eq.s32.totalorder %s33, 0
      %p259 = por %p257, %p258
      %p260 = scmp.ne.s32.totalorder %s248, %s249
      %p261 = scmp.eq.s32.totalorder %s34, 3
      %p262 = por %p260, %p261
      %p264 = scmp.ne.s32.totalorder %s249, %s263
      %p265 = scmp.eq.s32.totalorder %s34, 0
      %p266 = por %p264, %p265
      %s268 = sadd.s32 %s267, 1
      %p271 = scmp.eq.s32.totalorder %s28, 3
      %p272 = scmp.ne.s32.totalorder %s267, %s269
      %p273 = scmp.eq.s32.totalorder %s28, 0
      %p274 = por %p272, %p273
      %p275 = scmp.ne.s32.totalorder %s267, %s269
      %p276 = scmp.eq.s32.totalorder %s33, 3
      %p277 = por %p275, %p276
      %p278 = scmp.ne.s32.totalorder %s269, %s270
      %p279 = scmp.eq.s32.totalorder %s33, 0
      %p280 = por %p278, %p279
      %p281 = scmp.ne.s32.totalorder %s269, %s270
      %p282 = scmp.eq.s32.totalorder %s34, 3
      %p283 = por %p281, %p282
      %p285 = scmp.ne.s32.totalorder %s270, %s284
      %p286 = scmp.eq.s32.totalorder %s34, 0
      %p287 = por %p285, %p286
      %s289 = sadd.s32 %s288, 1
      %p292 = scmp.eq.s32.totalorder %s28, 3
      %p293 = scmp.ne.s32.totalorder %s288, %s290
      %p294 = scmp.eq.s32.totalorder %s28, 0
      %p295 = por %p293, %p294
      %p296 = scmp.ne.s32.totalorder %s288, %s290
      %p297 = scmp.eq.s32.totalorder %s33, 3
      %p298 = por %p296, %p297
      %p299 = scmp.ne.s32.totalorder %s290, %s291
      %p300 = scmp.eq.s32.totalorder %s33, 0
      %p301 = por %p299, %p300
      %p302 = scmp.ne.s32.totalorder %s290, %s291
      %p303 = scmp.eq.s32.totalorder %s34, 3
      %p304 = por %p302, %p303
      %p306 = scmp.ne.s32.totalorder %s291, %s305
      %p307 = scmp.eq.s32.totalorder %s34, 0
      %p308 = por %p306, %p307
      %s310 = sadd.s32 %s309, 1
      %p313 = scmp.eq.s32.totalorder %s28, 3
      %p314 = scmp.ne.s32.totalorder %s309, %s311
      %p315 = scmp.eq.s32.totalorder %s28, 0
      %p316 = por %p314, %p315
      %p317 = scmp.ne.s32.totalorder %s309, %s311
      %p318 = scmp.eq.s32.totalorder %s33, 3
      %p319 = por %p317, %p318
      %p320 = scmp.ne.s32.totalorder %s311, %s312
      %p321 = scmp.eq.s32.totalorder %s33, 0
      %p322 = por %p320, %p321
      %p323 = scmp.ne.s32.totalorder %s311, %s312
      %p324 = scmp.eq.s32.totalorder %s34, 3
      %p325 = por %p323, %p324
      %p327 = scmp.ne.s32.totalorder %s312, %s326
      %p328 = scmp.eq.s32.totalorder %s34, 0
      %p329 = por %p327, %p328
      %s331 = sadd.s32 %s330, 1
      %p334 = scmp.eq.s32.totalorder %s28, 3
      %p335 = scmp.ne.s32.totalorder %s330, %s332
      %p336 = scmp.eq.s32.totalorder %s28, 0
      %p337 = por %p335, %p336
      %p338 = scmp.ne.s32.totalorder %s330, %s332
      %p339 = scmp.eq.s32.totalorder %s33, 3
      %p340 = por %p338, %p339
      %p341 = scmp.ne.s32.totalorder %s332, %s333
      %p342 = scmp.eq.s32.totalorder %s33, 0
      %p343 = por %p341, %p342
      %p344 = scmp.ne.s32.totalorder %s332, %s333
      %p345 = scmp.eq.s32.totalorder %s34, 3
      %p346 = por %p344, %p345
      %p348 = scmp.ne.s32.totalorder %s333, %s347
      %p349 = scmp.eq.s32.totalorder %s34, 0
      %p350 = por %p348, %p349
      %s352 = sadd.s32 %s351, 1
      %p355 = scmp.eq.s32.totalorder %s28, 3
      %p356 = scmp.ne.s32.totalorder %s351, %s353
      %p357 = scmp.eq.s32.totalorder %s28, 0
      %p358 = por %p356, %p357
      %p359 = scmp.ne.s32.totalorder %s351, %s353
      %p360 = scmp.eq.s32.totalorder %s33, 3
      %p361 = por %p359, %p360
      %p362 = scmp.ne.s32.totalorder %s353, %s354
      %p363 = scmp.eq.s32.totalorder %s33, 0
      %p364 = por %p362, %p363
      %p365 = scmp.ne.s32.totalorder %s353, %s354
      %p366 = scmp.eq.s32.totalorder %s34, 3
      %p367 = por %p365, %p366
      %p369 = scmp.ne.s32.totalorder %s354, %s368
      %p370 = scmp.eq.s32.totalorder %s34, 0
      %p371 = por %p369, %p370
      %s373 = sadd.s32 %s372, 1
      %p376 = scmp.eq.s32.totalorder %s28, 3
      %p377 = scmp.ne.s32.totalorder %s372, %s374
      %p378 = scmp.eq.s32.totalorder %s28, 0
      %p379 = por %p377, %p378
      %p380 = scmp.ne.s32.totalorder %s372, %s374
      %p381 = scmp.eq.s32.totalorder %s33, 3
      %p382 = por %p380, %p381
      %p383 = scmp.ne.s32.totalorder %s374, %s375
      %p384 = scmp.eq.s32.totalorder %s33, 0
      %p385 = por %p383, %p384
      %p386 = scmp.ne.s32.totalorder %s374, %s375
      %p387 = scmp.eq.s32.totalorder %s34, 3
      %p388 = por %p386, %p387
      %p390 = scmp.ne.s32.totalorder %s375, %s389
      %p391 = scmp.eq.s32.totalorder %s34, 0
      %p392 = por %p390, %p391
      %s394 = sadd.s32 %s393, 1
      %p397 = scmp.eq.s32.totalorder %s28, 3
      %p398 = scmp.ne.s32.totalorder %s393, %s395
      %p399 = scmp.eq.s32.totalorder %s28, 0
      %p400 = por %p398, %p399
      %p401 = scmp.ne.s32.totalorder %s393, %s395
      %p402 = scmp.eq.s32.totalorder %s33, 3
      %p403 = por %p401, %p402
      %p404 = scmp.ne.s32.totalorder %s395, %s396
      %p405 = scmp.eq.s32.totalorder %s33, 0
      %p406 = por %p404, %p405
      %p407 = scmp.ne.s32.totalorder %s395, %s396
      %p408 = scmp.eq.s32.totalorder %s34, 3
      %p409 = por %p407, %p408
      %p411 = scmp.ne.s32.totalorder %s396, %s410
      %p412 = scmp.eq.s32.totalorder %s34, 0
      %p413 = por %p411, %p412
      %s415 = sadd.s32 %s414, 1
      %p418 = scmp.eq.s32.totalorder %s28, 3
      %p419 = scmp.ne.s32.totalorder %s414, %s416
      %p420 = scmp.eq.s32.totalorder %s28, 0
      %p421 = por %p419, %p420
      %p422 = scmp.ne.s32.totalorder %s414, %s416
      %p423 = scmp.eq.s32.totalorder %s33, 3
      %p424 = por %p422, %p423
      %p425 = scmp.ne.s32.totalorder %s416, %s417
      %p426 = scmp.eq.s32.totalorder %s33, 0
      %p427 = por %p425, %p426
      %p428 = scmp.ne.s32.totalorder %s416, %s417
      %p429 = scmp.eq.s32.totalorder %s34, 3
      %p430 = por %p428, %p429
      %p432 = scmp.ne.s32.totalorder %s417, %s431
      %p433 = scmp.eq.s32.totalorder %s34, 0
      %p434 = por %p432, %p433
      %s436 = sadd.s32 %s435, 1
      %p439 = scmp.eq.s32.totalorder %s28, 3
      %p440 = scmp.ne.s32.totalorder %s435, %s437
      %p441 = scmp.eq.s32.totalorder %s28, 0
      %p442 = por %p440, %p441
      %p443 = scmp.ne.s32.totalorder %s435, %s437
      %p444 = scmp.eq.s32.totalorder %s33, 3
      %p445 = por %p443, %p444
      %p446 = scmp.ne.s32.totalorder %s437, %s438
      %p447 = scmp.eq.s32.totalorder %s33, 0
      %p448 = por %p446, %p447
      %p449 = scmp.ne.s32.totalorder %s437, %s438
      %p450 = scmp.eq.s32.totalorder %s34, 3
      %p451 = por %p449, %p450
      %p453 = scmp.ne.s32.totalorder %s438, %s452
      %p454 = scmp.eq.s32.totalorder %s34, 0
      %p455 = por %p453, %p454
      %s457 = sadd.s32 %s456, 1
      %p460 = scmp.eq.s32.totalorder %s28, 3
      %p461 = scmp.ne.s32.totalorder %s456, %s458
      %p462 = scmp.eq.s32.totalorder %s28, 0
      %p463 = por %p461, %p462
      %p464 = scmp.ne.s32.totalorder %s456, %s458
      %p465 = scmp.eq.s32.totalorder %s33, 3
      %p466 = por %p464, %p465
      %p467 = scmp.ne.s32.totalorder %s458, %s459
      %p468 = scmp.eq.s32.totalorder %s33, 0
      %p469 = por %p467, %p468
      %p470 = scmp.ne.s32.totalorder %s458, %s459
      %p471 = scmp.eq.s32.totalorder %s34, 3
      %p472 = por %p470, %p471
      %p474 = scmp.ne.s32.totalorder %s459, %s473
      %p475 = scmp.eq.s32.totalorder %s34, 0
      %p476 = por %p474, %p475
      %p477 = scmp.le.s32.totalorder 1, %s28
      %p478 = scmp.lt.s32.totalorder %s28, 5
      %p479 = pnand %p477, %p478
      %p480 = pneg %p479
      // Predicated region
      $region9: #{wrapper_gpt2_forward.1} parent=5 // pred_check
        _
      $region10: #{wrapper_gpt2_forward.1} parent=5 // pred_check_branch
        %482 = sbr.rel (%p479) target = $region12
      $region11: #{wrapper_gpt2_forward.1} parent=5 // pred_region
        %s483 = ssub.s32 %s28, 1
        // Predicated region
        $region13: #{wrapper_gpt2_forward.1} parent=11 // pred_check
          %p484 = pneg %p49
        $region14: #{wrapper_gpt2_forward.1} parent=11 // pred_check_branch
          %486 = sbr.rel (%p484) target = $region16
        $region15: #{wrapper_gpt2_forward.1} parent=11 // pred_region
          _
        $region16: #{wrapper_gpt2_forward.1} parent=11 // pred_fallthru
          _
        // Predicated region
        $region17: #{wrapper_gpt2_forward.1} parent=11 // pred_check
          %p487 = pneg %p70
        $region18: #{wrapper_gpt2_forward.1} parent=11 // pred_check_branch
          %489 = sbr.rel (%p487) target = $region20
        $region19: #{wrapper_gpt2_forward.1} parent=11 // pred_region
          _
        $region20: #{wrapper_gpt2_forward.1} parent=11 // pred_fallthru
          _
        // Predicated region
        $region21: #{wrapper_gpt2_forward.1} parent=11 // pred_check
          %p490 = pneg %p91
        $region22: #{wrapper_gpt2_forward.1} parent=11 // pred_check_branch
          %492 = sbr.rel (%p490) target = $region24
        $region23: #{wrapper_gpt2_forward.1} parent=11 // pred_region
          _
        $region24: #{wrapper_gpt2_forward.1} parent=11 // pred_fallthru
          _
        // Predicated region
        $region25: #{wrapper_gpt2_forward.1} parent=11 // pred_check
          %p493 = pneg %p112
        $region26: #{wrapper_gpt2_forward.1} parent=11 // pred_check_branch
          %495 = sbr.rel (%p493) target = $region28
        $region27: #{wrapper_gpt2_forward.1} parent=11 // pred_region
          _
        $region28: #{wrapper_gpt2_forward.1} parent=11 // pred_fallthru
          _
        // Predicated region
        $region29: #{wrapper_gpt2_forward.1} parent=11 // pred_check
          %p496 = pneg %p133
        $region30: #{wrapper_gpt2_forward.1} parent=11 // pred_check_branch
          %498 = sbr.rel (%p496) target = $region32
        $region31: #{wrapper_gpt2_forward.1} parent=11 // pred_region
          _
        $region32: #{wrapper_gpt2_forward.1} parent=11 // pred_fallthru
          _
        // Predicated region
        $region33: #{wrapper_gpt2_forward.1} parent=11 // pred_check
          %p499 = pneg %p154
        $region34: #{wrapper_gpt2_forward.1} parent=11 // pred_check_branch
          %501 = sbr.rel (%p499) target = $region36
        $region35: #{wrapper_gpt2_forward.1} parent=11 // pred_region
          _
        $region36: #{wrapper_gpt2_forward.1} parent=11 // pred_fallthru
          _
        // Predicated region
        $region37: #{wrapper_gpt2_forward.1} parent=11 // pred_check
          %p502 = pneg %p175
        $region38: #{wrapper_gpt2_forward.1} parent=11 // pred_check_branch
          %504 = sbr.rel (%p502) target = $region40
        $region39: #{wrapper_gpt2_forward.1} parent=11 // pred_region
          _
        $region40: #{wrapper_gpt2_forward.1} parent=11 // pred_fallthru
          _
        // Predicated region
        $region41: #{wrapper_gpt2_forward.1} parent=11 // pred_check
          %p505 = pneg %p196
        $region42: #{wrapper_gpt2_forward.1} parent=11 // pred_check_branch
          %507 = sbr.rel (%p505) target = $region44
        $region43: #{wrapper_gpt2_forward.1} parent=11 // pred_region
          _
        $region44: #{wrapper_gpt2_forward.1} parent=11 // pred_fallthru
          _
        // Predicated region
        $region45: #{wrapper_gpt2_forward.1} parent=11 // pred_check
          %p508 = pneg %p217
        $region46: #{wrapper_gpt2_forward.1} parent=11 // pred_check_branch
          %510 = sbr.rel (%p508) target = $region48
        $region47: #{wrapper_gpt2_forward.1} parent=11 // pred_region
          _
        $region48: #{wrapper_gpt2_forward.1} parent=11 // pred_fallthru
          _
        // Predicated region
        $region49: #{wrapper_gpt2_forward.1} parent=11 // pred_check
          %p511 = pneg %p238
        $region50: #{wrapper_gpt2_forward.1} parent=11 // pred_check_branch
          %513 = sbr.rel (%p511) target = $region52
        $region51: #{wrapper_gpt2_forward.1} parent=11 // pred_region
          _
        $region52: #{wrapper_gpt2_forward.1} parent=11 // pred_fallthru
          _
        // Predicated region
        $region53: #{wrapper_gpt2_forward.1} parent=11 // pred_check
          %p514 = pneg %p259
        $region54: #{wrapper_gpt2_forward.1} parent=11 // pred_check_branch
          %516 = sbr.rel (%p514) target = $region56
        $region55: #{wrapper_gpt2_forward.1} parent=11 // pred_region
          _
        $region56: #{wrapper_gpt2_forward.1} parent=11 // pred_fallthru
          _
        // Predicated region
        $region57: #{wrapper_gpt2_forward.1} parent=11 // pred_check
          %p517 = pneg %p280
        $region58: #{wrapper_gpt2_forward.1} parent=11 // pred_check_branch
          %519 = sbr.rel (%p517) target = $region60
        $region59: #{wrapper_gpt2_forward.1} parent=11 // pred_region
          _
        $region60: #{wrapper_gpt2_forward.1} parent=11 // pred_fallthru
          _
        // Predicated region
        $region61: #{wrapper_gpt2_forward.1} parent=11 // pred_check
          %p520 = pneg %p301
        $region62: #{wrapper_gpt2_forward.1} parent=11 // pred_check_branch
          %522 = sbr.rel (%p520) target = $region64
        $region63: #{wrapper_gpt2_forward.1} parent=11 // pred_region
          _
        $region64: #{wrapper_gpt2_forward.1} parent=11 // pred_fallthru
          _
        // Predicated region
        $region65: #{wrapper_gpt2_forward.1} parent=11 // pred_check
          %p523 = pneg %p322
        $region66: #{wrapper_gpt2_forward.1} parent=11 // pred_check_branch
          %525 = sbr.rel (%p523) target = $region68
        $region67: #{wrapper_gpt2_forward.1} parent=11 // pred_region
          _
        $region68: #{wrapper_gpt2_forward.1} parent=11 // pred_fallthru
          _
        // Predicated region
        $region69: #{wrapper_gpt2_forward.1} parent=11 // pred_check
          %p526 = pneg %p343
        $region70: #{wrapper_gpt2_forward.1} parent=11 // pred_check_branch
          %528 = sbr.rel (%p526) target = $region72
        $region71: #{wrapper_gpt2_forward.1} parent=11 // pred_region
          _
        $region72: #{wrapper_gpt2_forward.1} parent=11 // pred_fallthru
          _
        // Predicated region
        $region73: #{wrapper_gpt2_forward.1} parent=11 // pred_check
          %p529 = pneg %p364
        $region74: #{wrapper_gpt2_forward.1} parent=11 // pred_check_branch
          %531 = sbr.rel (%p529) target = $region76
        $region75: #{wrapper_gpt2_forward.1} parent=11 // pred_region
          _
        $region76: #{wrapper_gpt2_forward.1} parent=11 // pred_fallthru
          _
        // Predicated region
        $region77: #{wrapper_gpt2_forward.1} parent=11 // pred_check
          %p532 = pneg %p385
        $region78: #{wrapper_gpt2_forward.1} parent=11 // pred_check_branch
          %534 = sbr.rel (%p532) target = $region80
        $region79: #{wrapper_gpt2_forward.1} parent=11 // pred_region
          _
        $region80: #{wrapper_gpt2_forward.1} parent=11 // pred_fallthru
          _
        // Predicated region
        $region81: #{wrapper_gpt2_forward.1} parent=11 // pred_check
          %p535 = pneg %p406
        $region82: #{wrapper_gpt2_forward.1} parent=11 // pred_check_branch
          %537 = sbr.rel (%p535) target = $region84
        $region83: #{wrapper_gpt2_forward.1} parent=11 // pred_region
          _
        $region84: #{wrapper_gpt2_forward.1} parent=11 // pred_fallthru
          _
        // Predicated region
        $region85: #{wrapper_gpt2_forward.1} parent=11 // pred_check
          %p538 = pneg %p427
        $region86: #{wrapper_gpt2_forward.1} parent=11 // pred_check_branch
          %540 = sbr.rel (%p538) target = $region88
        $region87: #{wrapper_gpt2_forward.1} parent=11 // pred_region
          _
        $region88: #{wrapper_gpt2_forward.1} parent=11 // pred_fallthru
          _
      $region12: #{wrapper_gpt2_forward.1} parent=5 // pred_fallthru
        _
      %p541 = scmp.lt.s32.totalorder %s28, 4
      // Predicated region
      $region89: #{wrapper_gpt2_forward.1} parent=5 // pred_check
        %p542 = pneg %p541
      $region90: #{wrapper_gpt2_forward.1} parent=5 // pred_check_branch
        %544 = sbr.rel (%p542) target = $region92
      $region91: #{wrapper_gpt2_forward.1} parent=5 // pred_region
        _
      $region92: #{wrapper_gpt2_forward.1} parent=5 // pred_fallthru
        _
      %p545 = scmp.le.s32.totalorder 1, %s28
      %p546 = scmp.lt.s32.totalorder %s28, 5
      %p547 = pnand %p545, %p546
      %p548 = pneg %p547
      // Predicated region
      $region93: #{wrapper_gpt2_forward.1} parent=5 // pred_check
        _
      $region94: #{wrapper_gpt2_forward.1} parent=5 // pred_check_branch
        %550 = sbr.rel (%p547) target = $region96
      $region95: #{wrapper_gpt2_forward.1} parent=5 // pred_region
        %s551 = ssub.s32 %s28, 1
        %p552 = pneg %p49
        %p553 = pneg %p46
        %p554 = pneg %p70
        %p555 = pneg %p67
        %p556 = pneg %p91
        %p557 = pneg %p88
        %p558 = pneg %p112
        %p559 = pneg %p109
        %p560 = pneg %p133
        %p561 = pneg %p130
        %p562 = pneg %p154
        %p563 = pneg %p151
        %p564 = pneg %p175
        %p565 = pneg %p172
        %p566 = pneg %p196
        %p567 = pneg %p193
        %p568 = pneg %p217
        %p569 = pneg %p214
        %p570 = pneg %p238
        %p571 = pneg %p235
        %p572 = pneg %p259
        %p573 = pneg %p256
        %p574 = pneg %p280
        %p575 = pneg %p277
        %p576 = pneg %p301
        %p577 = pneg %p298
        %p578 = pneg %p322
        %p579 = pneg %p319
        %p580 = pneg %p343
        %p581 = pneg %p340
        %p582 = pneg %p364
        %p583 = pneg %p361
        %p584 = pneg %p385
        %p585 = pneg %p382
        %p586 = pneg %p406
        %p587 = pneg %p403
        %p588 = pneg %p427
        %p589 = pneg %p424
        %p590 = pneg %p448
        %p591 = pneg %p445
        %p592 = pneg %p469
        %p593 = pneg %p466
        %s595 = sadd.s32 %s33, 4
        %p596 = scmp.eq.s32.totalorder %s33, 0
        // Predicated region
        $region97: #{wrapper_gpt2_forward.1} parent=95 // pred_check
          %p597 = pneg %p596
        $region98: #{wrapper_gpt2_forward.1} parent=95 // pred_check_branch
          %599 = sbr.rel (%p597) target = $region100
        $region99: #{wrapper_gpt2_forward.1} parent=95 // pred_region
          %v600 = vld [vmem:[%s1] sm:$0xff]
          %v601 = vld [vmem:[%s1 + $0x8] sm:$0xff]
          %602 = vst [vmem:[#allocation2] sm:$0xff] %v600
          %603 = vst [vmem:[#allocation2 + $0x8] sm:$0xff] %v601
        $region100: #{wrapper_gpt2_forward.1} parent=95 // pred_fallthru
          _
        %v604 = vld [vmem:[%s0] sm:$0xff]
        %v605 = vld [vmem:[%s0 + $0x8] sm:$0xff]
        %v606 = vld [vmem:[#allocation2] sm:$0xff]
        %v607 = vld [vmem:[#allocation2 + $0x8] sm:$0xff]
        %v608 = vpack.c.bf16 %v607, %v606
        %v609 = vld [vmem:[%s3] sm:$0xf]
        %v610 = vld [vmem:[%s3 + $0x4] sm:$0xf]
        %v611 = vld [vmem:[%s3 + $0x8] sm:$0xf]
        %v612 = vld [vmem:[%s3 + $0xc] sm:$0xf]
        %v613 = vld [vmem:[%s3 + $0x10] sm:$0xf]
        %v614 = vld [vmem:[%s3 + $0x14] sm:$0xf]
        %v615 = vld [vmem:[%s3 + $0x18] sm:$0xf]
        %v616 = vld [vmem:[%s3 + $0x1c] sm:$0xf]
        %v617 = vld [vmem:[%s3 + $0x20] sm:$0xf]
        %v618 = vld [vmem:[%s3 + $0x24] sm:$0xf]
        %v619 = vld [vmem:[%s3 + $0x28] sm:$0xf]
        %v620 = vld [vmem:[%s3 + $0x2c] sm:$0xf]
        %v621 = vld [vmem:[%s3 + $0x30] sm:$0xf]
        %v622 = vld [vmem:[%s3 + $0x34] sm:$0xf]
        %v623 = vld [vmem:[%s3 + $0x38] sm:$0xf]
        %v624 = vld [vmem:[%s3 + $0x3c] sm:$0xf]
        %v625 = vld [vmem:[%s2] sm:$0xff]
        %v626 = vld [vmem:[%s2 + $0x8] sm:$0xff]
        %v643 = vunpack.c.l.b16 %v609
        %v644 = vunpack.c.l.b16 %v610
        %v645 = vunpack.c.l.b16 %v611
        %v646 = vunpack.c.l.b16 %v612
        %v647 = vunpack.c.l.b16 %v613
        %v648 = vunpack.c.l.b16 %v614
        %v649 = vunpack.c.l.b16 %v615
        %v650 = vunpack.c.l.b16 %v616
        %v651 = vunpack.c.l.b16 %v617
        %v652 = vunpack.c.l.b16 %v618
        %v653 = vunpack.c.l.b16 %v619
        %v654 = vunpack.c.l.b16 %v620
        %v655 = vunpack.c.l.b16 %v621
        %v656 = vunpack.c.l.b16 %v622
        %v657 = vunpack.c.l.b16 %v623
        %v658 = vunpack.c.l.b16 %v624
        %v659 = vpack.c.b16 %v644, %v643
        %v660 = vpack.c.b16 %v646, %v645
        %v661 = vpack.c.b16 %v648, %v647
        %v662 = vpack.c.b16 %v650, %v649
        %v663 = vpack.c.b16 %v652, %v651
        %v664 = vpack.c.b16 %v654, %v653
        %v665 = vpack.c.b16 %v656, %v655
        %v666 = vpack.c.b16 %v658, %v657
        %675 = vmatprep.subr.bf16.mxu0 0
        %676 = vmatpush1.bf16.msra.mxu0 %v666
        %677 = vmatprep.subr.bf16.mxu0 0
        %678 = vmatpush1.bf16.msra.mxu0 %v665
        %679 = vmatprep.subr.bf16.mxu0 0
        %680 = vmatpush1.bf16.msra.mxu0 %v664
        %681 = vmatprep.subr.bf16.mxu0 0
        %682 = vmatpush1.bf16.msra.mxu0 %v663
        %683 = vmatprep.subr.bf16.mxu0 0
        %684 = vmatpush1.bf16.msra.mxu0 %v662
        %685 = vmatprep.subr.bf16.mxu0 0
        %686 = vmatpush1.bf16.msra.mxu0 %v661
        %687 = vmatprep.subr.bf16.mxu0 0
        %688 = vmatpush1.bf16.msra.mxu0 %v660
        %689 = vmatprep.subr.bf16.mxu0 0
        %690 = vmatpush1.bf16.msra.mxu0 %v659
        %691 = vmatprep.subr.bf16.mxu0 0
        %692 = vmatpush2.bf16.msra.mxu0 0
        %693 = vmatprep.subr.bf16.mxu0 0
        %694 = vmatpush2.bf16.msra.mxu0 0
        %695 = vmatprep.subr.bf16.mxu0 0
        %696 = vmatpush2.bf16.msra.mxu0 0
        %697 = vmatprep.subr.bf16.mxu0 0
        %698 = vmatpush2.bf16.msra.mxu0 0
        %699 = vmatprep.subr.bf16.mxu0 0
        %700 = vmatpush2.bf16.msra.mxu0 0
        %701 = vmatprep.subr.bf16.mxu0 0
        %702 = vmatpush2.bf16.msra.mxu0 0
        %703 = vmatprep.subr.bf16.mxu0 0
        %704 = vmatpush2.bf16.msra.mxu0 0
        %705 = vmatprep.subr.bf16.mxu0 0
        %706 = vmatpush2.bf16.msra.mxu0 0
        %707 = vmatprep.mubr.bf16.mxu0 0
        %708 = vmatmul.mubr.bf16.gmra.mxu0 %v608
        %v709 = vpop.f32.mrf.mxu0
        %v710 = vadd.f32 %v625, %v709
        %v711 = vpop.f32.mrf.mxu0
        %v712 = vpop.f32.mrf.mxu0
        %v713 = vadd.f32 %v626, %v712
        %v714 = vpop.f32.mrf.mxu0
        %715 = vdwg.mxu0
        %v716 = vld [vmem:[%s4] sm:$0x1]
        %v717 = vld [vmem:[%s5] sm:$0x1]
        %vm718 = vcmask 523264
        %v719 = vsel %vm718, %v710, 0.0
        %720 = vadd.xlane.f32.xlu0 %v719
        %v721 = vpop.xlane.xlu0 %720
        %v722 = vsel %vm718, %v713, 0.0
        %723 = vadd.xlane.f32.xlu0 %v722
        %v724 = vpop.xlane.xlu0 %723
        %v725 = vrcp.pop 64.0
        %v726 = vmul.f32 %v721, %v725
        %v727 = vmul.f32 %v724, %v725
        %v728 = vsub.f32 %v710, %v726
        %v729 = vsub.f32 %v713, %v727
        %v730 = vmul.f32 %v728, %v728
        %v731 = vmul.f32 %v729, %v729
        %v732 = vsel %vm718, %v730, 0.0
        %733 = vadd.xlane.f32.xlu0 %v732
        %v734 = vpop.xlane.xlu0 %733
        %v735 = vsel %vm718, %v731, 0.0
        %736 = vadd.xlane.f32.xlu0 %v735
        %v737 = vpop.xlane.xlu0 %736
        %v738 = vmul.f32 %v734, %v725
        %v739 = vmul.f32 %v737, %v725
        %v740 = vadd.f32 %v738, 1e-05
        %v741 = vadd.f32 %v739, 1e-05
        %v742 = vrsqrt.pop %v740
        %v743 = vrsqrt.pop %v741
        %v744 = vmul.f32 %v728, %v742
        %v745 = vmul.f32 %v729, %v743
        %v747 = vlaneseq
        %v748 = vshrl.u32 %v747, 7
        %v749 = vsub.s32 0, %v748
        %v750 = vrot.slane %v716, %v749
        %v752 = vmul.f32 %v744, %v750
        %v753 = vmul.f32 %v745, %v750
        %v755 = vlaneseq
        %v756 = vshrl.u32 %v755, 7
        %v757 = vsub.s32 0, %v756
        %v758 = vrot.slane %v717, %v757
        %v760 = vadd.f32 %v752, %v758
        %v761 = vadd.f32 %v753, %v758
        %v762 = vpack.c.bf16 %v761, %v760
        %v763 = vld [vmem:[%s6] sm:$0xff]
        %v764 = vld [vmem:[%s6 + $0x8] sm:$0xff]
        %v765 = vld [vmem:[%s6 + $0x10] sm:$0xff]
        %v766 = vld [vmem:[%s6 + $0x18] sm:$0xff]
        %v767 = vld [vmem:[%s6 + $0x20] sm:$0xff]
        %v768 = vld [vmem:[%s6 + $0x28] sm:$0xff]
        %v769 = vld [vmem:[%s6 + $0x30] sm:$0xff]
        %v770 = vld [vmem:[%s6 + $0x38] sm:$0xff]
        %v771 = vld [vmem:[%s7] sm:$0x3]
        %v773 = vlaneseq
        %v774 = vshrl.u32 %v773, 7
        %v775 = vsub.s32 0, %v774
        %v776 = vrot.slane %v771, %v775
        %v777 = vlaneseq
        %v778 = vshrl.u32 %v777, 7
        %v779 = vsub.s32 1, %v778
        %v780 = vrot.slane %v771, %v779
        %v791 = vunpack.c.l.b16 %v763
        %v792 = vunpack.c.h.b16 %v763
        %v793 = vunpack.c.l.b16 %v764
        %v794 = vunpack.c.h.b16 %v764
        %v795 = vunpack.c.l.b16 %v765
        %v796 = vunpack.c.h.b16 %v765
        %v797 = vunpack.c.l.b16 %v766
        %v798 = vunpack.c.h.b16 %v766
        %v799 = vunpack.c.l.b16 %v767
        %v800 = vunpack.c.h.b16 %v767
        %v801 = vunpack.c.l.b16 %v768
        %v802 = vunpack.c.h.b16 %v768
        %v803 = vunpack.c.l.b16 %v769
        %v804 = vunpack.c.h.b16 %v769
        %v805 = vunpack.c.l.b16 %v770
        %v806 = vunpack.c.h.b16 %v770
        %v807 = vpack.c.b16 %v793, %v791
        %v808 = vpack.c.b16 %v794, %v792
        %v809 = vpack.c.b16 %v797, %v795
        %v810 = vpack.c.b16 %v798, %v796
        %v811 = vpack.c.b16 %v801, %v799
        %v812 = vpack.c.b16 %v802, %v800
        %v813 = vpack.c.b16 %v805, %v803
        %v814 = vpack.c.b16 %v806, %v804
        %v824 = vsel %vm718, %v762, 0
        %826 = vmatprep.subr.bf16.mxu0 0
        %827 = vmatpush1.bf16.msra.mxu0 0
        %828 = vmatprep.subr.bf16.mxu0 0
        %829 = vmatpush1.bf16.msra.mxu0 0
        %830 = vmatprep.subr.bf16.mxu0 0
        %831 = vmatpush1.bf16.msra.mxu0 0
        %832 = vmatprep.subr.bf16.mxu0 0
        %833 = vmatpush1.bf16.msra.mxu0 0
        %834 = vmatprep.subr.bf16.mxu0 %v814
        %835 = vmatpush1.bf16.msra.mxu0 %v813
        %836 = vmatprep.subr.bf16.mxu0 %v812
        %837 = vmatpush1.bf16.msra.mxu0 %v811
        %838 = vmatprep.subr.bf16.mxu0 %v810
        %839 = vmatpush1.bf16.msra.mxu0 %v809
        %840 = vmatprep.subr.bf16.mxu0 %v808
        %841 = vmatpush1.bf16.msra.mxu0 %v807
        %842 = vmatprep.subr.bf16.mxu0 0
        %843 = vmatpush2.bf16.msra.mxu0 0
        %844 = vmatprep.subr.bf16.mxu0 0
        %845 = vmatpush2.bf16.msra.mxu0 0
        %846 = vmatprep.subr.bf16.mxu0 0
        %847 = vmatpush2.bf16.msra.mxu0 0
        %848 = vmatprep.subr.bf16.mxu0 0
        %849 = vmatpush2.bf16.msra.mxu0 0
        %850 = vmatprep.subr.bf16.mxu0 0
        %851 = vmatpush2.bf16.msra.mxu0 0
        %852 = vmatprep.subr.bf16.mxu0 0
        %853 = vmatpush2.bf16.msra.mxu0 0
        %854 = vmatprep.subr.bf16.mxu0 0
        %855 = vmatpush2.bf16.msra.mxu0 0
        %856 = vmatprep.subr.bf16.mxu0 0
        %857 = vmatpush2.bf16.msra.mxu0 0
        %858 = vmatprep.mubr.bf16.mxu0 0
        %859 = vmatmul.mubr.bf16.gmra.mxu0 %v824
        %v860 = vpop.f32.mrf.mxu0
        %v861 = vadd.f32 %v776, %v860
        %v862 = vpop.f32.mrf.mxu0
        %v863 = vadd.f32 %v780, %v862
        %v864 = vpop.f32.mrf.mxu0
        %v865 = vadd.f32 %v776, %v864
        %v866 = vpop.f32.mrf.mxu0
        %v867 = vadd.f32 %v780, %v866
        %868 = vdwg.mxu0
        %v869 = vpack.c.bf16 %v865, %v861
        %v870 = vpack.c.bf16 %v867, %v863
        %872 = vrot.lane.b32.xlu0 %v869, 64
        %v873 = vpop.permute.xlu0 %872
        %vm874 = vcmask 261120
        %v876 = vsel %vm874, %v869, 0
        %v879 = vsel %vm874, %v873, 0
        %881 = vmatprep.subr.bf16.mxu0 0
        %882 = vmatpush1.bf16.xpose.msra.mxu0 0
        %883 = vmatprep.subr.bf16.mxu0 0
        %884 = vmatpush1.bf16.xpose.msra.mxu0 0
        %885 = vmatprep.subr.bf16.mxu0 0
        %886 = vmatpush1.bf16.xpose.msra.mxu0 0
        %887 = vmatprep.subr.bf16.mxu0 0
        %888 = vmatpush1.bf16.xpose.msra.mxu0 0
        %889 = vmatprep.subr.bf16.mxu0 0
        %890 = vmatpush1.bf16.xpose.msra.mxu0 0
        %891 = vmatprep.subr.bf16.mxu0 0
        %892 = vmatpush1.bf16.xpose.msra.mxu0 0
        %893 = vmatprep.subr.bf16.mxu0 0
        %894 = vmatpush1.bf16.xpose.msra.mxu0 0
        %895 = vmatprep.subr.bf16.mxu0 0
        %896 = vmatpush1.bf16.xpose.msra.mxu0 %v879
        %897 = vmatprep.subr.bf16.mxu0 0
        %898 = vmatpush2.bf16.xpose.msra.mxu0 0
        %899 = vmatprep.subr.bf16.mxu0 0
        %900 = vmatpush2.bf16.xpose.msra.mxu0 0
        %901 = vmatprep.subr.bf16.mxu0 0
        %902 = vmatpush2.bf16.xpose.msra.mxu0 0
        %903 = vmatprep.subr.bf16.mxu0 0
        %904 = vmatpush2.bf16.xpose.msra.mxu0 0
        %905 = vmatprep.subr.bf16.mxu0 0
        %906 = vmatpush2.bf16.xpose.msra.mxu0 0
        %907 = vmatprep.subr.bf16.mxu0 0
        %908 = vmatpush2.bf16.xpose.msra.mxu0 0
        %909 = vmatprep.subr.bf16.mxu0 0
        %910 = vmatpush2.bf16.xpose.msra.mxu0 0
        %911 = vmatprep.subr.bf16.mxu0 0
        %912 = vmatpush2.bf16.xpose.msra.mxu0 0
        %913 = vmatprep.mubr.bf16.mxu0 0
        %914 = vmatmul.mubr.bf16.gmra.mxu0 %v876
        %v915 = vpop.f32.mrf.mxu0
        %v916 = vadd.f32 0.0, %v915
        %v917 = vpop.f32.mrf.mxu0
        %v918 = vpop.f32.mrf.mxu0
        %v919 = vadd.f32 0.0, %v918
        %v920 = vpop.f32.mrf.mxu0
        %921 = vdwg.mxu0
        %v922 = vmul.f32 %v916, 0.17677669
        %v923 = vmul.f32 %v919, 0.17677669
        %v924 = vadd.f32 %v922, %v604
        %v925 = vadd.f32 %v923, %v605
        %vm926 = vcmask 130048
        %v927 = vsel %vm926, %v924, -inf
        %928 = vmax.xlane.f32.xlu0 %v927
        %v929 = vpop.xlane.xlu0 %928
        %v930 = vsel %vm926, %v925, -inf
        %931 = vmax.xlane.f32.xlu0 %v930
        %v932 = vpop.xlane.xlu0 %931
        %v933 = vsub.f32 %v924, %v929
        %v934 = vsub.f32 %v925, %v932
        %v935 = vmul.f32 %v933, 1.442695
        %v936 = vpow.pop %v935
        %v937 = vmul.f32 %v934, 1.442695
        %v938 = vpow.pop %v937
        %v939 = vsel %vm926, %v936, 0.0
        %940 = vadd.xlane.f32.xlu0 %v939
        %v941 = vpop.xlane.xlu0 %940
        %v942 = vsel %vm926, %v938, 0.0
        %943 = vadd.xlane.f32.xlu0 %v942
        %v944 = vpop.xlane.xlu0 %943
        %v945 = vrcp.pop %v941
        %v946 = vmul.f32 %v936, %v945
        %v947 = vrcp.pop %v944
        %v948 = vmul.f32 %v938, %v947
        %v949 = vpack.c.bf16 %v948, %v946
        %v951 = vsel %vm926, %v949, 0
        %953 = vmatprep.subr.bf16.mxu0 0
        %954 = vmatpush1.bf16.msra.mxu0 0
        %955 = vmatprep.subr.bf16.mxu0 0
        %956 = vmatpush1.bf16.msra.mxu0 0
        %957 = vmatprep.subr.bf16.mxu0 0
        %958 = vmatpush1.bf16.msra.mxu0 0
        %959 = vmatprep.subr.bf16.mxu0 0
        %960 = vmatpush1.bf16.msra.mxu0 0
        %961 = vmatprep.subr.bf16.mxu0 0
        %962 = vmatpush1.bf16.msra.mxu0 0
        %963 = vmatprep.subr.bf16.mxu0 0
        %964 = vmatpush1.bf16.msra.mxu0 0
        %965 = vmatprep.subr.bf16.mxu0 0
        %966 = vmatpush1.bf16.msra.mxu0 0
        %967 = vmatprep.subr.bf16.mxu0 0
        %968 = vmatpush1.bf16.msra.mxu0 %v870
        %969 = vmatprep.subr.bf16.mxu0 0
        %970 = vmatpush2.bf16.msra.mxu0 0
        %971 = vmatprep.subr.bf16.mxu0 0
        %972 = vmatpush2.bf16.msra.mxu0 0
        %973 = vmatprep.subr.bf16.mxu0 0
        %974 = vmatpush2.bf16.msra.mxu0 0
        %975 = vmatprep.subr.bf16.mxu0 0
        %976 = vmatpush2.bf16.msra.mxu0 0
        %977 = vmatprep.subr.bf16.mxu0 0
        %978 = vmatpush2.bf16.msra.mxu0 0
        %979 = vmatprep.subr.bf16.mxu0 0
        %980 = vmatpush2.bf16.msra.mxu0 0
        %981 = vmatprep.subr.bf16.mxu0 0
        %982 = vmatpush2.bf16.msra.mxu0 0
        %983 = vmatprep.subr.bf16.mxu0 0
        %984 = vmatpush2.bf16.msra.mxu0 0
        %985 = vmatprep.mubr.bf16.mxu0 0
        %986 = vmatmul.mubr.bf16.gmra.mxu0 %v951
        %v987 = vpop.f32.mrf.mxu0
        %v988 = vadd.f32 0.0, %v987
        %v989 = vpop.f32.mrf.mxu0
        %v990 = vpop.f32.mrf.mxu0
        %v991 = vadd.f32 0.0, %v990
        %v992 = vpop.f32.mrf.mxu0
        %993 = vdwg.mxu0
        %994 = vrot.lane.b32.xlu0 %v869, 96
        %v995 = vpop.permute.xlu0 %994
        %996 = vrot.lane.b32.xlu0 %v869, 32
        %v997 = vpop.permute.xlu0 %996
        %v999 = vsel %vm874, %v995, 0
        %v1002 = vsel %vm874, %v997, 0
        %1004 = vmatprep.subr.bf16.mxu0 0
        %1005 = vmatpush1.bf16.xpose.msra.mxu0 0
        %1006 = vmatprep.subr.bf16.mxu0 0
        %1007 = vmatpush1.bf16.xpose.msra.mxu0 0
        %1008 = vmatprep.subr.bf16.mxu0 0
        %1009 = vmatpush1.bf16.xpose.msra.mxu0 0
        %1010 = vmatprep.subr.bf16.mxu0 0
        %1011 = vmatpush1.bf16.xpose.msra.mxu0 0
        %1012 = vmatprep.subr.bf16.mxu0 0
        %1013 = vmatpush1.bf16.xpose.msra.mxu0 0
        %1014 = vmatprep.subr.bf16.mxu0 0
        %1015 = vmatpush1.bf16.xpose.msra.mxu0 0
        %1016 = vmatprep.subr.bf16.mxu0 0
        %1017 = vmatpush1.bf16.xpose.msra.mxu0 0
        %1018 = vmatprep.subr.bf16.mxu0 0
        %1019 = vmatpush1.bf16.xpose.msra.mxu0 %v1002
        %1020 = vmatprep.subr.bf16.mxu0 0
        %1021 = vmatpush2.bf16.xpose.msra.mxu0 0
        %1022 = vmatprep.subr.bf16.mxu0 0
        %1023 = vmatpush2.bf16.xpose.msra.mxu0 0
        %1024 = vmatprep.subr.bf16.mxu0 0
        %1025 = vmatpush2.bf16.xpose.msra.mxu0 0
        %1026 = vmatprep.subr.bf16.mxu0 0
        %1027 = vmatpush2.bf16.xpose.msra.mxu0 0
        %1028 = vmatprep.subr.bf16.mxu0 0
        %1029 = vmatpush2.bf16.xpose.msra.mxu0 0
        %1030 = vmatprep.subr.bf16.mxu0 0
        %1031 = vmatpush2.bf16.xpose.msra.mxu0 0
        %1032 = vmatprep.subr.bf16.mxu0 0
        %1033 = vmatpush2.bf16.xpose.msra.mxu0 0
        %1034 = vmatprep.subr.bf16.mxu0 0
        %1035 = vmatpush2.bf16.xpose.msra.mxu0 0
        %1036 = vmatprep.mubr.bf16.mxu0 0
        %1037 = vmatmul.mubr.bf16.gmra.mxu0 %v999
        %v1038 = vpop.f32.mrf.mxu0
        %v1039 = vadd.f32 0.0, %v1038
        %v1040 = vpop.f32.mrf.mxu0
        %v1041 = vpop.f32.mrf.mxu0
        %v1042 = vadd.f32 0.0, %v1041
        %v1043 = vpop.f32.mrf.mxu0
        %1044 = vdwg.mxu0
        %v1045 = vmul.f32 %v1039, 0.17677669
        %v1046 = vmul.f32 %v1042, 0.17677669
        %v1047 = vadd.f32 %v1045, %v604
        %v1048 = vadd.f32 %v1046, %v605
        %v1049 = vsel %vm926, %v1047, -inf
        %1050 = vmax.xlane.f32.xlu0 %v1049
        %v1051 = vpop.xlane.xlu0 %1050
        %v1052 = vsel %vm926, %v1048, -inf
        %1053 = vmax.xlane.f32.xlu0 %v1052
        %v1054 = vpop.xlane.xlu0 %1053
        %v1055 = vsub.f32 %v1047, %v1051
        %v1056 = vsub.f32 %v1048, %v1054
        %v1057 = vmul.f32 %v1055, 1.442695
        %v1058 = vpow.pop %v1057
        %v1059 = vmul.f32 %v1056, 1.442695
        %v1060 = vpow.pop %v1059
        %v1061 = vsel %vm926, %v1058, 0.0
        %1062 = vadd.xlane.f32.xlu0 %v1061
        %v1063 = vpop.xlane.xlu0 %1062
        %v1064 = vsel %vm926, %v1060, 0.0
        %1065 = vadd.xlane.f32.xlu0 %v1064
        %v1066 = vpop.xlane.xlu0 %1065
        %v1067 = vrcp.pop %v1063
        %v1068 = vmul.f32 %v1058, %v1067
        %v1069 = vrcp.pop %v1066
        %v1070 = vmul.f32 %v1060, %v1069
        %v1071 = vpack.c.bf16 %v1070, %v1068
        %1073 = vrot.lane.b32.xlu0 %v870, 96
        %v1074 = vpop.permute.xlu0 %1073
        %v1077 = vsel %vm926, %v1071, 0
        %1079 = vmatprep.subr.bf16.mxu0 0
        %1080 = vmatpush1.bf16.msra.mxu0 0
        %1081 = vmatprep.subr.bf16.mxu0 0
        %1082 = vmatpush1.bf16.msra.mxu0 0
        %1083 = vmatprep.subr.bf16.mxu0 0
        %1084 = vmatpush1.bf16.msra.mxu0 0
        %1085 = vmatprep.subr.bf16.mxu0 0
        %1086 = vmatpush1.bf16.msra.mxu0 0
        %1087 = vmatprep.subr.bf16.mxu0 0
        %1088 = vmatpush1.bf16.msra.mxu0 0
        %1089 = vmatprep.subr.bf16.mxu0 0
        %1090 = vmatpush1.bf16.msra.mxu0 0
        %1091 = vmatprep.subr.bf16.mxu0 0
        %1092 = vmatpush1.bf16.msra.mxu0 0
        %1093 = vmatprep.subr.bf16.mxu0 0
        %1094 = vmatpush1.bf16.msra.mxu0 %v1074
        %1095 = vmatprep.subr.bf16.mxu0 0
        %1096 = vmatpush2.bf16.msra.mxu0 0
        %1097 = vmatprep.subr.bf16.mxu0 0
        %1098 = vmatpush2.bf16.msra.mxu0 0
        %1099 = vmatprep.subr.bf16.mxu0 0
        %1100 = vmatpush2.bf16.msra.mxu0 0
        %1101 = vmatprep.subr.bf16.mxu0 0
        %1102 = vmatpush2.bf16.msra.mxu0 0
        %1103 = vmatprep.subr.bf16.mxu0 0
        %1104 = vmatpush2.bf16.msra.mxu0 0
        %1105 = vmatprep.subr.bf16.mxu0 0
        %1106 = vmatpush2.bf16.msra.mxu0 0
        %1107 = vmatprep.subr.bf16.mxu0 0
        %1108 = vmatpush2.bf16.msra.mxu0 0
        %1109 = vmatprep.subr.bf16.mxu0 0
        %1110 = vmatpush2.bf16.msra.mxu0 0
        %1111 = vmatprep.mubr.bf16.mxu0 0
        %1112 = vmatmul.mubr.bf16.gmra.mxu0 %v1077
        %v1113 = vpop.f32.mrf.mxu0
        %v1114 = vadd.f32 0.0, %v1113
        %v1115 = vpop.f32.mrf.mxu0
        %v1116 = vpop.f32.mrf.mxu0
        %v1117 = vadd.f32 0.0, %v1116
        %v1118 = vpop.f32.mrf.mxu0
        %1119 = vdwg.mxu0
        %1122 = vrot.lane.b32.xlu0 %v1114, 32
        %v1123 = vpop.permute.xlu0 %1122
        %1124 = vrot.lane.b32.xlu0 %v1117, 32
        %v1125 = vpop.permute.xlu0 %1124
        %v1128 = vsel %vm874, %v988, %v1123
        %v1129 = vsel %vm874, %v991, %v1125
        %v1130 = vpack.c.bf16 %v1129, %v1128
        %v1131 = vld [vmem:[%s8] sm:$0xf]
        %v1132 = vld [vmem:[%s8 + $0x4] sm:$0xf]
        %v1133 = vld [vmem:[%s8 + $0x8] sm:$0xf]
        %v1134 = vld [vmem:[%s8 + $0xc] sm:$0xf]
        %v1135 = vld [vmem:[%s8 + $0x10] sm:$0xf]
        %v1136 = vld [vmem:[%s8 + $0x14] sm:$0xf]
        %v1137 = vld [vmem:[%s8 + $0x18] sm:$0xf]
        %v1138 = vld [vmem:[%s8 + $0x1c] sm:$0xf]
        %v1147 = vunpack.c.l.b16 %v1131
        %v1148 = vunpack.c.l.b16 %v1132
        %v1149 = vunpack.c.l.b16 %v1133
        %v1150 = vunpack.c.l.b16 %v1134
        %v1151 = vunpack.c.l.b16 %v1135
        %v1152 = vunpack.c.l.b16 %v1136
        %v1153 = vunpack.c.l.b16 %v1137
        %v1154 = vunpack.c.l.b16 %v1138
        %v1155 = vpack.c.b16 %v1148, %v1147
        %v1156 = vpack.c.b16 %v1150, %v1149
        %v1157 = vpack.c.b16 %v1152, %v1151
        %v1158 = vpack.c.b16 %v1154, %v1153
        %v1164 = vsel %vm718, %v1130, 0
        %1166 = vmatprep.subr.bf16.mxu0 0
        %1167 = vmatpush1.bf16.msra.mxu0 0
        %1168 = vmatprep.subr.bf16.mxu0 0
        %1169 = vmatpush1.bf16.msra.mxu0 0
        %1170 = vmatprep.subr.bf16.mxu0 0
        %1171 = vmatpush1.bf16.msra.mxu0 0
        %1172 = vmatprep.subr.bf16.mxu0 0
        %1173 = vmatpush1.bf16.msra.mxu0 0
        %1174 = vmatprep.subr.bf16.mxu0 0
        %1175 = vmatpush1.bf16.msra.mxu0 %v1158
        %1176 = vmatprep.subr.bf16.mxu0 0
        %1177 = vmatpush1.bf16.msra.mxu0 %v1157
        %1178 = vmatprep.subr.bf16.mxu0 0
        %1179 = vmatpush1.bf16.msra.mxu0 %v1156
        %1180 = vmatprep.subr.bf16.mxu0 0
        %1181 = vmatpush1.bf16.msra.mxu0 %v1155
        %1182 = vmatprep.subr.bf16.mxu0 0
        %1183 = vmatpush2.bf16.msra.mxu0 0
        %1184 = vmatprep.subr.bf16.mxu0 0
        %1185 = vmatpush2.bf16.msra.mxu0 0
        %1186 = vmatprep.subr.bf16.mxu0 0
        %1187 = vmatpush2.bf16.msra.mxu0 0
        %1188 = vmatprep.subr.bf16.mxu0 0
        %1189 = vmatpush2.bf16.msra.mxu0 0
        %1190 = vmatprep.subr.bf16.mxu0 0
        %1191 = vmatpush2.bf16.msra.mxu0 0
        %1192 = vmatprep.subr.bf16.mxu0 0
        %1193 = vmatpush2.bf16.msra.mxu0 0
        %1194 = vmatprep.subr.bf16.mxu0 0
        %1195 = vmatpush2.bf16.msra.mxu0 0
        %1196 = vmatprep.subr.bf16.mxu0 0
        %1197 = vmatpush2.bf16.msra.mxu0 0
        %1198 = vmatprep.mubr.bf16.mxu0 0
        %1199 = vmatmul.mubr.bf16.gmra.mxu0 %v1164
        %v1200 = vpop.f32.mrf.mxu0
        %v1201 = vadd.f32 0.0, %v1200
        %v1202 = vpop.f32.mrf.mxu0
        %v1203 = vpop.f32.mrf.mxu0
        %v1204 = vadd.f32 0.0, %v1203
        %v1205 = vpop.f32.mrf.mxu0
        %1206 = vdwg.mxu0
        %v1207 = vadd.f32 %v710, %v1201
        %v1208 = vadd.f32 %v713, %v1204
        %v1209 = vld [vmem:[%s9] sm:$0x1]
        %v1211 = vlaneseq
        %v1212 = vshrl.u32 %v1211, 7
        %v1213 = vsub.s32 0, %v1212
        %v1214 = vrot.slane %v1209, %v1213
        %v1216 = vadd.f32 %v1207, %v1214
        %v1217 = vadd.f32 %v1208, %v1214
        %v1218 = vld [vmem:[%s10] sm:$0x1]
        %v1219 = vld [vmem:[%s11] sm:$0x1]
        %v1220 = vsel %vm718, %v1216, 0.0
        %1221 = vadd.xlane.f32.xlu0 %v1220
        %v1222 = vpop.xlane.xlu0 %1221
        %v1223 = vsel %vm718, %v1217, 0.0
        %1224 = vadd.xlane.f32.xlu0 %v1223
        %v1225 = vpop.xlane.xlu0 %1224
        %v1226 = vmul.f32 %v1222, %v725
        %v1227 = vmul.f32 %v1225, %v725
        %v1228 = vsub.f32 %v1216, %v1226
        %v1229 = vsub.f32 %v1217, %v1227
        %v1230 = vmul.f32 %v1228, %v1228
        %v1231 = vmul.f32 %v1229, %v1229
        %v1232 = vsel %vm718, %v1230, 0.0
        %1233 = vadd.xlane.f32.xlu0 %v1232
        %v1234 = vpop.xlane.xlu0 %1233
        %v1235 = vsel %vm718, %v1231, 0.0
        %1236 = vadd.xlane.f32.xlu0 %v1235
        %v1237 = vpop.xlane.xlu0 %1236
        %v1238 = vmul.f32 %v1234, %v725
        %v1239 = vmul.f32 %v1237, %v725
        %v1240 = vadd.f32 %v1238, 1e-05
        %v1241 = vadd.f32 %v1239, 1e-05
        %v1242 = vrsqrt.pop %v1240
        %v1243 = vrsqrt.pop %v1241
        %v1244 = vmul.f32 %v1228, %v1242
        %v1245 = vmul.f32 %v1229, %v1243
        %v1247 = vlaneseq
        %v1248 = vshrl.u32 %v1247, 7
        %v1249 = vsub.s32 0, %v1248
        %v1250 = vrot.slane %v1218, %v1249
        %v1252 = vmul.f32 %v1244, %v1250
        %v1253 = vmul.f32 %v1245, %v1250
        %v1255 = vlaneseq
        %v1256 = vshrl.u32 %v1255, 7
        %v1257 = vsub.s32 0, %v1256
        %v1258 = vrot.slane %v1219, %v1257
        %v1260 = vadd.f32 %v1252, %v1258
        %v1261 = vadd.f32 %v1253, %v1258
        %v1262 = vpack.c.bf16 %v1261, %v1260
        %v1263 = vld [vmem:[%s12] sm:$0xff]
        %v1264 = vld [vmem:[%s12 + $0x8] sm:$0xff]
        %v1265 = vld [vmem:[%s12 + $0x10] sm:$0xff]
        %v1266 = vld [vmem:[%s12 + $0x18] sm:$0xff]
        %v1267 = vld [vmem:[%s12 + $0x20] sm:$0xff]
        %v1268 = vld [vmem:[%s12 + $0x28] sm:$0xff]
        %v1269 = vld [vmem:[%s12 + $0x30] sm:$0xff]
        %v1270 = vld [vmem:[%s12 + $0x38] sm:$0xff]
        %v1271 = vld [vmem:[%s13] sm:$0x3]
        %v1273 = vlaneseq
        %v1274 = vshrl.u32 %v1273, 7
        %v1275 = vsub.s32 0, %v1274
        %v1276 = vrot.slane %v1271, %v1275
        %v1277 = vlaneseq
        %v1278 = vshrl.u32 %v1277, 7
        %v1279 = vsub.s32 1, %v1278
        %v1280 = vrot.slane %v1271, %v1279
        %v1291 = vunpack.c.l.b16 %v1263
        %v1292 = vunpack.c.h.b16 %v1263
        %v1293 = vunpack.c.l.b16 %v1264
        %v1294 = vunpack.c.h.b16 %v1264
        %v1295 = vunpack.c.l.b16 %v1265
        %v1296 = vunpack.c.h.b16 %v1265
        %v1297 = vunpack.c.l.b16 %v1266
        %v1298 = vunpack.c.h.b16 %v1266
        %v1299 = vunpack.c.l.b16 %v1267
        %v1300 = vunpack.c.h.b16 %v1267
        %v1301 = vunpack.c.l.b16 %v1268
        %v1302 = vunpack.c.h.b16 %v1268
        %v1303 = vunpack.c.l.b16 %v1269
        %v1304 = vunpack.c.h.b16 %v1269
        %v1305 = vunpack.c.l.b16 %v1270
        %v1306 = vunpack.c.h.b16 %v1270
        %v1307 = vpack.c.b16 %v1293, %v1291
        %v1308 = vpack.c.b16 %v1294, %v1292
        %v1309 = vpack.c.b16 %v1297, %v1295
        %v1310 = vpack.c.b16 %v1298, %v1296
        %v1311 = vpack.c.b16 %v1301, %v1299
        %v1312 = vpack.c.b16 %v1302, %v1300
        %v1313 = vpack.c.b16 %v1305, %v1303
        %v1314 = vpack.c.b16 %v1306, %v1304
        %v1324 = vsel %vm718, %v1262, 0
        %1326 = vmatprep.subr.bf16.mxu0 0
        %1327 = vmatpush1.bf16.msra.mxu0 0
        %1328 = vmatprep.subr.bf16.mxu0 0
        %1329 = vmatpush1.bf16.msra.mxu0 0
        %1330 = vmatprep.subr.bf16.mxu0 0
        %1331 = vmatpush1.bf16.msra.mxu0 0
        %1332 = vmatprep.subr.bf16.mxu0 0
        %1333 = vmatpush1.bf16.msra.mxu0 0
        %1334 = vmatprep.subr.bf16.mxu0 %v1314
        %1335 = vmatpush1.bf16.msra.mxu0 %v1313
        %1336 = vmatprep.subr.bf16.mxu0 %v1312
        %1337 = vmatpush1.bf16.msra.mxu0 %v1311
        %1338 = vmatprep.subr.bf16.mxu0 %v1310
        %1339 = vmatpush1.bf16.msra.mxu0 %v1309
        %1340 = vmatprep.subr.bf16.mxu0 %v1308
        %1341 = vmatpush1.bf16.msra.mxu0 %v1307
        %1342 = vmatprep.subr.bf16.mxu0 0
        %1343 = vmatpush2.bf16.msra.mxu0 0
        %1344 = vmatprep.subr.bf16.mxu0 0
        %1345 = vmatpush2.bf16.msra.mxu0 0
        %1346 = vmatprep.subr.bf16.mxu0 0
        %1347 = vmatpush2.bf16.msra.mxu0 0
        %1348 = vmatprep.subr.bf16.mxu0 0
        %1349 = vmatpush2.bf16.msra.mxu0 0
        %1350 = vmatprep.subr.bf16.mxu0 0
        %1351 = vmatpush2.bf16.msra.mxu0 0
        %1352 = vmatprep.subr.bf16.mxu0 0
        %1353 = vmatpush2.bf16.msra.mxu0 0
        %1354 = vmatprep.subr.bf16.mxu0 0
        %1355 = vmatpush2.bf16.msra.mxu0 0
        %1356 = vmatprep.subr.bf16.mxu0 0
        %1357 = vmatpush2.bf16.msra.mxu0 0
        %1358 = vmatprep.mubr.bf16.mxu0 0
        %1359 = vmatmul.mubr.bf16.gmra.mxu0 %v1324
        %v1360 = vpop.f32.mrf.mxu0
        %v1361 = vadd.f32 %v1276, %v1360
        %v1362 = vpop.f32.mrf.mxu0
        %v1363 = vadd.f32 %v1280, %v1362
        %v1364 = vpop.f32.mrf.mxu0
        %v1365 = vadd.f32 %v1276, %v1364
        %v1366 = vpop.f32.mrf.mxu0
        %v1367 = vadd.f32 %v1280, %v1366
        %1368 = vdwg.mxu0
        %v1369 = vmul.f32 %v1361, %v1361
        %v1370 = vmul.f32 %v1363, %v1363
        %v1371 = vmul.f32 %v1365, %v1365
        %v1372 = vmul.f32 %v1367, %v1367
        %v1373 = vmul.f32 %v1361, %v1369
        %v1374 = vmul.f32 %v1363, %v1370
        %v1375 = vmul.f32 %v1365, %v1371
        %v1376 = vmul.f32 %v1367, %v1372
        %v1377 = vmul.f32 %v1373, 0.044715
        %v1378 = vmul.f32 %v1374, 0.044715
        %v1379 = vmul.f32 %v1375, 0.044715
        %v1380 = vmul.f32 %v1376, 0.044715
        %v1381 = vadd.f32 %v1361, %v1377
        %v1382 = vadd.f32 %v1363, %v1378
        %v1383 = vadd.f32 %v1365, %v1379
        %v1384 = vadd.f32 %v1367, %v1380
        %v1385 = vmul.f32 %v1381, 0.7978846
        %v1386 = vmul.f32 %v1382, 0.7978846
        %v1387 = vmul.f32 %v1383, 0.7978846
        %v1388 = vmul.f32 %v1384, 0.7978846
        %v1389 = vtanh.pop %v1385
        %v1390 = vtanh.pop %v1386
        %v1391 = vtanh.pop %v1387
        %v1392 = vtanh.pop %v1388
        %v1393 = vadd.f32 %v1389, 1.0
        %v1394 = vadd.f32 %v1390, 1.0
        %v1395 = vadd.f32 %v1391, 1.0
        %v1396 = vadd.f32 %v1392, 1.0
        %v1397 = vmul.f32 %v1393, 0.5
        %v1398 = vmul.f32 %v1394, 0.5
        %v1399 = vmul.f32 %v1395, 0.5
        %v1400 = vmul.f32 %v1396, 0.5
        %v1401 = vmul.f32 %v1361, %v1397
        %v1402 = vmul.f32 %v1363, %v1398
        %v1403 = vmul.f32 %v1365, %v1399
        %v1404 = vmul.f32 %v1367, %v1400
        %v1405 = vpack.c.bf16 %v1403, %v1401
        %v1406 = vpack.c.bf16 %v1404, %v1402
        %v1407 = vld [vmem:[%s14] sm:$0xf]
        %v1408 = vld [vmem:[%s14 + $0x4] sm:$0xf]
        %v1409 = vld [vmem:[%s14 + $0x8] sm:$0xf]
        %v1410 = vld [vmem:[%s14 + $0xc] sm:$0xf]
        %v1411 = vld [vmem:[%s14 + $0x10] sm:$0xf]
        %v1412 = vld [vmem:[%s14 + $0x14] sm:$0xf]
        %v1413 = vld [vmem:[%s14 + $0x18] sm:$0xf]
        %v1414 = vld [vmem:[%s14 + $0x1c] sm:$0xf]
        %v1415 = vld [vmem:[%s14 + $0x20] sm:$0xf]
        %v1416 = vld [vmem:[%s14 + $0x24] sm:$0xf]
        %v1417 = vld [vmem:[%s14 + $0x28] sm:$0xf]
        %v1418 = vld [vmem:[%s14 + $0x2c] sm:$0xf]
        %v1419 = vld [vmem:[%s14 + $0x30] sm:$0xf]
        %v1420 = vld [vmem:[%s14 + $0x34] sm:$0xf]
        %v1421 = vld [vmem:[%s14 + $0x38] sm:$0xf]
        %v1422 = vld [vmem:[%s14 + $0x3c] sm:$0xf]
        %v1423 = vld [vmem:[%s14 + $0x40] sm:$0xf]
        %v1424 = vld [vmem:[%s14 + $0x44] sm:$0xf]
        %v1425 = vld [vmem:[%s14 + $0x48] sm:$0xf]
        %v1426 = vld [vmem:[%s14 + $0x4c] sm:$0xf]
        %v1427 = vld [vmem:[%s14 + $0x50] sm:$0xf]
        %v1428 = vld [vmem:[%s14 + $0x54] sm:$0xf]
        %v1429 = vld [vmem:[%s14 + $0x58] sm:$0xf]
        %v1430 = vld [vmem:[%s14 + $0x5c] sm:$0xf]
        %v1431 = vld [vmem:[%s14 + $0x60] sm:$0xf]
        %v1432 = vld [vmem:[%s14 + $0x64] sm:$0xf]
        %v1433 = vld [vmem:[%s14 + $0x68] sm:$0xf]
        %v1434 = vld [vmem:[%s14 + $0x6c] sm:$0xf]
        %v1435 = vld [vmem:[%s14 + $0x70] sm:$0xf]
        %v1436 = vld [vmem:[%s14 + $0x74] sm:$0xf]
        %v1437 = vld [vmem:[%s14 + $0x78] sm:$0xf]
        %v1438 = vld [vmem:[%s14 + $0x7c] sm:$0xf]
        %v1471 = vunpack.c.l.b16 %v1407
        %v1472 = vunpack.c.l.b16 %v1408
        %v1473 = vunpack.c.l.b16 %v1409
        %v1474 = vunpack.c.l.b16 %v1410
        %v1475 = vunpack.c.l.b16 %v1411
        %v1476 = vunpack.c.l.b16 %v1412
        %v1477 = vunpack.c.l.b16 %v1413
        %v1478 = vunpack.c.l.b16 %v1414
        %v1479 = vunpack.c.l.b16 %v1415
        %v1480 = vunpack.c.l.b16 %v1416
        %v1481 = vunpack.c.l.b16 %v1417
        %v1482 = vunpack.c.l.b16 %v1418
        %v1483 = vunpack.c.l.b16 %v1419
        %v1484 = vunpack.c.l.b16 %v1420
        %v1485 = vunpack.c.l.b16 %v1421
        %v1486 = vunpack.c.l.b16 %v1422
        %v1487 = vunpack.c.l.b16 %v1423
        %v1488 = vunpack.c.l.b16 %v1424
        %v1489 = vunpack.c.l.b16 %v1425
        %v1490 = vunpack.c.l.b16 %v1426
        %v1491 = vunpack.c.l.b16 %v1427
        %v1492 = vunpack.c.l.b16 %v1428
        %v1493 = vunpack.c.l.b16 %v1429
        %v1494 = vunpack.c.l.b16 %v1430
        %v1495 = vunpack.c.l.b16 %v1431
        %v1496 = vunpack.c.l.b16 %v1432
        %v1497 = vunpack.c.l.b16 %v1433
        %v1498 = vunpack.c.l.b16 %v1434
        %v1499 = vunpack.c.l.b16 %v1435
        %v1500 = vunpack.c.l.b16 %v1436
        %v1501 = vunpack.c.l.b16 %v1437
        %v1502 = vunpack.c.l.b16 %v1438
        %v1503 = vpack.c.b16 %v1472, %v1471
        %v1504 = vpack.c.b16 %v1474, %v1473
        %v1505 = vpack.c.b16 %v1476, %v1475
        %v1506 = vpack.c.b16 %v1478, %v1477
        %v1507 = vpack.c.b16 %v1480, %v1479
        %v1508 = vpack.c.b16 %v1482, %v1481
        %v1509 = vpack.c.b16 %v1484, %v1483
        %v1510 = vpack.c.b16 %v1486, %v1485
        %v1511 = vpack.c.b16 %v1488, %v1487
        %v1512 = vpack.c.b16 %v1490, %v1489
        %v1513 = vpack.c.b16 %v1492, %v1491
        %v1514 = vpack.c.b16 %v1494, %v1493
        %v1515 = vpack.c.b16 %v1496, %v1495
        %v1516 = vpack.c.b16 %v1498, %v1497
        %v1517 = vpack.c.b16 %v1500, %v1499
        %v1518 = vpack.c.b16 %v1502, %v1501
        %1535 = vmatprep.subr.bf16.mxu0 0
        %1536 = vmatpush1.bf16.msra.mxu0 %v1510
        %1537 = vmatprep.subr.bf16.mxu0 0
        %1538 = vmatpush1.bf16.msra.mxu0 %v1509
        %1539 = vmatprep.subr.bf16.mxu0 0
        %1540 = vmatpush1.bf16.msra.mxu0 %v1508
        %1541 = vmatprep.subr.bf16.mxu0 0
        %1542 = vmatpush1.bf16.msra.mxu0 %v1507
        %1543 = vmatprep.subr.bf16.mxu0 0
        %1544 = vmatpush1.bf16.msra.mxu0 %v1506
        %1545 = vmatprep.subr.bf16.mxu0 0
        %1546 = vmatpush1.bf16.msra.mxu0 %v1505
        %1547 = vmatprep.subr.bf16.mxu0 0
        %1548 = vmatpush1.bf16.msra.mxu0 %v1504
        %1549 = vmatprep.subr.bf16.mxu0 0
        %1550 = vmatpush1.bf16.msra.mxu0 %v1503
        %1551 = vmatprep.subr.bf16.mxu0 0
        %1552 = vmatpush2.bf16.msra.mxu0 %v1518
        %1553 = vmatprep.subr.bf16.mxu0 0
        %1554 = vmatpush2.bf16.msra.mxu0 %v1517
        %1555 = vmatprep.subr.bf16.mxu0 0
        %1556 = vmatpush2.bf16.msra.mxu0 %v1516
        %1557 = vmatprep.subr.bf16.mxu0 0
        %1558 = vmatpush2.bf16.msra.mxu0 %v1515
        %1559 = vmatprep.subr.bf16.mxu0 0
        %1560 = vmatpush2.bf16.msra.mxu0 %v1514
        %1561 = vmatprep.subr.bf16.mxu0 0
        %1562 = vmatpush2.bf16.msra.mxu0 %v1513
        %1563 = vmatprep.subr.bf16.mxu0 0
        %1564 = vmatpush2.bf16.msra.mxu0 %v1512
        %1565 = vmatprep.subr.bf16.mxu0 0
        %1566 = vmatpush2.bf16.msra.mxu0 %v1511
        %1567 = vmatprep.mubr.bf16.mxu0 %v1406
        %1568 = vmatmul.mubr.bf16.gmra.mxu0 %v1405
        %v1569 = vpop.f32.mrf.mxu0
        %v1570 = vadd.f32 0.0, %v1569
        %v1571 = vpop.f32.mrf.mxu0
        %v1572 = vpop.f32.mrf.mxu0
        %v1573 = vadd.f32 0.0, %v1572
        %v1574 = vpop.f32.mrf.mxu0
        %1575 = vdwg.mxu0
        %v1576 = vadd.f32 %v1216, %v1570
        %v1577 = vadd.f32 %v1217, %v1573
        %v1578 = vld [vmem:[%s15] sm:$0x1]
        %v1580 = vlaneseq
        %v1581 = vshrl.u32 %v1580, 7
        %v1582 = vsub.s32 0, %v1581
        %v1583 = vrot.slane %v1578, %v1582
        %v1585 = vadd.f32 %v1576, %v1583
        %v1586 = vadd.f32 %v1577, %v1583
        %s1587 = scalar_lea.vmem %s4, 1
        %v1588 = vld [vmem:[%s1587] sm:$0x1]
        %s1589 = scalar_lea.vmem %s5, 1
        %v1590 = vld [vmem:[%s1589] sm:$0x1]
        %v1591 = vsel %vm718, %v1585, 0.0
        %1592 = vadd.xlane.f32.xlu0 %v1591
        %v1593 = vpop.xlane.xlu0 %1592
        %v1594 = vsel %vm718, %v1586, 0.0
        %1595 = vadd.xlane.f32.xlu0 %v1594
        %v1596 = vpop.xlane.xlu0 %1595
        %v1597 = vmul.f32 %v1593, %v725
        %v1598 = vmul.f32 %v1596, %v725
        %v1599 = vsub.f32 %v1585, %v1597
        %v1600 = vsub.f32 %v1586, %v1598
        %v1601 = vmul.f32 %v1599, %v1599
        %v1602 = vmul.f32 %v1600, %v1600
        %v1603 = vsel %vm718, %v1601, 0.0
        %1604 = vadd.xlane.f32.xlu0 %v1603
        %v1605 = vpop.xlane.xlu0 %1604
        %v1606 = vsel %vm718, %v1602, 0.0
        %1607 = vadd.xlane.f32.xlu0 %v1606
        %v1608 = vpop.xlane.xlu0 %1607
        %v1609 = vmul.f32 %v1605, %v725
        %v1610 = vmul.f32 %v1608, %v725
        %v1611 = vadd.f32 %v1609, 1e-05
        %v1612 = vadd.f32 %v1610, 1e-05
        %v1613 = vrsqrt.pop %v1611
        %v1614 = vrsqrt.pop %v1612
        %v1615 = vmul.f32 %v1599, %v1613
        %v1616 = vmul.f32 %v1600, %v1614
        %v1618 = vlaneseq
        %v1619 = vshrl.u32 %v1618, 7
        %v1620 = vsub.s32 0, %v1619
        %v1621 = vrot.slane %v1588, %v1620
        %v1623 = vmul.f32 %v1615, %v1621
        %v1624 = vmul.f32 %v1616, %v1621
        %v1626 = vlaneseq
        %v1627 = vshrl.u32 %v1626, 7
        %v1628 = vsub.s32 0, %v1627
        %v1629 = vrot.slane %v1590, %v1628
        %v1631 = vadd.f32 %v1623, %v1629
        %v1632 = vadd.f32 %v1624, %v1629
        %v1633 = vpack.c.bf16 %v1632, %v1631
        %s1634 = scalar_lea.vmem %s6, 64
        %v1635 = vld [vmem:[%s1634] sm:$0xff]
        %v1636 = vld [vmem:[%s1634 + $0x8] sm:$0xff]
        %v1637 = vld [vmem:[%s1634 + $0x10] sm:$0xff]
        %v1638 = vld [vmem:[%s1634 + $0x18] sm:$0xff]
        %v1639 = vld [vmem:[%s1634 + $0x20] sm:$0xff]
        %v1640 = vld [vmem:[%s1634 + $0x28] sm:$0xff]
        %v1641 = vld [vmem:[%s1634 + $0x30] sm:$0xff]
        %v1642 = vld [vmem:[%s1634 + $0x38] sm:$0xff]
        %s1643 = scalar_lea.vmem %s7, 2
        %v1644 = vld [vmem:[%s1643] sm:$0x3]
        %v1646 = vlaneseq
        %v1647 = vshrl.u32 %v1646, 7
        %v1648 = vsub.s32 0, %v1647
        %v1649 = vrot.slane %v1644, %v1648
        %v1650 = vlaneseq
        %v1651 = vshrl.u32 %v1650, 7
        %v1652 = vsub.s32 1, %v1651
        %v1653 = vrot.slane %v1644, %v1652
        %v1664 = vunpack.c.l.b16 %v1635
        %v1665 = vunpack.c.h.b16 %v1635
        %v1666 = vunpack.c.l.b16 %v1636
        %v1667 = vunpack.c.h.b16 %v1636
        %v1668 = vunpack.c.l.b16 %v1637
        %v1669 = vunpack.c.h.b16 %v1637
        %v1670 = vunpack.c.l.b16 %v1638
        %v1671 = vunpack.c.h.b16 %v1638
        %v1672 = vunpack.c.l.b16 %v1639
        %v1673 = vunpack.c.h.b16 %v1639
        %v1674 = vunpack.c.l.b16 %v1640
        %v1675 = vunpack.c.h.b16 %v1640
        %v1676 = vunpack.c.l.b16 %v1641
        %v1677 = vunpack.c.h.b16 %v1641
        %v1678 = vunpack.c.l.b16 %v1642
        %v1679 = vunpack.c.h.b16 %v1642
        %v1680 = vpack.c.b16 %v1666, %v1664
        %v1681 = vpack.c.b16 %v1667, %v1665
        %v1682 = vpack.c.b16 %v1670, %v1668
        %v1683 = vpack.c.b16 %v1671, %v1669
        %v1684 = vpack.c.b16 %v1674, %v1672
        %v1685 = vpack.c.b16 %v1675, %v1673
        %v1686 = vpack.c.b16 %v1678, %v1676
        %v1687 = vpack.c.b16 %v1679, %v1677
        %v1697 = vsel %vm718, %v1633, 0
        %1699 = vmatprep.subr.bf16.mxu0 0
        %1700 = vmatpush1.bf16.msra.mxu0 0
        %1701 = vmatprep.subr.bf16.mxu0 0
        %1702 = vmatpush1.bf16.msra.mxu0 0
        %1703 = vmatprep.subr.bf16.mxu0 0
        %1704 = vmatpush1.bf16.msra.mxu0 0
        %1705 = vmatprep.subr.bf16.mxu0 0
        %1706 = vmatpush1.bf16.msra.mxu0 0
        %1707 = vmatprep.subr.bf16.mxu0 %v1687
        %1708 = vmatpush1.bf16.msra.mxu0 %v1686
        %1709 = vmatprep.subr.bf16.mxu0 %v1685
        %1710 = vmatpush1.bf16.msra.mxu0 %v1684
        %1711 = vmatprep.subr.bf16.mxu0 %v1683
        %1712 = vmatpush1.bf16.msra.mxu0 %v1682
        %1713 = vmatprep.subr.bf16.mxu0 %v1681
        %1714 = vmatpush1.bf16.msra.mxu0 %v1680
        %1715 = vmatprep.subr.bf16.mxu0 0
        %1716 = vmatpush2.bf16.msra.mxu0 0
        %1717 = vmatprep.subr.bf16.mxu0 0
        %1718 = vmatpush2.bf16.msra.mxu0 0
        %1719 = vmatprep.subr.bf16.mxu0 0
        %1720 = vmatpush2.bf16.msra.mxu0 0
        %1721 = vmatprep.subr.bf16.mxu0 0
        %1722 = vmatpush2.bf16.msra.mxu0 0
        %1723 = vmatprep.subr.bf16.mxu0 0
        %1724 = vmatpush2.bf16.msra.mxu0 0
        %1725 = vmatprep.subr.bf16.mxu0 0
        %1726 = vmatpush2.bf16.msra.mxu0 0
        %1727 = vmatprep.subr.bf16.mxu0 0
        %1728 = vmatpush2.bf16.msra.mxu0 0
        %1729 = vmatprep.subr.bf16.mxu0 0
        %1730 = vmatpush2.bf16.msra.mxu0 0
        %1731 = vmatprep.mubr.bf16.mxu0 0
        %1732 = vmatmul.mubr.bf16.gmra.mxu0 %v1697
        %v1733 = vpop.f32.mrf.mxu0
        %v1734 = vadd.f32 %v1649, %v1733
        %v1735 = vpop.f32.mrf.mxu0
        %v1736 = vadd.f32 %v1653, %v1735
        %v1737 = vpop.f32.mrf.mxu0
        %v1738 = vadd.f32 %v1649, %v1737
        %v1739 = vpop.f32.mrf.mxu0
        %v1740 = vadd.f32 %v1653, %v1739
        %1741 = vdwg.mxu0
        %v1742 = vpack.c.bf16 %v1738, %v1734
        %v1743 = vpack.c.bf16 %v1740, %v1736
        %1745 = vrot.lane.b32.xlu0 %v1742, 64
        %v1746 = vpop.permute.xlu0 %1745
        %v1748 = vsel %vm874, %v1742, 0
        %v1751 = vsel %vm874, %v1746, 0
        %1753 = vmatprep.subr.bf16.mxu0 0
        %1754 = vmatpush1.bf16.xpose.msra.mxu0 0
        %1755 = vmatprep.subr.bf16.mxu0 0
        %1756 = vmatpush1.bf16.xpose.msra.mxu0 0
        %1757 = vmatprep.subr.bf16.mxu0 0
        %1758 = vmatpush1.bf16.xpose.msra.mxu0 0
        %1759 = vmatprep.subr.bf16.mxu0 0
        %1760 = vmatpush1.bf16.xpose.msra.mxu0 0
        %1761 = vmatprep.subr.bf16.mxu0 0
        %1762 = vmatpush1.bf16.xpose.msra.mxu0 0
        %1763 = vmatprep.subr.bf16.mxu0 0
        %1764 = vmatpush1.bf16.xpose.msra.mxu0 0
        %1765 = vmatprep.subr.bf16.mxu0 0
        %1766 = vmatpush1.bf16.xpose.msra.mxu0 0
        %1767 = vmatprep.subr.bf16.mxu0 0
        %1768 = vmatpush1.bf16.xpose.msra.mxu0 %v1751
        %1769 = vmatprep.subr.bf16.mxu0 0
        %1770 = vmatpush2.bf16.xpose.msra.mxu0 0
        %1771 = vmatprep.subr.bf16.mxu0 0
        %1772 = vmatpush2.bf16.xpose.msra.mxu0 0
        %1773 = vmatprep.subr.bf16.mxu0 0
        %1774 = vmatpush2.bf16.xpose.msra.mxu0 0
        %1775 = vmatprep.subr.bf16.mxu0 0
        %1776 = vmatpush2.bf16.xpose.msra.mxu0 0
        %1777 = vmatprep.subr.bf16.mxu0 0
        %1778 = vmatpush2.bf16.xpose.msra.mxu0 0
        %1779 = vmatprep.subr.bf16.mxu0 0
        %1780 = vmatpush2.bf16.xpose.msra.mxu0 0
        %1781 = vmatprep.subr.bf16.mxu0 0
        %1782 = vmatpush2.bf16.xpose.msra.mxu0 0
        %1783 = vmatprep.subr.bf16.mxu0 0
        %1784 = vmatpush2.bf16.xpose.msra.mxu0 0
        %1785 = vmatprep.mubr.bf16.mxu0 0
        %1786 = vmatmul.mubr.bf16.gmra.mxu0 %v1748
        %v1787 = vpop.f32.mrf.mxu0
        %v1788 = vadd.f32 0.0, %v1787
        %v1789 = vpop.f32.mrf.mxu0
        %v1790 = vpop.f32.mrf.mxu0
        %v1791 = vadd.f32 0.0, %v1790
        %v1792 = vpop.f32.mrf.mxu0
        %1793 = vdwg.mxu0
        %v1794 = vmul.f32 %v1788, 0.17677669
        %v1795 = vmul.f32 %v1791, 0.17677669
        %v1796 = vadd.f32 %v1794, %v604
        %v1797 = vadd.f32 %v1795, %v605
        %v1798 = vsel %vm926, %v1796, -inf
        %1799 = vmax.xlane.f32.xlu0 %v1798
        %v1800 = vpop.xlane.xlu0 %1799
        %v1801 = vsel %vm926, %v1797, -inf
        %1802 = vmax.xlane.f32.xlu0 %v1801
        %v1803 = vpop.xlane.xlu0 %1802
        %v1804 = vsub.f32 %v1796, %v1800
        %v1805 = vsub.f32 %v1797, %v1803
        %v1806 = vmul.f32 %v1804, 1.442695
        %v1807 = vpow.pop %v1806
        %v1808 = vmul.f32 %v1805, 1.442695
        %v1809 = vpow.pop %v1808
        %v1810 = vsel %vm926, %v1807, 0.0
        %1811 = vadd.xlane.f32.xlu0 %v1810
        %v1812 = vpop.xlane.xlu0 %1811
        %v1813 = vsel %vm926, %v1809, 0.0
        %1814 = vadd.xlane.f32.xlu0 %v1813
        %v1815 = vpop.xlane.xlu0 %1814
        %v1816 = vrcp.pop %v1812
        %v1817 = vmul.f32 %v1807, %v1816
        %v1818 = vrcp.pop %v1815
        %v1819 = vmul.f32 %v1809, %v1818
        %v1820 = vpack.c.bf16 %v1819, %v1817
        %v1822 = vsel %vm926, %v1820, 0
        %1824 = vmatprep.subr.bf16.mxu0 0
        %1825 = vmatpush1.bf16.msra.mxu0 0
        %1826 = vmatprep.subr.bf16.mxu0 0
        %1827 = vmatpush1.bf16.msra.mxu0 0
        %1828 = vmatprep.subr.bf16.mxu0 0
        %1829 = vmatpush1.bf16.msra.mxu0 0
        %1830 = vmatprep.subr.bf16.mxu0 0
        %1831 = vmatpush1.bf16.msra.mxu0 0
        %1832 = vmatprep.subr.bf16.mxu0 0
        %1833 = vmatpush1.bf16.msra.mxu0 0
        %1834 = vmatprep.subr.bf16.mxu0 0
        %1835 = vmatpush1.bf16.msra.mxu0 0
        %1836 = vmatprep.subr.bf16.mxu0 0
        %1837 = vmatpush1.bf16.msra.mxu0 0
        %1838 = vmatprep.subr.bf16.mxu0 0
        %1839 = vmatpush1.bf16.msra.mxu0 %v1743
        %1840 = vmatprep.subr.bf16.mxu0 0
        %1841 = vmatpush2.bf16.msra.mxu0 0
        %1842 = vmatprep.subr.bf16.mxu0 0
        %1843 = vmatpush2.bf16.msra.mxu0 0
        %1844 = vmatprep.subr.bf16.mxu0 0
        %1845 = vmatpush2.bf16.msra.mxu0 0
        %1846 = vmatprep.subr.bf16.mxu0 0
        %1847 = vmatpush2.bf16.msra.mxu0 0
        %1848 = vmatprep.subr.bf16.mxu0 0
        %1849 = vmatpush2.bf16.msra.mxu0 0
        %1850 = vmatprep.subr.bf16.mxu0 0
        %1851 = vmatpush2.bf16.msra.mxu0 0
        %1852 = vmatprep.subr.bf16.mxu0 0
        %1853 = vmatpush2.bf16.msra.mxu0 0
        %1854 = vmatprep.subr.bf16.mxu0 0
        %1855 = vmatpush2.bf16.msra.mxu0 0
        %1856 = vmatprep.mubr.bf16.mxu0 0
        %1857 = vmatmul.mubr.bf16.gmra.mxu0 %v1822
        %v1858 = vpop.f32.mrf.mxu0
        %v1859 = vadd.f32 0.0, %v1858
        %v1860 = vpop.f32.mrf.mxu0
        %v1861 = vpop.f32.mrf.mxu0
        %v1862 = vadd.f32 0.0, %v1861
        %v1863 = vpop.f32.mrf.mxu0
        %1864 = vdwg.mxu0
        %1865 = vrot.lane.b32.xlu0 %v1742, 96
        %v1866 = vpop.permute.xlu0 %1865
        %1867 = vrot.lane.b32.xlu0 %v1742, 32
        %v1868 = vpop.permute.xlu0 %1867
        %v1870 = vsel %vm874, %v1866, 0
        %v1873 = vsel %vm874, %v1868, 0
        %1875 = vmatprep.subr.bf16.mxu0 0
        %1876 = vmatpush1.bf16.xpose.msra.mxu0 0
        %1877 = vmatprep.subr.bf16.mxu0 0
        %1878 = vmatpush1.bf16.xpose.msra.mxu0 0
        %1879 = vmatprep.subr.bf16.mxu0 0
        %1880 = vmatpush1.bf16.xpose.msra.mxu0 0
        %1881 = vmatprep.subr.bf16.mxu0 0
        %1882 = vmatpush1.bf16.xpose.msra.mxu0 0
        %1883 = vmatprep.subr.bf16.mxu0 0
        %1884 = vmatpush1.bf16.xpose.msra.mxu0 0
        %1885 = vmatprep.subr.bf16.mxu0 0
        %1886 = vmatpush1.bf16.xpose.msra.mxu0 0
        %1887 = vmatprep.subr.bf16.mxu0 0
        %1888 = vmatpush1.bf16.xpose.msra.mxu0 0
        %1889 = vmatprep.subr.bf16.mxu0 0
        %1890 = vmatpush1.bf16.xpose.msra.mxu0 %v1873
        %1891 = vmatprep.subr.bf16.mxu0 0
        %1892 = vmatpush2.bf16.xpose.msra.mxu0 0
        %1893 = vmatprep.subr.bf16.mxu0 0
        %1894 = vmatpush2.bf16.xpose.msra.mxu0 0
        %1895 = vmatprep.subr.bf16.mxu0 0
        %1896 = vmatpush2.bf16.xpose.msra.mxu0 0
        %1897 = vmatprep.subr.bf16.mxu0 0
        %1898 = vmatpush2.bf16.xpose.msra.mxu0 0
        %1899 = vmatprep.subr.bf16.mxu0 0
        %1900 = vmatpush2.bf16.xpose.msra.mxu0 0
        %1901 = vmatprep.subr.bf16.mxu0 0
        %1902 = vmatpush2.bf16.xpose.msra.mxu0 0
        %1903 = vmatprep.subr.bf16.mxu0 0
        %1904 = vmatpush2.bf16.xpose.msra.mxu0 0
        %1905 = vmatprep.subr.bf16.mxu0 0
        %1906 = vmatpush2.bf16.xpose.msra.mxu0 0
        %1907 = vmatprep.mubr.bf16.mxu0 0
        %1908 = vmatmul.mubr.bf16.gmra.mxu0 %v1870
        %v1909 = vpop.f32.mrf.mxu0
        %v1910 = vadd.f32 0.0, %v1909
        %v1911 = vpop.f32.mrf.mxu0
        %v1912 = vpop.f32.mrf.mxu0
        %v1913 = vadd.f32 0.0, %v1912
        %v1914 = vpop.f32.mrf.mxu0
        %1915 = vdwg.mxu0
        %v1916 = vmul.f32 %v1910, 0.17677669
        %v1917 = vmul.f32 %v1913, 0.17677669
        %v1918 = vadd.f32 %v1916, %v604
        %v1919 = vadd.f32 %v1917, %v605
        %v1920 = vsel %vm926, %v1918, -inf
        %1921 = vmax.xlane.f32.xlu0 %v1920
        %v1922 = vpop.xlane.xlu0 %1921
        %v1923 = vsel %vm926, %v1919, -inf
        %1924 = vmax.xlane.f32.xlu0 %v1923
        %v1925 = vpop.xlane.xlu0 %1924
        %v1926 = vsub.f32 %v1918, %v1922
        %v1927 = vsub.f32 %v1919, %v1925
        %v1928 = vmul.f32 %v1926, 1.442695
        %v1929 = vpow.pop %v1928
        %v1930 = vmul.f32 %v1927, 1.442695
        %v1931 = vpow.pop %v1930
        %v1932 = vsel %vm926, %v1929, 0.0
        %1933 = vadd.xlane.f32.xlu0 %v1932
        %v1934 = vpop.xlane.xlu0 %1933
        %v1935 = vsel %vm926, %v1931, 0.0
        %1936 = vadd.xlane.f32.xlu0 %v1935
        %v1937 = vpop.xlane.xlu0 %1936
        %v1938 = vrcp.pop %v1934
        %v1939 = vmul.f32 %v1929, %v1938
        %v1940 = vrcp.pop %v1937
        %v1941 = vmul.f32 %v1931, %v1940
        %v1942 = vpack.c.bf16 %v1941, %v1939
        %1944 = vrot.lane.b32.xlu0 %v1743, 96
        %v1945 = vpop.permute.xlu0 %1944
        %v1948 = vsel %vm926, %v1942, 0
        %1950 = vmatprep.subr.bf16.mxu0 0
        %1951 = vmatpush1.bf16.msra.mxu0 0
        %1952 = vmatprep.subr.bf16.mxu0 0
        %1953 = vmatpush1.bf16.msra.mxu0 0
        %1954 = vmatprep.subr.bf16.mxu0 0
        %1955 = vmatpush1.bf16.msra.mxu0 0
        %1956 = vmatprep.subr.bf16.mxu0 0
        %1957 = vmatpush1.bf16.msra.mxu0 0
        %1958 = vmatprep.subr.bf16.mxu0 0
        %1959 = vmatpush1.bf16.msra.mxu0 0
        %1960 = vmatprep.subr.bf16.mxu0 0
        %1961 = vmatpush1.bf16.msra.mxu0 0
        %1962 = vmatprep.subr.bf16.mxu0 0
        %1963 = vmatpush1.bf16.msra.mxu0 0
        %1964 = vmatprep.subr.bf16.mxu0 0
        %1965 = vmatpush1.bf16.msra.mxu0 %v1945
        %1966 = vmatprep.subr.bf16.mxu0 0
        %1967 = vmatpush2.bf16.msra.mxu0 0
        %1968 = vmatprep.subr.bf16.mxu0 0
        %1969 = vmatpush2.bf16.msra.mxu0 0
        %1970 = vmatprep.subr.bf16.mxu0 0
        %1971 = vmatpush2.bf16.msra.mxu0 0
        %1972 = vmatprep.subr.bf16.mxu0 0
        %1973 = vmatpush2.bf16.msra.mxu0 0
        %1974 = vmatprep.subr.bf16.mxu0 0
        %1975 = vmatpush2.bf16.msra.mxu0 0
        %1976 = vmatprep.subr.bf16.mxu0 0
        %1977 = vmatpush2.bf16.msra.mxu0 0
        %1978 = vmatprep.subr.bf16.mxu0 0
        %1979 = vmatpush2.bf16.msra.mxu0 0
        %1980 = vmatprep.subr.bf16.mxu0 0
        %1981 = vmatpush2.bf16.msra.mxu0 0
        %1982 = vmatprep.mubr.bf16.mxu0 0
        %1983 = vmatmul.mubr.bf16.gmra.mxu0 %v1948
        %v1984 = vpop.f32.mrf.mxu0
        %v1985 = vadd.f32 0.0, %v1984
        %v1986 = vpop.f32.mrf.mxu0
        %v1987 = vpop.f32.mrf.mxu0
        %v1988 = vadd.f32 0.0, %v1987
        %v1989 = vpop.f32.mrf.mxu0
        %1990 = vdwg.mxu0
        %1993 = vrot.lane.b32.xlu0 %v1985, 32
        %v1994 = vpop.permute.xlu0 %1993
        %1995 = vrot.lane.b32.xlu0 %v1988, 32
        %v1996 = vpop.permute.xlu0 %1995
        %v1999 = vsel %vm874, %v1859, %v1994
        %v2000 = vsel %vm874, %v1862, %v1996
        %v2001 = vpack.c.bf16 %v2000, %v1999
        %s2002 = scalar_lea.vmem %s8, 32
        %v2003 = vld [vmem:[%s2002] sm:$0xf]
        %v2004 = vld [vmem:[%s2002 + $0x4] sm:$0xf]
        %v2005 = vld [vmem:[%s2002 + $0x8] sm:$0xf]
        %v2006 = vld [vmem:[%s2002 + $0xc] sm:$0xf]
        %v2007 = vld [vmem:[%s2002 + $0x10] sm:$0xf]
        %v2008 = vld [vmem:[%s2002 + $0x14] sm:$0xf]
        %v2009 = vld [vmem:[%s2002 + $0x18] sm:$0xf]
        %v2010 = vld [vmem:[%s2002 + $0x1c] sm:$0xf]
        %v2019 = vunpack.c.l.b16 %v2003
        %v2020 = vunpack.c.l.b16 %v2004
        %v2021 = vunpack.c.l.b16 %v2005
        %v2022 = vunpack.c.l.b16 %v2006
        %v2023 = vunpack.c.l.b16 %v2007
        %v2024 = vunpack.c.l.b16 %v2008
        %v2025 = vunpack.c.l.b16 %v2009
        %v2026 = vunpack.c.l.b16 %v2010
        %v2027 = vpack.c.b16 %v2020, %v2019
        %v2028 = vpack.c.b16 %v2022, %v2021
        %v2029 = vpack.c.b16 %v2024, %v2023
        %v2030 = vpack.c.b16 %v2026, %v2025
        %v2036 = vsel %vm718, %v2001, 0
        %2038 = vmatprep.subr.bf16.mxu0 0
        %2039 = vmatpush1.bf16.msra.mxu0 0
        %2040 = vmatprep.subr.bf16.mxu0 0
        %2041 = vmatpush1.bf16.msra.mxu0 0
        %2042 = vmatprep.subr.bf16.mxu0 0
        %2043 = vmatpush1.bf16.msra.mxu0 0
        %2044 = vmatprep.subr.bf16.mxu0 0
        %2045 = vmatpush1.bf16.msra.mxu0 0
        %2046 = vmatprep.subr.bf16.mxu0 0
        %2047 = vmatpush1.bf16.msra.mxu0 %v2030
        %2048 = vmatprep.subr.bf16.mxu0 0
        %2049 = vmatpush1.bf16.msra.mxu0 %v2029
        %2050 = vmatprep.subr.bf16.mxu0 0
        %2051 = vmatpush1.bf16.msra.mxu0 %v2028
        %2052 = vmatprep.subr.bf16.mxu0 0
        %2053 = vmatpush1.bf16.msra.mxu0 %v2027
        %2054 = vmatprep.subr.bf16.mxu0 0
        %2055 = vmatpush2.bf16.msra.mxu0 0
        %2056 = vmatprep.subr.bf16.mxu0 0
        %2057 = vmatpush2.bf16.msra.mxu0 0
        %2058 = vmatprep.subr.bf16.mxu0 0
        %2059 = vmatpush2.bf16.msra.mxu0 0
        %2060 = vmatprep.subr.bf16.mxu0 0
        %2061 = vmatpush2.bf16.msra.mxu0 0
        %2062 = vmatprep.subr.bf16.mxu0 0
        %2063 = vmatpush2.bf16.msra.mxu0 0
        %2064 = vmatprep.subr.bf16.mxu0 0
        %2065 = vmatpush2.bf16.msra.mxu0 0
        %2066 = vmatprep.subr.bf16.mxu0 0
        %2067 = vmatpush2.bf16.msra.mxu0 0
        %2068 = vmatprep.subr.bf16.mxu0 0
        %2069 = vmatpush2.bf16.msra.mxu0 0
        %2070 = vmatprep.mubr.bf16.mxu0 0
        %2071 = vmatmul.mubr.bf16.gmra.mxu0 %v2036
        %v2072 = vpop.f32.mrf.mxu0
        %v2073 = vadd.f32 0.0, %v2072
        %v2074 = vpop.f32.mrf.mxu0
        %v2075 = vpop.f32.mrf.mxu0
        %v2076 = vadd.f32 0.0, %v2075
        %v2077 = vpop.f32.mrf.mxu0
        %2078 = vdwg.mxu0
        %v2079 = vadd.f32 %v1585, %v2073
        %v2080 = vadd.f32 %v1586, %v2076
        %s2081 = scalar_lea.vmem %s9, 1
        %v2082 = vld [vmem:[%s2081] sm:$0x1]
        %v2084 = vlaneseq
        %v2085 = vshrl.u32 %v2084, 7
        %v2086 = vsub.s32 0, %v2085
        %v2087 = vrot.slane %v2082, %v2086
        %v2089 = vadd.f32 %v2079, %v2087
        %v2090 = vadd.f32 %v2080, %v2087
        %s2091 = scalar_lea.vmem %s10, 1
        %v2092 = vld [vmem:[%s2091] sm:$0x1]
        %s2093 = scalar_lea.vmem %s11, 1
        %v2094 = vld [vmem:[%s2093] sm:$0x1]
        %v2095 = vsel %vm718, %v2089, 0.0
        %2096 = vadd.xlane.f32.xlu0 %v2095
        %v2097 = vpop.xlane.xlu0 %2096
        %v2098 = vsel %vm718, %v2090, 0.0
        %2099 = vadd.xlane.f32.xlu0 %v2098
        %v2100 = vpop.xlane.xlu0 %2099
        %v2101 = vmul.f32 %v2097, %v725
        %v2102 = vmul.f32 %v2100, %v725
        %v2103 = vsub.f32 %v2089, %v2101
        %v2104 = vsub.f32 %v2090, %v2102
        %v2105 = vmul.f32 %v2103, %v2103
        %v2106 = vmul.f32 %v2104, %v2104
        %v2107 = vsel %vm718, %v2105, 0.0
        %2108 = vadd.xlane.f32.xlu0 %v2107
        %v2109 = vpop.xlane.xlu0 %2108
        %v2110 = vsel %vm718, %v2106, 0.0
        %2111 = vadd.xlane.f32.xlu0 %v2110
        %v2112 = vpop.xlane.xlu0 %2111
        %v2113 = vmul.f32 %v2109, %v725
        %v2114 = vmul.f32 %v2112, %v725
        %v2115 = vadd.f32 %v2113, 1e-05
        %v2116 = vadd.f32 %v2114, 1e-05
        %v2117 = vrsqrt.pop %v2115
        %v2118 = vrsqrt.pop %v2116
        %v2119 = vmul.f32 %v2103, %v2117
        %v2120 = vmul.f32 %v2104, %v2118
        %v2122 = vlaneseq
        %v2123 = vshrl.u32 %v2122, 7
        %v2124 = vsub.s32 0, %v2123
        %v2125 = vrot.slane %v2092, %v2124
        %v2127 = vmul.f32 %v2119, %v2125
        %v2128 = vmul.f32 %v2120, %v2125
        %v2130 = vlaneseq
        %v2131 = vshrl.u32 %v2130, 7
        %v2132 = vsub.s32 0, %v2131
        %v2133 = vrot.slane %v2094, %v2132
        %v2135 = vadd.f32 %v2127, %v2133
        %v2136 = vadd.f32 %v2128, %v2133
        %v2137 = vpack.c.bf16 %v2136, %v2135
        %s2138 = scalar_lea.vmem %s12, 64
        %v2139 = vld [vmem:[%s2138] sm:$0xff]
        %v2140 = vld [vmem:[%s2138 + $0x8] sm:$0xff]
        %v2141 = vld [vmem:[%s2138 + $0x10] sm:$0xff]
        %v2142 = vld [vmem:[%s2138 + $0x18] sm:$0xff]
        %v2143 = vld [vmem:[%s2138 + $0x20] sm:$0xff]
        %v2144 = vld [vmem:[%s2138 + $0x28] sm:$0xff]
        %v2145 = vld [vmem:[%s2138 + $0x30] sm:$0xff]
        %v2146 = vld [vmem:[%s2138 + $0x38] sm:$0xff]
        %s2147 = scalar_lea.vmem %s13, 2
        %v2148 = vld [vmem:[%s2147] sm:$0x3]
        %v2150 = vlaneseq
        %v2151 = vshrl.u32 %v2150, 7
        %v2152 = vsub.s32 0, %v2151
        %v2153 = vrot.slane %v2148, %v2152
        %v2154 = vlaneseq
        %v2155 = vshrl.u32 %v2154, 7
        %v2156 = vsub.s32 1, %v2155
        %v2157 = vrot.slane %v2148, %v2156
        %v2168 = vunpack.c.l.b16 %v2139
        %v2169 = vunpack.c.h.b16 %v2139
        %v2170 = vunpack.c.l.b16 %v2140
        %v2171 = vunpack.c.h.b16 %v2140
        %v2172 = vunpack.c.l.b16 %v2141
        %v2173 = vunpack.c.h.b16 %v2141
        %v2174 = vunpack.c.l.b16 %v2142
        %v2175 = vunpack.c.h.b16 %v2142
        %v2176 = vunpack.c.l.b16 %v2143
        %v2177 = vunpack.c.h.b16 %v2143
        %v2178 = vunpack.c.l.b16 %v2144
        %v2179 = vunpack.c.h.b16 %v2144
        %v2180 = vunpack.c.l.b16 %v2145
        %v2181 = vunpack.c.h.b16 %v2145
        %v2182 = vunpack.c.l.b16 %v2146
        %v2183 = vunpack.c.h.b16 %v2146
        %v2184 = vpack.c.b16 %v2170, %v2168
        %v2185 = vpack.c.b16 %v2171, %v2169
        %v2186 = vpack.c.b16 %v2174, %v2172
        %v2187 = vpack.c.b16 %v2175, %v2173
        %v2188 = vpack.c.b16 %v2178, %v2176
        %v2189 = vpack.c.b16 %v2179, %v2177
        %v2190 = vpack.c.b16 %v2182, %v2180
        %v2191 = vpack.c.b16 %v2183, %v2181
        %v2201 = vsel %vm718, %v2137, 0
        %2203 = vmatprep.subr.bf16.mxu0 0
        %2204 = vmatpush1.bf16.msra.mxu0 0
        %2205 = vmatprep.subr.bf16.mxu0 0
        %2206 = vmatpush1.bf16.msra.mxu0 0
        %2207 = vmatprep.subr.bf16.mxu0 0
        %2208 = vmatpush1.bf16.msra.mxu0 0
        %2209 = vmatprep.subr.bf16.mxu0 0
        %2210 = vmatpush1.bf16.msra.mxu0 0
        %2211 = vmatprep.subr.bf16.mxu0 %v2191
        %2212 = vmatpush1.bf16.msra.mxu0 %v2190
        %2213 = vmatprep.subr.bf16.mxu0 %v2189
        %2214 = vmatpush1.bf16.msra.mxu0 %v2188
        %2215 = vmatprep.subr.bf16.mxu0 %v2187
        %2216 = vmatpush1.bf16.msra.mxu0 %v2186
        %2217 = vmatprep.subr.bf16.mxu0 %v2185
        %2218 = vmatpush1.bf16.msra.mxu0 %v2184
        %2219 = vmatprep.subr.bf16.mxu0 0
        %2220 = vmatpush2.bf16.msra.mxu0 0
        %2221 = vmatprep.subr.bf16.mxu0 0
        %2222 = vmatpush2.bf16.msra.mxu0 0
        %2223 = vmatprep.subr.bf16.mxu0 0
        %2224 = vmatpush2.bf16.msra.mxu0 0
        %2225 = vmatprep.subr.bf16.mxu0 0
        %2226 = vmatpush2.bf16.msra.mxu0 0
        %2227 = vmatprep.subr.bf16.mxu0 0
        %2228 = vmatpush2.bf16.msra.mxu0 0
        %2229 = vmatprep.subr.bf16.mxu0 0
        %2230 = vmatpush2.bf16.msra.mxu0 0
        %2231 = vmatprep.subr.bf16.mxu0 0
        %2232 = vmatpush2.bf16.msra.mxu0 0
        %2233 = vmatprep.subr.bf16.mxu0 0
        %2234 = vmatpush2.bf16.msra.mxu0 0
        %2235 = vmatprep.mubr.bf16.mxu0 0
        %2236 = vmatmul.mubr.bf16.gmra.mxu0 %v2201
        %v2237 = vpop.f32.mrf.mxu0
        %v2238 = vadd.f32 %v2153, %v2237
        %v2239 = vpop.f32.mrf.mxu0
        %v2240 = vadd.f32 %v2157, %v2239
        %v2241 = vpop.f32.mrf.mxu0
        %v2242 = vadd.f32 %v2153, %v2241
        %v2243 = vpop.f32.mrf.mxu0
        %v2244 = vadd.f32 %v2157, %v2243
        %2245 = vdwg.mxu0
        %v2246 = vmul.f32 %v2238, %v2238
        %v2247 = vmul.f32 %v2240, %v2240
        %v2248 = vmul.f32 %v2242, %v2242
        %v2249 = vmul.f32 %v2244, %v2244
        %v2250 = vmul.f32 %v2238, %v2246
        %v2251 = vmul.f32 %v2240, %v2247
        %v2252 = vmul.f32 %v2242, %v2248
        %v2253 = vmul.f32 %v2244, %v2249
        %v2254 = vmul.f32 %v2250, 0.044715
        %v2255 = vmul.f32 %v2251, 0.044715
        %v2256 = vmul.f32 %v2252, 0.044715
        %v2257 = vmul.f32 %v2253, 0.044715
        %v2258 = vadd.f32 %v2238, %v2254
        %v2259 = vadd.f32 %v2240, %v2255
        %v2260 = vadd.f32 %v2242, %v2256
        %v2261 = vadd.f32 %v2244, %v2257
        %v2262 = vmul.f32 %v2258, 0.7978846
        %v2263 = vmul.f32 %v2259, 0.7978846
        %v2264 = vmul.f32 %v2260, 0.7978846
        %v2265 = vmul.f32 %v2261, 0.7978846
        %v2266 = vtanh.pop %v2262
        %v2267 = vtanh.pop %v2263
        %v2268 = vtanh.pop %v2264
        %v2269 = vtanh.pop %v2265
        %v2270 = vadd.f32 %v2266, 1.0
        %v2271 = vadd.f32 %v2267, 1.0
        %v2272 = vadd.f32 %v2268, 1.0
        %v2273 = vadd.f32 %v2269, 1.0
        %v2274 = vmul.f32 %v2270, 0.5
        %v2275 = vmul.f32 %v2271, 0.5
        %v2276 = vmul.f32 %v2272, 0.5
        %v2277 = vmul.f32 %v2273, 0.5
        %v2278 = vmul.f32 %v2238, %v2274
        %v2279 = vmul.f32 %v2240, %v2275
        %v2280 = vmul.f32 %v2242, %v2276
        %v2281 = vmul.f32 %v2244, %v2277
        %v2282 = vpack.c.bf16 %v2280, %v2278
        %v2283 = vpack.c.bf16 %v2281, %v2279
        %s2284 = scalar_lea.vmem %s14, 128
        %v2285 = vld [vmem:[%s2284] sm:$0xf]
        %v2286 = vld [vmem:[%s2284 + $0x4] sm:$0xf]
        %v2287 = vld [vmem:[%s2284 + $0x8] sm:$0xf]
        %v2288 = vld [vmem:[%s2284 + $0xc] sm:$0xf]
        %v2289 = vld [vmem:[%s2284 + $0x10] sm:$0xf]
        %v2290 = vld [vmem:[%s2284 + $0x14] sm:$0xf]
        %v2291 = vld [vmem:[%s2284 + $0x18] sm:$0xf]
        %v2292 = vld [vmem:[%s2284 + $0x1c] sm:$0xf]
        %v2293 = vld [vmem:[%s2284 + $0x20] sm:$0xf]
        %v2294 = vld [vmem:[%s2284 + $0x24] sm:$0xf]
        %v2295 = vld [vmem:[%s2284 + $0x28] sm:$0xf]
        %v2296 = vld [vmem:[%s2284 + $0x2c] sm:$0xf]
        %v2297 = vld [vmem:[%s2284 + $0x30] sm:$0xf]
        %v2298 = vld [vmem:[%s2284 + $0x34] sm:$0xf]
        %v2299 = vld [vmem:[%s2284 + $0x38] sm:$0xf]
        %v2300 = vld [vmem:[%s2284 + $0x3c] sm:$0xf]
        %v2301 = vld [vmem:[%s2284 + $0x40] sm:$0xf]
        %v2302 = vld [vmem:[%s2284 + $0x44] sm:$0xf]
        %v2303 = vld [vmem:[%s2284 + $0x48] sm:$0xf]
        %v2304 = vld [vmem:[%s2284 + $0x4c] sm:$0xf]
        %v2305 = vld [vmem:[%s2284 + $0x50] sm:$0xf]
        %v2306 = vld [vmem:[%s2284 + $0x54] sm:$0xf]
        %v2307 = vld [vmem:[%s2284 + $0x58] sm:$0xf]
        %v2308 = vld [vmem:[%s2284 + $0x5c] sm:$0xf]
        %v2309 = vld [vmem:[%s2284 + $0x60] sm:$0xf]
        %v2310 = vld [vmem:[%s2284 + $0x64] sm:$0xf]
        %v2311 = vld [vmem:[%s2284 + $0x68] sm:$0xf]
        %v2312 = vld [vmem:[%s2284 + $0x6c] sm:$0xf]
        %v2313 = vld [vmem:[%s2284 + $0x70] sm:$0xf]
        %v2314 = vld [vmem:[%s2284 + $0x74] sm:$0xf]
        %v2315 = vld [vmem:[%s2284 + $0x78] sm:$0xf]
        %v2316 = vld [vmem:[%s2284 + $0x7c] sm:$0xf]
        %v2349 = vunpack.c.l.b16 %v2285
        %v2350 = vunpack.c.l.b16 %v2286
        %v2351 = vunpack.c.l.b16 %v2287
        %v2352 = vunpack.c.l.b16 %v2288
        %v2353 = vunpack.c.l.b16 %v2289
        %v2354 = vunpack.c.l.b16 %v2290
        %v2355 = vunpack.c.l.b16 %v2291
        %v2356 = vunpack.c.l.b16 %v2292
        %v2357 = vunpack.c.l.b16 %v2293
        %v2358 = vunpack.c.l.b16 %v2294
        %v2359 = vunpack.c.l.b16 %v2295
        %v2360 = vunpack.c.l.b16 %v2296
        %v2361 = vunpack.c.l.b16 %v2297
        %v2362 = vunpack.c.l.b16 %v2298
        %v2363 = vunpack.c.l.b16 %v2299
        %v2364 = vunpack.c.l.b16 %v2300
        %v2365 = vunpack.c.l.b16 %v2301
        %v2366 = vunpack.c.l.b16 %v2302
        %v2367 = vunpack.c.l.b16 %v2303
        %v2368 = vunpack.c.l.b16 %v2304
        %v2369 = vunpack.c.l.b16 %v2305
        %v2370 = vunpack.c.l.b16 %v2306
        %v2371 = vunpack.c.l.b16 %v2307
        %v2372 = vunpack.c.l.b16 %v2308
        %v2373 = vunpack.c.l.b16 %v2309
        %v2374 = vunpack.c.l.b16 %v2310
        %v2375 = vunpack.c.l.b16 %v2311
        %v2376 = vunpack.c.l.b16 %v2312
        %v2377 = vunpack.c.l.b16 %v2313
        %v2378 = vunpack.c.l.b16 %v2314
        %v2379 = vunpack.c.l.b16 %v2315
        %v2380 = vunpack.c.l.b16 %v2316
        %v2381 = vpack.c.b16 %v2350, %v2349
        %v2382 = vpack.c.b16 %v2352, %v2351
        %v2383 = vpack.c.b16 %v2354, %v2353
        %v2384 = vpack.c.b16 %v2356, %v2355
        %v2385 = vpack.c.b16 %v2358, %v2357
        %v2386 = vpack.c.b16 %v2360, %v2359
        %v2387 = vpack.c.b16 %v2362, %v2361
        %v2388 = vpack.c.b16 %v2364, %v2363
        %v2389 = vpack.c.b16 %v2366, %v2365
        %v2390 = vpack.c.b16 %v2368, %v2367
        %v2391 = vpack.c.b16 %v2370, %v2369
        %v2392 = vpack.c.b16 %v2372, %v2371
        %v2393 = vpack.c.b16 %v2374, %v2373
        %v2394 = vpack.c.b16 %v2376, %v2375
        %v2395 = vpack.c.b16 %v2378, %v2377
        %v2396 = vpack.c.b16 %v2380, %v2379
        %2413 = vmatprep.subr.bf16.mxu0 0
        %2414 = vmatpush1.bf16.msra.mxu0 %v2388
        %2415 = vmatprep.subr.bf16.mxu0 0
        %2416 = vmatpush1.bf16.msra.mxu0 %v2387
        %2417 = vmatprep.subr.bf16.mxu0 0
        %2418 = vmatpush1.bf16.msra.mxu0 %v2386
        %2419 = vmatprep.subr.bf16.mxu0 0
        %2420 = vmatpush1.bf16.msra.mxu0 %v2385
        %2421 = vmatprep.subr.bf16.mxu0 0
        %2422 = vmatpush1.bf16.msra.mxu0 %v2384
        %2423 = vmatprep.subr.bf16.mxu0 0
        %2424 = vmatpush1.bf16.msra.mxu0 %v2383
        %2425 = vmatprep.subr.bf16.mxu0 0
        %2426 = vmatpush1.bf16.msra.mxu0 %v2382
        %2427 = vmatprep.subr.bf16.mxu0 0
        %2428 = vmatpush1.bf16.msra.mxu0 %v2381
        %2429 = vmatprep.subr.bf16.mxu0 0
        %2430 = vmatpush2.bf16.msra.mxu0 %v2396
        %2431 = vmatprep.subr.bf16.mxu0 0
        %2432 = vmatpush2.bf16.msra.mxu0 %v2395
        %2433 = vmatprep.subr.bf16.mxu0 0
        %2434 = vmatpush2.bf16.msra.mxu0 %v2394
        %2435 = vmatprep.subr.bf16.mxu0 0
        %2436 = vmatpush2.bf16.msra.mxu0 %v2393
        %2437 = vmatprep.subr.bf16.mxu0 0
        %2438 = vmatpush2.bf16.msra.mxu0 %v2392
        %2439 = vmatprep.subr.bf16.mxu0 0
        %2440 = vmatpush2.bf16.msra.mxu0 %v2391
        %2441 = vmatprep.subr.bf16.mxu0 0
        %2442 = vmatpush2.bf16.msra.mxu0 %v2390
        %2443 = vmatprep.subr.bf16.mxu0 0
        %2444 = vmatpush2.bf16.msra.mxu0 %v2389
        %2445 = vmatprep.mubr.bf16.mxu0 %v2283
        %2446 = vmatmul.mubr.bf16.gmra.mxu0 %v2282
        %v2447 = vpop.f32.mrf.mxu0
        %v2448 = vadd.f32 0.0, %v2447
        %v2449 = vpop.f32.mrf.mxu0
        %v2450 = vpop.f32.mrf.mxu0
        %v2451 = vadd.f32 0.0, %v2450
        %v2452 = vpop.f32.mrf.mxu0
        %2453 = vdwg.mxu0
        %v2454 = vadd.f32 %v2089, %v2448
        %v2455 = vadd.f32 %v2090, %v2451
        %s2456 = scalar_lea.vmem %s15, 1
        %v2457 = vld [vmem:[%s2456] sm:$0x1]
        %v2459 = vlaneseq
        %v2460 = vshrl.u32 %v2459, 7
        %v2461 = vsub.s32 0, %v2460
        %v2462 = vrot.slane %v2457, %v2461
        %v2464 = vadd.f32 %v2454, %v2462
        %v2465 = vadd.f32 %v2455, %v2462
        %v2466 = vld [vmem:[%s16] sm:$0x1]
        %v2467 = vld [vmem:[%s17] sm:$0x1]
        %v2468 = vsel %vm718, %v2464, 0.0
        %2469 = vadd.xlane.f32.xlu0 %v2468
        %v2470 = vpop.xlane.xlu0 %2469
        %v2471 = vsel %vm718, %v2465, 0.0
        %2472 = vadd.xlane.f32.xlu0 %v2471
        %v2473 = vpop.xlane.xlu0 %2472
        %v2474 = vmul.f32 %v2470, %v725
        %v2475 = vmul.f32 %v2473, %v725
        %v2476 = vsub.f32 %v2464, %v2474
        %v2477 = vsub.f32 %v2465, %v2475
        %v2478 = vmul.f32 %v2476, %v2476
        %v2479 = vmul.f32 %v2477, %v2477
        %v2480 = vsel %vm718, %v2478, 0.0
        %2481 = vadd.xlane.f32.xlu0 %v2480
        %v2482 = vpop.xlane.xlu0 %2481
        %v2483 = vsel %vm718, %v2479, 0.0
        %2484 = vadd.xlane.f32.xlu0 %v2483
        %v2485 = vpop.xlane.xlu0 %2484
        %v2486 = vmul.f32 %v2482, %v725
        %v2487 = vmul.f32 %v2485, %v725
        %v2488 = vadd.f32 %v2486, 1e-05
        %v2489 = vadd.f32 %v2487, 1e-05
        %v2490 = vrsqrt.pop %v2488
        %v2491 = vrsqrt.pop %v2489
        %v2492 = vmul.f32 %v2476, %v2490
        %v2493 = vmul.f32 %v2477, %v2491
        %v2495 = vlaneseq
        %v2496 = vshrl.u32 %v2495, 7
        %v2497 = vsub.s32 0, %v2496
        %v2498 = vrot.slane %v2466, %v2497
        %v2500 = vmul.f32 %v2492, %v2498
        %v2501 = vmul.f32 %v2493, %v2498
        %v2503 = vlaneseq
        %v2504 = vshrl.u32 %v2503, 7
        %v2505 = vsub.s32 0, %v2504
        %v2506 = vrot.slane %v2467, %v2505
        %v2508 = vadd.f32 %v2500, %v2506
        %v2509 = vadd.f32 %v2501, %v2506
        %v2510 = vpack.c.bf16 %v2509, %v2508
        %v2511 = vlaneseq
        %v2512 = vshrl.u32 %v2511, 7
        %v2513 = vlaneseq
        %v2514 = vand.u32 %v2513, 127
        %v2515 = vmul.u32 %v2512, 8
        %s2516 = sadd.s32 %s33, 3
        %v2517 = vstv %s2516
        %v2518 = vadd.s32 %v2515, %v2517
        %vm2519 = vcmp.eq.s32.totalorder %v2514, %v2518
        %v2520 = vsel %vm2519, 1, 0
        %v2521 = vcvt.s32.f32 %v2520
        %v2522 = vpack.c.bf16 %v2521, %v2521
        %v2524 = vsel %vm926, %v2522, 0
        %2526 = vmatprep.subr.bf16.mxu0 0
        %2527 = vmatpush1.bf16.msra.mxu0 0
        %2528 = vmatprep.subr.bf16.mxu0 0
        %2529 = vmatpush1.bf16.msra.mxu0 0
        %2530 = vmatprep.subr.bf16.mxu0 0
        %2531 = vmatpush1.bf16.msra.mxu0 0
        %2532 = vmatprep.subr.bf16.mxu0 0
        %2533 = vmatpush1.bf16.msra.mxu0 0
        %2534 = vmatprep.subr.bf16.mxu0 0
        %2535 = vmatpush1.bf16.msra.mxu0 0
        %2536 = vmatprep.subr.bf16.mxu0 0
        %2537 = vmatpush1.bf16.msra.mxu0 0
        %2538 = vmatprep.subr.bf16.mxu0 0
        %2539 = vmatpush1.bf16.msra.mxu0 0
        %2540 = vmatprep.subr.bf16.mxu0 0
        %2541 = vmatpush1.bf16.msra.mxu0 %v2510
        %2542 = vmatprep.subr.bf16.mxu0 0
        %2543 = vmatpush2.bf16.msra.mxu0 0
        %2544 = vmatprep.subr.bf16.mxu0 0
        %2545 = vmatpush2.bf16.msra.mxu0 0
        %2546 = vmatprep.subr.bf16.mxu0 0
        %2547 = vmatpush2.bf16.msra.mxu0 0
        %2548 = vmatprep.subr.bf16.mxu0 0
        %2549 = vmatpush2.bf16.msra.mxu0 0
        %2550 = vmatprep.subr.bf16.mxu0 0
        %2551 = vmatpush2.bf16.msra.mxu0 0
        %2552 = vmatprep.subr.bf16.mxu0 0
        %2553 = vmatpush2.bf16.msra.mxu0 0
        %2554 = vmatprep.subr.bf16.mxu0 0
        %2555 = vmatpush2.bf16.msra.mxu0 0
        %2556 = vmatprep.subr.bf16.mxu0 0
        %2557 = vmatpush2.bf16.msra.mxu0 0
        %2558 = vmatprep.mubr.bf16.mxu0 0
        %2559 = vmatmul.mubr.bf16.gmra.mxu0 %v2524
        %v2560 = vpop.f32.mrf.mxu0
        %v2561 = vadd.f32 0.0, %v2560
        %v2562 = vpop.f32.mrf.mxu0
        %v2563 = vpop.f32.mrf.mxu0
        %v2564 = vpop.f32.mrf.mxu0
        %2565 = vdwg.mxu0
        %v2566 = vpack.c.bf16 %v2561, %v2561
        %v2567 = vld [vmem:[%s18] sm:$0xf]
        %v2568 = vld [vmem:[%s18 + $0x4] sm:$0xf]
        %v2569 = vld [vmem:[%s18 + $0x8] sm:$0xf]
        %v2570 = vld [vmem:[%s18 + $0xc] sm:$0xf]
        %v2571 = vld [vmem:[%s18 + $0x10] sm:$0xf]
        %v2572 = vld [vmem:[%s18 + $0x14] sm:$0xf]
        %v2573 = vld [vmem:[%s18 + $0x18] sm:$0xf]
        %v2574 = vld [vmem:[%s18 + $0x1c] sm:$0xf]
        %v2583 = vunpack.c.l.b16 %v2567
        %v2584 = vunpack.c.l.b16 %v2568
        %v2585 = vunpack.c.l.b16 %v2569
        %v2586 = vunpack.c.l.b16 %v2570
        %v2587 = vunpack.c.l.b16 %v2571
        %v2588 = vunpack.c.l.b16 %v2572
        %v2589 = vunpack.c.l.b16 %v2573
        %v2590 = vunpack.c.l.b16 %v2574
        %v2591 = vpack.c.b16 %v2584, %v2583
        %v2592 = vpack.c.b16 %v2586, %v2585
        %v2593 = vpack.c.b16 %v2588, %v2587
        %v2594 = vpack.c.b16 %v2590, %v2589
        %v2600 = vsel %vm718, %v2566, 0
        %2602 = vmatprep.subr.bf16.mxu0 0
        %2603 = vmatpush1.bf16.msra.mxu0 0
        %2604 = vmatprep.subr.bf16.mxu0 0
        %2605 = vmatpush1.bf16.msra.mxu0 0
        %2606 = vmatprep.subr.bf16.mxu0 0
        %2607 = vmatpush1.bf16.msra.mxu0 0
        %2608 = vmatprep.subr.bf16.mxu0 0
        %2609 = vmatpush1.bf16.msra.mxu0 0
        %2610 = vmatprep.subr.bf16.mxu0 0
        %2611 = vmatpush1.bf16.msra.mxu0 %v2594
        %2612 = vmatprep.subr.bf16.mxu0 0
        %2613 = vmatpush1.bf16.msra.mxu0 %v2593
        %2614 = vmatprep.subr.bf16.mxu0 0
        %2615 = vmatpush1.bf16.msra.mxu0 %v2592
        %2616 = vmatprep.subr.bf16.mxu0 0
        %2617 = vmatpush1.bf16.msra.mxu0 %v2591
        %2618 = vmatprep.subr.bf16.mxu0 0
        %2619 = vmatpush2.bf16.msra.mxu0 0
        %2620 = vmatprep.subr.bf16.mxu0 0
        %2621 = vmatpush2.bf16.msra.mxu0 0
        %2622 = vmatprep.subr.bf16.mxu0 0
        %2623 = vmatpush2.bf16.msra.mxu0 0
        %2624 = vmatprep.subr.bf16.mxu0 0
        %2625 = vmatpush2.bf16.msra.mxu0 0
        %2626 = vmatprep.subr.bf16.mxu0 0
        %2627 = vmatpush2.bf16.msra.mxu0 0
        %2628 = vmatprep.subr.bf16.mxu0 0
        %2629 = vmatpush2.bf16.msra.mxu0 0
        %2630 = vmatprep.subr.bf16.mxu0 0
        %2631 = vmatpush2.bf16.msra.mxu0 0
        %2632 = vmatprep.subr.bf16.mxu0 0
        %2633 = vmatpush2.bf16.msra.mxu0 0
        %2634 = vmatprep.mubr.bf16.mxu0 0
        %2635 = vmatmul.mubr.bf16.gmra.mxu0 %v2600
        %v2636 = vpop.f32.mrf.mxu0
        %v2637 = vadd.f32 0.0, %v2636
        %v2638 = vpop.f32.mrf.mxu0
        %v2639 = vpop.f32.mrf.mxu0
        %v2640 = vpop.f32.mrf.mxu0
        %2641 = vdwg.mxu0
        %vm2642 = vcmask 1041408
        %v2643 = vsel %vm2642, %v2637, -inf
        %2644 = vmax.xlane.f32.xlu0 %v2643
        %v2645 = vpop.xlane.xlu0 %2644
        %vm2646 = vcmp.eq.f32.partialorder %v2637, %v2645
        %v2647 = vsel %vm2646, %v2514, 128
        %v2648 = vsel %vm2642, %v2647, 2147483647
        %v2649 = vand.u32 %v2648, 65535
        %v2650 = vshra.s32 %v2648, 16
        %v2651 = vcvt.s32.f32 %v2649
        %v2652 = vcvt.s32.f32 %v2650
        %2653 = vmin.xlane.f32.xlu0 %v2652
        %v2654 = vpop.xlane.xlu0 %2653
        %vm2655 = vcmp.eq.f32.partialorder %v2652, %v2654
        %v2656 = vsel %vm2655, %v2651, inf
        %2657 = vmin.xlane.f32.xlu0 %v2656
        %v2658 = vpop.xlane.xlu0 %2657
        %v2659 = vcvt.f32.s32 %v2658
        %v2660 = vcvt.f32.s32 %v2654
        %v2661 = vshll.u32 %v2660, 16
        %v2662 = vadd.s32 %v2661, %v2659
        %vm2663 = vcmp.eq.s32.totalorder %v2514, %v2662
        %v2664 = vsel %vm2663, 1, 0
        %v2665 = vcvt.s32.f32 %v2664
        %v2666 = vpack.c.bf16 %v2665, %v2665
        %v2667 = vadd.s32 %v2512, 8
        %v2668 = vmul.u32 %v2514, 8
        %v2669 = vstv %s595
        %v2670 = vadd.s32 %v2668, %v2669
        %vm2671 = vcmp.eq.s32.totalorder %v2512, %v2670
        %vm2672 = vcmp.eq.s32.totalorder %v2667, %v2670
        %v2673 = vsel %vm2671, 1, 0
        %v2674 = vsel %vm2672, 1, 0
        %v2675 = vcvt.s32.f32 %v2673
        %v2676 = vcvt.s32.f32 %v2674
        %v2677 = vpack.c.bf16 %v2676, %v2675
        %vm2678 = vcmask 15360
        %v2680 = vsel %vm2678, %v2677, 0
        %vm2682 = vcmask 1040384
        %v2684 = vsel %vm2682, %v2666, 0
        %2686 = vmatprep.subr.bf16.mxu0 0
        %2687 = vmatpush1.bf16.msra.mxu0 0
        %2688 = vmatprep.subr.bf16.mxu0 0
        %2689 = vmatpush1.bf16.msra.mxu0 0
        %2690 = vmatprep.subr.bf16.mxu0 0
        %2691 = vmatpush1.bf16.msra.mxu0 0
        %2692 = vmatprep.subr.bf16.mxu0 0
        %2693 = vmatpush1.bf16.msra.mxu0 0
        %2694 = vmatprep.subr.bf16.mxu0 0
        %2695 = vmatpush1.bf16.msra.mxu0 0
        %2696 = vmatprep.subr.bf16.mxu0 0
        %2697 = vmatpush1.bf16.msra.mxu0 0
        %2698 = vmatprep.subr.bf16.mxu0 0
        %2699 = vmatpush1.bf16.msra.mxu0 0
        %2700 = vmatprep.subr.bf16.mxu0 0
        %2701 = vmatpush1.bf16.msra.mxu0 %v2684
        %2702 = vmatprep.subr.bf16.mxu0 0
        %2703 = vmatpush2.bf16.msra.mxu0 0
        %2704 = vmatprep.subr.bf16.mxu0 0
        %2705 = vmatpush2.bf16.msra.mxu0 0
        %2706 = vmatprep.subr.bf16.mxu0 0
        %2707 = vmatpush2.bf16.msra.mxu0 0
        %2708 = vmatprep.subr.bf16.mxu0 0
        %2709 = vmatpush2.bf16.msra.mxu0 0
        %2710 = vmatprep.subr.bf16.mxu0 0
        %2711 = vmatpush2.bf16.msra.mxu0 0
        %2712 = vmatprep.subr.bf16.mxu0 0
        %2713 = vmatpush2.bf16.msra.mxu0 0
        %2714 = vmatprep.subr.bf16.mxu0 0
        %2715 = vmatpush2.bf16.msra.mxu0 0
        %2716 = vmatprep.subr.bf16.mxu0 0
        %2717 = vmatpush2.bf16.msra.mxu0 0
        %2718 = vmatprep.mubr.bf16.mxu0 0
        %2719 = vmatmul.mubr.bf16.gmra.mxu0 %v2680
        %v2720 = vpop.f32.mrf.mxu0
        %v2721 = vadd.f32 0.0, %v2720
        %v2722 = vpop.f32.mrf.mxu0
        %v2723 = vpop.f32.mrf.mxu0
        %v2724 = vadd.f32 0.0, %v2723
        %v2725 = vpop.f32.mrf.mxu0
        %2726 = vdwg.mxu0
        %v2727 = vand.u32 %v2512, 7
        %v2728 = vand.u32 %v2667, 7
        %vm2729 = vcmp.eq.s32.totalorder %v2727, %v2669
        %vm2730 = vcmp.eq.s32.totalorder %v2728, %v2669
        %v2731 = vsel %vm2729, 1, 0
        %v2732 = vsel %vm2730, 1, 0
        %vm2733 = vcmp.eq.s32.totalorder %v2731, 1
        %vm2734 = vcmp.eq.s32.totalorder %v2732, 1
        %v2735 = vsel %vm2733, %v2721, %v606
        %v2736 = vsel %vm2734, %v2724, %v607
        %2737 = vst [vmem:[#allocation2] sm:$0xff] %v2735
        %2738 = vst [vmem:[#allocation2 + $0x8] sm:$0xff] %v2736
        %p2739 = scmp.eq.s32.totalorder %s33, 3
        // Predicated region
        $region101: #{wrapper_gpt2_forward.1} parent=95 // pred_check
          %p2740 = pneg %p2739
        $region102: #{wrapper_gpt2_forward.1} parent=95 // pred_check_branch
          %2742 = sbr.rel (%p2740) target = $region104
        $region103: #{wrapper_gpt2_forward.1} parent=95 // pred_region
          %v2743 = vcvt.f32.s32.to.zero.pseudo %v2735
          %v2744 = vcvt.f32.s32.to.zero.pseudo %v2736
          %2745 = vst [vmem:[#allocation3] sm:$0xff] %v2743
          %2746 = vst [vmem:[#allocation3 + $0x8] sm:$0xff] %v2744
          %vm2747 = vcmp.gt.f32.partialorder %v2735, 0.5
          %vm2748 = vcmp.gt.f32.partialorder %v2736, 0.5
          %v2749 = vsel %vm2747, %v2514, 0
          %v2750 = vsel %vm2748, %v2514, 0
          %v2751 = vand.u32 %v2749, 65535
          %v2752 = vshrl.u32 %v2749, 16
          %v2753 = vcvt.s32.f32 %v2751
          %v2754 = vcvt.s32.f32 %v2752
          %2755 = vadd.xlane.f32.xlu0 %v2753
          %v2756 = vpop.xlane.xlu0 %2755
          %2757 = vadd.xlane.f32.xlu0 %v2754
          %v2758 = vpop.xlane.xlu0 %2757
          %v2759 = vcvt.f32.s32 %v2756
          %v2760 = vcvt.f32.s32 %v2758
          %v2761 = vshll.u32 %v2760, 16
          %v2762 = vadd.s32 %v2761, %v2759
          %v2763 = vand.u32 %v2750, 65535
          %v2764 = vshrl.u32 %v2750, 16
          %v2765 = vcvt.s32.f32 %v2763
          %v2766 = vcvt.s32.f32 %v2764
          %2767 = vadd.xlane.f32.xlu0 %v2765
          %v2768 = vpop.xlane.xlu0 %2767
          %2769 = vadd.xlane.f32.xlu0 %v2766
          %v2770 = vpop.xlane.xlu0 %2769
          %v2771 = vcvt.f32.s32 %v2768
          %v2772 = vcvt.f32.s32 %v2770
          %v2773 = vshll.u32 %v2772, 16
          %v2774 = vadd.s32 %v2773, %v2771
          %vm2775 = vcmask 7168
          %2776 = vst.msk [vmem:[%s20] sm:$0xff] %vm2775, %v2762
          %2777 = vst.msk [vmem:[%s20 + $0x8] sm:$0xff] %vm2775, %v2774
        $region104: #{wrapper_gpt2_forward.1} parent=95 // pred_fallthru
          _
        // Predicated region
        $region105: #{wrapper_gpt2_forward.1} parent=95 // pred_check
          %p2778 = pneg %p445
        $region106: #{wrapper_gpt2_forward.1} parent=95 // pred_check_branch
          %2780 = sbr.rel (%p2778) target = $region108
        $region107: #{wrapper_gpt2_forward.1} parent=95 // pred_region
          %s2782 = ssub.s32 256, 256
          %2783 = vsyncadd [#allocation4], %s2782
          %s2784 = sshll.u32 [#allocation3], 4
          %s2785 = int_to_ptr.vmem [resolvable:$true] %s2784
          %2790 = dma.vmem_to_hbm [thread:$0]  %s2785, 256, %s19, [#allocation4], 128, 128, 8
        $region108: #{wrapper_gpt2_forward.1} parent=95 // pred_fallthru
          _
        // Predicated region
        $region109: #{wrapper_gpt2_forward.1} parent=95 // pred_check
          %p2791 = pneg %p466
        $region110: #{wrapper_gpt2_forward.1} parent=95 // pred_check_branch
          %2793 = sbr.rel (%p2791) target = $region112
        $region111: #{wrapper_gpt2_forward.1} parent=95 // pred_region
          _
        $region112: #{wrapper_gpt2_forward.1} parent=95 // pred_fallthru
          _
        // Predicated region
        $region113: #{wrapper_gpt2_forward.1} parent=95 // pred_check
          %p2794 = pneg %p445
        $region114: #{wrapper_gpt2_forward.1} parent=95 // pred_check_branch
          %2796 = sbr.rel (%p2794) target = $region116
        $region115: #{wrapper_gpt2_forward.1} parent=95 // pred_region
          %2797 = dma.done [#allocation4], 256
        $region116: #{wrapper_gpt2_forward.1} parent=95 // pred_fallthru
          _
        // Predicated region
        $region117: #{wrapper_gpt2_forward.1} parent=95 // pred_check
          %p2798 = pneg %p466
        $region118: #{wrapper_gpt2_forward.1} parent=95 // pred_check_branch
          %2800 = sbr.rel (%p2798) target = $region120
        $region119: #{wrapper_gpt2_forward.1} parent=95 // pred_region
          _
        $region120: #{wrapper_gpt2_forward.1} parent=95 // pred_fallthru
          _
      $region96: #{wrapper_gpt2_forward.1} parent=5 // pred_fallthru
        _
      %p2801 = scmp.le.s32.totalorder 2, %s28
      // Predicated region
      $region121: #{wrapper_gpt2_forward.1} parent=5 // pred_check
        %p2802 = pneg %p2801
      $region122: #{wrapper_gpt2_forward.1} parent=5 // pred_check_branch
        %2804 = sbr.rel (%p2802) target = $region124
      $region123: #{wrapper_gpt2_forward.1} parent=5 // pred_region
        %s2805 = ssub.s32 %s28, 2
      $region124: #{wrapper_gpt2_forward.1} parent=5 // pred_fallthru
        _
    $region6: #{wrapper_gpt2_forward.1} parent=1 // loop_footer
      %s32 = sadd.s32 1, %s28
    $region7: #{wrapper_gpt2_forward.1} parent=1 // loop_footer_branch
      %27 = sbr.rel target = $region3
    $region8: #{wrapper_gpt2_forward.1} parent=1 // loop_exit
      _
    %2806 = vsyncpa [#allocation4], 1
    %s2807 = scalar_lea.sflag [#allocation4], 1
    %2808 = vsyncpa %s2807, 1

</llo_original>
